<compile_context>
chip_gen: v7x
topology: tpu7x:2x2x1
jax: 0.10.0
libtpu: 0.0.40
codegen_flags: <defaults>
</compile_context>

<pallas_src>
import functools

import jax
import jax.numpy as jnp
from jax.experimental import pallas as pl
from jax.experimental.pallas import tpu as pltpu


_MXU_DTYPE = jnp.bfloat16          # matmul operand dtype (accumulation stays f32)
_VMEM_LIMIT = 32 * 1024 * 1024     # <= v7x default scoped budget; blocks are tiny
_BN_EPS = 1e-5                     # PyTorch BatchNorm2d default


# ---------------------------------------------------------------------------
# helpers
# ---------------------------------------------------------------------------
def _pick_row_tile(m, bytes_per_row, max_rows=2048, vmem_budget=8 * 1024 * 1024):
    """Largest row tile <= max_rows that divides m, is a multiple of 8 and fits
    a VMEM byte budget; falls back to the full extent for tiny/odd m."""
    cap = min(max_rows, m, max(8, vmem_budget // max(1, bytes_per_row)))
    t = (cap // 8) * 8
    while t >= 8:
        if m % t == 0:
            return t
        t -= 8
    return m


def _pick_batch_tile(n, per_image_bytes, max_bt=8, vmem_budget=4 * 1024 * 1024):
    """Largest batch tile <= max_bt that divides n and fits the VMEM budget."""
    cap = max(1, min(max_bt, n, vmem_budget // max(1, per_image_bytes)))
    bt = cap
    while bt > 1 and n % bt != 0:
        bt -= 1
    return bt


def _bn_affine_from_stats(psum, psq, gamma, beta, count, eps=_BN_EPS):
    """Training-mode BN folded into a per-channel (scale, shift) pair from
    per-grid-step partial sums (grid, 1, C)."""
    ssum = jnp.sum(psum, axis=(0, 1))
    ssq = jnp.sum(psq, axis=(0, 1))
    mean = ssum / count
    # NOTE: E[x^2]-E[x]^2 in f32; clamp cancellation. Fine at these counts.
    var = jnp.maximum(ssq / count - mean * mean, 0.0)
    scale = gamma / jnp.sqrt(var + eps)
    shift = beta - mean * scale
    return scale.reshape(1, -1), shift.reshape(1, -1)


# ---------------------------------------------------------------------------
# Kernel 1 (stride-2 path): ReLU -> 3x3 conv (stride 2) + BN partial stats,
# FUSED with the shortcut AvgPool2d(2,2) + 1x1 conv.  Inputs are a single
# wrapper-side zero-pad + parity split of x (done once, shared by both paths);
# in-kernel every tap is a contiguous slice and a per-tap MXU matmul.
# ---------------------------------------------------------------------------
def _make_conv3x3_s2_short_kernel(bt, ho, wo, cin, cout):
    rows = bt * ho * wo

    def kernel(xee_ref, xeo_ref, xoe_ref, xoo_ref, w_ref, wd_ref,
               o_ref, r_ref, sum_ref, sq_ref):
        xs = ((xee_ref[...], xeo_ref[...]), (xoe_ref[...], xoo_ref[...]))

        def tap(dh, dw):
            a = xs[dh % 2][dw % 2]
            return a[:, dh // 2:dh // 2 + ho, dw // 2:dw // 2 + wo, :]

        # --- fused shortcut: AvgPool2d(2,2,0) + 1x1 conv (no ReLU, no BN) ---
        pool = (tap(1, 1) + tap(1, 2) + tap(2, 1) + tap(2, 2)) * 0.25
        pm = pool.reshape(rows, cin).astype(_MXU_DTYPE)
        res = jnp.dot(pm, wd_ref[...], preferred_element_type=jnp.float32)
        r_ref[...] = res.reshape(bt, ho, wo, cout)

        # --- conv_a: ReLU -> 3x3 / stride 2 as 9 accumulated per-tap matmuls ---
        acc = jnp.zeros((rows, cout), jnp.float32)
        for dh in range(3):
            for dw in range(3):
                t = jnp.maximum(tap(dh, dw), 0.0)          # ReLU (pad 0 stays 0)
                m = t.reshape(rows, cin).astype(_MXU_DTYPE)
                acc = acc + jnp.dot(m, w_ref[dh * 3 + dw],
                                    preferred_element_type=jnp.float32)
        o_ref[...] = acc.reshape(bt, ho, wo, cout)
        sum_ref[...] = jnp.sum(acc, axis=0).reshape(1, 1, cout)
        sq_ref[...] = jnp.sum(acc * acc, axis=0).reshape(1, 1, cout)
    return kernel


def relu_conv3x3_s2_fused_shortcut(x, w_hwio, w_1x1):
    n, h, w, cin = x.shape
    cout = w_hwio.shape[-1]
    assert h % 2 == 0 and w % 2 == 0, "stride-2 path expects even H, W"
    ho, wo = h // 2, w // 2
    hh, wh = ho + 1, wo + 1
    # Single zero-pad + parity split of x, shared by conv_a and the shortcut.
    # (ReLU(0)==0, so padding before the in-kernel ReLU matches PyTorch's
    #  ReLU -> Conv(pad=1).)
    xp = jnp.pad(x, ((0, 0), (1, 1), (1, 1), (0, 0)))
    xre, xro = xp[:, 0::2], xp[:, 1::2]
    xee, xeo = xre[:, :, 0::2], xre[:, :, 1::2]
    xoe, xoo = xro[:, :, 0::2], xro[:, :, 1::2]
    wconv = w_hwio.reshape(9, cin, cout).astype(_MXU_DTYPE)
    wd = w_1x1.astype(_MXU_DTYPE)

    per_img = 4 * (4 * hh * wh * cin + 4 * ho * wo * cout + 2 * ho * wo * cout)
    bt = _pick_batch_tile(n, per_img)
    grid = n // bt

    in_spec = pl.BlockSpec((bt, hh, wh, cin), lambda i: (i, 0, 0, 0))
    out_spec = pl.BlockSpec((bt, ho, wo, cout), lambda i: (i, 0, 0, 0))
    stat_spec = pl.BlockSpec((1, 1, cout), lambda i: (i, 0, 0))
    out, res, psum, psq = pl.pallas_call(
        _make_conv3x3_s2_short_kernel(bt, ho, wo, cin, cout),
        out_shape=(jax.ShapeDtypeStruct((n, ho, wo, cout), jnp.float32),
                   jax.ShapeDtypeStruct((n, ho, wo, cout), jnp.float32),
                   jax.ShapeDtypeStruct((grid, 1, cout), jnp.float32),
                   jax.ShapeDtypeStruct((grid, 1, cout), jnp.float32)),
        grid=(grid,),
        in_specs=[in_spec, in_spec, in_spec, in_spec,
                  pl.BlockSpec((9, cin, cout), lambda i: (0, 0, 0)),
                  pl.BlockSpec((cin, cout), lambda i: (0, 0))],
        out_specs=(out_spec, out_spec, stat_spec, stat_spec),
        compiler_params=pltpu.CompilerParams(
            dimension_semantics=("parallel",), vmem_limit_bytes=_VMEM_LIMIT),
    )(xee, xeo, xoe, xoo, wconv, wd)
    return out, psum, psq, res


# ---------------------------------------------------------------------------
# Kernel 2: [producer BN affine] -> ReLU -> 3x3 conv (stride 1) with in-kernel
# zero padding via a VMEM scratch (border-only zeroing) + BN partial stats.
# ---------------------------------------------------------------------------
def _make_conv3x3_s1_kernel(bt, h, w, cin, cout):
    rows = bt * h * w

    def kernel(x_ref, scale_ref, shift_ref, w_ref, o_ref, sum_ref, sq_ref, pad_ref):
        # fused BN-apply of the producer + ReLU (identity affine for conv_a)
        a = jnp.maximum(x_ref[...] * scale_ref[...] + shift_ref[...], 0.0)

        # zero only the 1-pixel border; interior is fully overwritten each step
        zr = jnp.zeros((bt, 1, w + 2, cin), jnp.float32)
        zc = jnp.zeros((bt, h + 2, 1, cin), jnp.float32)
        pad_ref[:, 0:1, :, :] = zr
        pad_ref[:, h + 1:h + 2, :, :] = zr
        pad_ref[:, :, 0:1, :] = zc
        pad_ref[:, :, w + 1:w + 2, :] = zc
        pad_ref[:, 1:h + 1, 1:w + 1, :] = a

        acc = jnp.zeros((rows, cout), jnp.float32)
        for dh in range(3):
            for dw in range(3):
                t = pad_ref[:, dh:dh + h, dw:dw + w, :]
                m = t.reshape(rows, cin).astype(_MXU_DTYPE)
                acc = acc + jnp.dot(m, w_ref[dh * 3 + dw],
                                    preferred_element_type=jnp.float32)
        o_ref[...] = acc.reshape(bt, h, w, cout)
        sum_ref[...] = jnp.sum(acc, axis=0).reshape(1, 1, cout)
        sq_ref[...] = jnp.sum(acc * acc, axis=0).reshape(1, 1, cout)
    return kernel


def affine_relu_conv3x3_s1_stats(x, scale, shift, w_hwio):
    n, h, w, cin = x.shape
    cout = w_hwio.shape[-1]
    wconv = w_hwio.reshape(9, cin, cout).astype(_MXU_DTYPE)

    per_img = 4 * (2 * h * w * cin + (h + 2) * (w + 2) * cin + 3 * h * w * cout)
    bt = _pick_batch_tile(n, per_img)
    grid = n // bt

    stat_spec = pl.BlockSpec((1, 1, cout), lambda i: (i, 0, 0))
    out, psum, psq = pl.pallas_call(
        _make_conv3x3_s1_kernel(bt, h, w, cin, cout),
        out_shape=(jax.ShapeDtypeStruct((n, h, w, cout), jnp.float32),
                   jax.ShapeDtypeStruct((grid, 1, cout), jnp.float32),
                   jax.ShapeDtypeStruct((grid, 1, cout), jnp.float32)),
        grid=(grid,),
        in_specs=[pl.BlockSpec((bt, h, w, cin), lambda i: (i, 0, 0, 0)),
                  pl.BlockSpec((1, cin), lambda i: (0, 0)),
                  pl.BlockSpec((1, cin), lambda i: (0, 0)),
                  pl.BlockSpec((9, cin, cout), lambda i: (0, 0, 0))],
        out_specs=(pl.BlockSpec((bt, h, w, cout), lambda i: (i, 0, 0, 0)),
                   stat_spec, stat_spec),
        scratch_shapes=[pltpu.VMEM((bt, h + 2, w + 2, cin), jnp.float32)],
        compiler_params=pltpu.CompilerParams(
            dimension_semantics=("parallel",), vmem_limit_bytes=_VMEM_LIMIT),
    )(x, scale, shift, wconv)
    return out, psum, psq


# ---------------------------------------------------------------------------
# Kernel 3: stride-1, channel-changing shortcut: ReLU -> 1x1 conv + BN partial
# stats, on a flattened (M, Cin) layout.
# ---------------------------------------------------------------------------
def _relu_conv1x1_stats_kernel(x_ref, w_ref, o_ref, sum_ref, sq_ref):
    a = jnp.maximum(x_ref[...], 0.0).astype(_MXU_DTYPE)
    y = jnp.dot(a, w_ref[...], preferred_element_type=jnp.float32)
    o_ref[...] = y
    cout = y.shape[-1]
    sum_ref[...] = jnp.sum(y, axis=0).reshape(1, 1, cout)
    sq_ref[...] = jnp.sum(y * y, axis=0).reshape(1, 1, cout)


def relu_conv1x1_stats(x, w_1x1):
    n, h, w, cin = x.shape
    cout = w_1x1.shape[-1]
    m = n * h * w
    tm = _pick_row_tile(m, bytes_per_row=(2 * cin + 3 * cout) * 4)
    grid = m // tm
    xm = x.reshape(m, cin)
    wmat = w_1x1.astype(_MXU_DTYPE)
    stat_spec = pl.BlockSpec((1, 1, cout), lambda i: (i, 0, 0))
    out, psum, psq = pl.pallas_call(
        _relu_conv1x1_stats_kernel,
        out_shape=(jax.ShapeDtypeStruct((m, cout), jnp.float32),
                   jax.ShapeDtypeStruct((grid, 1, cout), jnp.float32),
                   jax.ShapeDtypeStruct((grid, 1, cout), jnp.float32)),
        grid=(grid,),
        in_specs=[pl.BlockSpec((tm, cin), lambda i: (i, 0)),
                  pl.BlockSpec((cin, cout), lambda i: (0, 0))],
        out_specs=(pl.BlockSpec((tm, cout), lambda i: (i, 0)),
                   stat_spec, stat_spec),
        compiler_params=pltpu.CompilerParams(
            dimension_semantics=("parallel",), vmem_limit_bytes=_VMEM_LIMIT),
    )(xm, wmat)
    return out.reshape(n, h, w, cout), psum, psq


# ---------------------------------------------------------------------------
# Kernel 4: final fused residual add:  (r*sr + tr) + (y*sy + ty)
#           executed lane-dense on (M, 128) blocks whenever layout permits.
# ---------------------------------------------------------------------------
def _affine_add_kernel(r_ref, y_ref, sr_ref, tr_ref, sy_ref, ty_ref, o_ref):
    o_ref[...] = (r_ref[...] * sr_ref[...] + tr_ref[...]
                  + y_ref[...] * sy_ref[...] + ty_ref[...])


def affine_add(residual, scale_r, shift_r, y, scale_y, shift_y):
    shape = y.shape
    c = shape[-1]
    total = y.size
    if total % 128 == 0 and 128 % c == 0:
        lanes = 128
        rep = lanes // c
        r2 = residual.reshape(-1, lanes)
        y2 = y.reshape(-1, lanes)
        sr = jnp.tile(scale_r, (1, rep))
        tr = jnp.tile(shift_r, (1, rep))
        sy = jnp.tile(scale_y, (1, rep))
        ty = jnp.tile(shift_y, (1, rep))
    else:
        lanes = c
        r2 = residual.reshape(-1, c)
        y2 = y.reshape(-1, c)
        sr, tr, sy, ty = scale_r, shift_r, scale_y, shift_y
    m = r2.shape[0]
    tm = _pick_row_tile(m, bytes_per_row=3 * lanes * 4)
    vec = pl.BlockSpec((1, lanes), lambda i: (0, 0))
    out = pl.pallas_call(
        _affine_add_kernel,
        out_shape=jax.ShapeDtypeStruct((m, lanes), jnp.float32),
        grid=(m // tm,),
        in_specs=[pl.BlockSpec((tm, lanes), lambda i: (i, 0)),
                  pl.BlockSpec((tm, lanes), lambda i: (i, 0)),
                  vec, vec, vec, vec],
        out_specs=pl.BlockSpec((tm, lanes), lambda i: (i, 0)),
        compiler_params=pltpu.CompilerParams(
            dimension_semantics=("parallel",), vmem_limit_bytes=_VMEM_LIMIT),
    )(r2, y2, sr, tr, sy, ty)
    return out.reshape(shape)


# ---------------------------------------------------------------------------
# ResNetBasicblock forward (NCHW in / NCHW out)
# ---------------------------------------------------------------------------
def resnet_basicblock_forward(params, x_nchw, stride):
    assert stride in (1, 2)
    x = jnp.transpose(x_nchw, (0, 2, 3, 1)).astype(jnp.float32)   # NHWC
    n, h, w, inplanes = x.shape
    planes = params["wa"].shape[-1]
    oh, ow = (h // 2, w // 2) if stride == 2 else (h, w)
    count = n * oh * ow

    one_p = jnp.ones((1, planes), jnp.float32)
    zero_p = jnp.zeros((1, planes), jnp.float32)

    if stride == 2:
        # conv_a (ReLU->3x3/s2) + fused shortcut (AvgPool2x2 + 1x1, no BN)
        ya, sa, qa, residual = relu_conv3x3_s2_fused_shortcut(
            x, params["wa"], params["wd"])
        scale_r, shift_r = one_p, zero_p
    else:
        ident_s = jnp.ones((1, inplanes), jnp.float32)
        ident_t = jnp.zeros((1, inplanes), jnp.float32)
        ya, sa, qa = affine_relu_conv3x3_s1_stats(x, ident_s, ident_t, params["wa"])
        if inplanes != planes:
            residual, sr, qr = relu_conv1x1_stats(x, params["wd"])
            scale_r, shift_r = _bn_affine_from_stats(
                sr, qr, params["bn_d_g"], params["bn_d_b"], n * h * w)
        else:
            residual = x
            scale_r, shift_r = one_p, zero_p

    # conv_a's BN is folded forward into conv_b's producer affine
    scale_a, shift_a = _bn_affine_from_stats(sa, qa, params["bn_a_g"],
                                             params["bn_a_b"], count)
    yb, sb, qb = affine_relu_conv3x3_s1_stats(ya, scale_a, shift_a, params["wb"])
    scale_b, shift_b = _bn_affine_from_stats(sb, qb, params["bn_b_g"],
                                             params["bn_b_b"], count)

    out = affine_add(residual, scale_r, shift_r, yb, scale_b, shift_b)
    return jnp.transpose(out, (0, 3, 1, 2))                # back to NCHW


# ---------------------------------------------------------------------------
# Parameters (deterministic, matching the module's shapes) + pure-JAX reference
# ---------------------------------------------------------------------------
def init_params(key, inplanes, planes, stride):
    ks = jax.random.split(key, 3)

    def nrm(k, shape):
        return 0.1 * jax.random.normal(k, shape, jnp.float32)

    p = {
        "wa": nrm(ks[0], (3, 3, inplanes, planes)),        # HWIO
        "bn_a_g": jnp.ones((planes,), jnp.float32),
        "bn_a_b": jnp.zeros((planes,), jnp.float32),
        "wb": nrm(ks[1], (3, 3, planes, planes)),
        "bn_b_g": jnp.ones((planes,), jnp.float32),
        "bn_b_b": jnp.zeros((planes,), jnp.float32),
    }
    if stride == 2 or inplanes != planes:
        p["wd"] = nrm(ks[2], (inplanes, planes))           # 1x1 conv as (Cin,Cout)
    if stride == 1 and inplanes != planes:
        p["bn_d_g"] = jnp.ones((planes,), jnp.float32)
        p["bn_d_b"] = jnp.zeros((planes,), jnp.float32)
    return p


def _ref_forward(params, x_nchw, stride, eps=_BN_EPS):
    x = jnp.transpose(x_nchw, (0, 2, 3, 1)).astype(jnp.float32)

    def relu_conv_bn(z, w_hwio, gamma, beta, s, pad):
        a = jnp.maximum(z, 0.0)
        y = jax.lax.conv_general_dilated(
            a, w_hwio, (s, s), [(pad, pad), (pad, pad)],
            dimension_numbers=("NHWC", "HWIO", "NHWC"),
            precision=jax.lax.Precision.HIGHEST)
        mean = jnp.mean(y, axis=(0, 1, 2))
        var = jnp.mean((y - mean) ** 2, axis=(0, 1, 2))
        return (y - mean) / jnp.sqrt(var + eps) * gamma + beta

    ya = relu_conv_bn(x, params["wa"], params["bn_a_g"], params["bn_a_b"], stride, 1)
    yb = relu_conv_bn(ya, params["wb"], params["bn_b_g"], params["bn_b_b"], 1, 1)
    n, h, w, cin = x.shape
    planes = params["wa"].shape[-1]
    if stride == 2:
        pooled = x.reshape(n, h // 2, 2, w // 2, 2, cin).mean(axis=(2, 4))
        residual = jnp.einsum("nhwc,cd->nhwd", pooled, params["wd"],
                              precision=jax.lax.Precision.HIGHEST)
    elif cin != planes:
        residual = relu_conv_bn(x, params["wd"].reshape(1, 1, cin, planes),
                                params["bn_d_g"], params["bn_d_b"], 1, 0)
    else:
        residual = x
    return jnp.transpose(residual + yb, (0, 3, 1, 2))


if __name__ == "__main__":
    key = jax.random.PRNGKey(0)
    configs = [
        # (name, inplanes, planes, stride, N, H, W)
        ("stride2_avgpool_downsample", 16, 32, 2, 2, 16, 16),
        ("stride1_identity",           32, 32, 1, 2, 16, 16),
        ("stride1_1x1_downsample",     16, 32, 1, 2, 16, 16),
    ]
    for name, inplanes, planes, stride, n, h, w in configs:
        kx, kp, key = jax.random.split(key, 3)
        x = jax.random.normal(kx, (n, inplanes, h, w), jnp.float32)
        params = init_params(kp, inplanes, planes, stride)

        fwd = jax.jit(functools.partial(resnet_basicblock_forward, params,
                                        stride=stride))
        out = fwd(x)
        jax.block_until_ready(out)

        oh, ow = (h // 2, w // 2) if stride == 2 else (h, w)
        assert out.shape == (n, planes, oh, ow), (name, out.shape)
        assert bool(jnp.all(jnp.isfinite(out))), name

        ref = _ref_forward(params, x, stride)
        err = float(jnp.max(jnp.abs(out - ref)))
        assert err < 1e-1, (name, err)   # bf16 MXU operands, f32 accumulation

    print("KERNEL_OK")
</pallas_src>

<mosaic_0001>
module attributes {stable_mosaic.version = 11 : i64} {
  func.func @kernel(%arg0: i32, %arg1: memref<2x9x9x16xf32, #tpu.memory_space<vmem>>, %arg2: memref<2x9x9x16xf32, #tpu.memory_space<vmem>>, %arg3: memref<2x9x9x16xf32, #tpu.memory_space<vmem>>, %arg4: memref<2x9x9x16xf32, #tpu.memory_space<vmem>>, %arg5: memref<9x16x32xbf16, #tpu.memory_space<vmem>>, %arg6: memref<16x32xbf16, #tpu.memory_space<vmem>>, %arg7: memref<2x8x8x32xf32, #tpu.memory_space<vmem>>, %arg8: memref<2x8x8x32xf32, #tpu.memory_space<vmem>>, %arg9: memref<1x1x32xf32, #tpu.memory_space<vmem>>, %arg10: memref<1x1x32xf32, #tpu.memory_space<vmem>>) attributes {dimension_semantics = [#tpu.dimension_semantics<parallel>], iteration_bounds = array<i64: 1>, scalar_prefetch = 0 : i64, scratch_operands = 0 : i64, tpu.core_type = #tpu.core_type<tc>, window_params = [{transform_indices = @transform_0, window_bounds = array<i64: 2, 9, 9, 16>}, {transform_indices = @transform_1, window_bounds = array<i64: 2, 9, 9, 16>}, {transform_indices = @transform_2, window_bounds = array<i64: 2, 9, 9, 16>}, {transform_indices = @transform_3, window_bounds = array<i64: 2, 9, 9, 16>}, {pipeline_mode = #tpu.pipeline_mode<synchronous>, transform_indices = @transform_4, window_bounds = array<i64: 9, 16, 32>}, {pipeline_mode = #tpu.pipeline_mode<synchronous>, transform_indices = @transform_5, window_bounds = array<i64: 16, 32>}, {transform_indices = @transform_6, window_bounds = array<i64: 2, 8, 8, 32>}, {transform_indices = @transform_7, window_bounds = array<i64: 2, 8, 8, 32>}, {transform_indices = @transform_8, window_bounds = array<i64: 1, 1, 32>}, {transform_indices = @transform_9, window_bounds = array<i64: 1, 1, 32>}]} {
    %c0 = arith.constant 0 : index
    %c0_0 = arith.constant 0 : index
    %c0_1 = arith.constant 0 : index
    %c0_2 = arith.constant 0 : index
    %0 = vector.load %arg1[%c0, %c0_0, %c0_1, %c0_2] : memref<2x9x9x16xf32, #tpu.memory_space<vmem>>, vector<2x9x9x16xf32>
    %c0_3 = arith.constant 0 : index
    %c0_4 = arith.constant 0 : index
    %c0_5 = arith.constant 0 : index
    %c0_6 = arith.constant 0 : index
    %1 = vector.load %arg2[%c0_3, %c0_4, %c0_5, %c0_6] : memref<2x9x9x16xf32, #tpu.memory_space<vmem>>, vector<2x9x9x16xf32>
    %c0_7 = arith.constant 0 : index
    %c0_8 = arith.constant 0 : index
    %c0_9 = arith.constant 0 : index
    %c0_10 = arith.constant 0 : index
    %2 = vector.load %arg3[%c0_7, %c0_8, %c0_9, %c0_10] : memref<2x9x9x16xf32, #tpu.memory_space<vmem>>, vector<2x9x9x16xf32>
    %c0_11 = arith.constant 0 : index
    %c0_12 = arith.constant 0 : index
    %c0_13 = arith.constant 0 : index
    %c0_14 = arith.constant 0 : index
    %3 = vector.load %arg4[%c0_11, %c0_12, %c0_13, %c0_14] : memref<2x9x9x16xf32, #tpu.memory_space<vmem>>, vector<2x9x9x16xf32>
    %4 = vector.extract_strided_slice %3 {offsets = [0, 0, 0, 0], sizes = [2, 8, 8, 16], strides = [1, 1, 1, 1]} : vector<2x9x9x16xf32> to vector<2x8x8x16xf32>
    %5 = vector.extract_strided_slice %2 {offsets = [0, 0, 1, 0], sizes = [2, 8, 8, 16], strides = [1, 1, 1, 1]} : vector<2x9x9x16xf32> to vector<2x8x8x16xf32>
    %6 = arith.addf %4, %5 : vector<2x8x8x16xf32>
    %7 = vector.extract_strided_slice %1 {offsets = [0, 1, 0, 0], sizes = [2, 8, 8, 16], strides = [1, 1, 1, 1]} : vector<2x9x9x16xf32> to vector<2x8x8x16xf32>
    %8 = arith.addf %6, %7 : vector<2x8x8x16xf32>
    %9 = vector.extract_strided_slice %0 {offsets = [0, 1, 1, 0], sizes = [2, 8, 8, 16], strides = [1, 1, 1, 1]} : vector<2x9x9x16xf32> to vector<2x8x8x16xf32>
    %10 = arith.addf %8, %9 : vector<2x8x8x16xf32>
    %cst = arith.constant 2.500000e-01 : f32
    %11 = vector.broadcast %cst : f32 to vector<2x8x8x16xf32>
    %12 = arith.mulf %10, %11 : vector<2x8x8x16xf32>
    %13 = vector.shape_cast %12 : vector<2x8x8x16xf32> to vector<128x16xf32>
    %14 = arith.truncf %13 : vector<128x16xf32> to vector<128x16xbf16>
    %c0_15 = arith.constant 0 : index
    %c0_16 = arith.constant 0 : index
    %15 = vector.load %arg6[%c0_15, %c0_16] : memref<16x32xbf16, #tpu.memory_space<vmem>>, vector<16x32xbf16>
    %cst_17 = arith.constant dense<0.000000e+00> : vector<128x32xf32>
    %16 = tpu.matmul %14, %15, %cst_17 {dimension_numbers = #tpu.dot_dimension_numbers<[1], [0], [0], [1], [0, 0, 1, 1], [], []>} : vector<128x16xbf16>, vector<16x32xbf16>, vector<128x32xf32> -> vector<128x32xf32>
    %17 = vector.shape_cast %16 : vector<128x32xf32> to vector<2x8x8x32xf32>
    %c0_18 = arith.constant 0 : index
    %c0_19 = arith.constant 0 : index
    %c0_20 = arith.constant 0 : index
    %c0_21 = arith.constant 0 : index
    %18 = vector.load %arg8[%c0_18, %c0_19, %c0_20, %c0_21] : memref<2x8x8x32xf32, #tpu.memory_space<vmem>>, vector<2x8x8x32xf32>
    tpu.vector_store %arg8[%c0_18, %c0_19, %c0_20, %c0_21], %17 {strides = array<i32>} : memref<2x8x8x32xf32, #tpu.memory_space<vmem>>, vector<2x8x8x32xf32>,
    %cst_22 = arith.constant 0.000000e+00 : f32
    %19 = vector.broadcast %cst_22 : f32 to vector<128x32xf32>
    %20 = vector.extract_strided_slice %0 {offsets = [0, 0, 0, 0], sizes = [2, 8, 8, 16], strides = [1, 1, 1, 1]} : vector<2x9x9x16xf32> to vector<2x8x8x16xf32>
    %cst_23 = arith.constant 0.000000e+00 : f32
    %21 = vector.broadcast %cst_23 : f32 to vector<2x8x8x16xf32>
    %22 = arith.maximumf %20, %21 : vector<2x8x8x16xf32>
    %23 = vector.shape_cast %22 : vector<2x8x8x16xf32> to vector<128x16xf32>
    %24 = arith.truncf %23 : vector<128x16xf32> to vector<128x16xbf16>
    %c0_24 = arith.constant 0 : index
    %c0_25 = arith.constant 0 : index
    %c0_26 = arith.constant 0 : index
    %25 = vector.load %arg5[%c0_24, %c0_25, %c0_26] : memref<9x16x32xbf16, #tpu.memory_space<vmem>>, vector<1x16x32xbf16>
    %26 = vector.shape_cast %25 : vector<1x16x32xbf16> to vector<16x32xbf16>
    %cst_27 = arith.constant dense<0.000000e+00> : vector<128x32xf32>
    %27 = tpu.matmul %24, %26, %cst_27 {dimension_numbers = #tpu.dot_dimension_numbers<[1], [0], [0], [1], [0, 0, 1, 1], [], []>} : vector<128x16xbf16>, vector<16x32xbf16>, vector<128x32xf32> -> vector<128x32xf32>
    %28 = arith.addf %19, %27 : vector<128x32xf32>
    %29 = vector.extract_strided_slice %1 {offsets = [0, 0, 0, 0], sizes = [2, 8, 8, 16], strides = [1, 1, 1, 1]} : vector<2x9x9x16xf32> to vector<2x8x8x16xf32>
    %cst_28 = arith.constant 0.000000e+00 : f32
    %30 = vector.broadcast %cst_28 : f32 to vector<2x8x8x16xf32>
    %31 = arith.maximumf %29, %30 : vector<2x8x8x16xf32>
    %32 = vector.shape_cast %31 : vector<2x8x8x16xf32> to vector<128x16xf32>
    %33 = arith.truncf %32 : vector<128x16xf32> to vector<128x16xbf16>
    %c1 = arith.constant 1 : index
    %c0_29 = arith.constant 0 : index
    %c0_30 = arith.constant 0 : index
    %34 = vector.load %arg5[%c1, %c0_29, %c0_30] : memref<9x16x32xbf16, #tpu.memory_space<vmem>>, vector<1x16x32xbf16>
    %35 = vector.shape_cast %34 : vector<1x16x32xbf16> to vector<16x32xbf16>
    %cst_31 = arith.constant dense<0.000000e+00> : vector<128x32xf32>
    %36 = tpu.matmul %33, %35, %cst_31 {dimension_numbers = #tpu.dot_dimension_numbers<[1], [0], [0], [1], [0, 0, 1, 1], [], []>} : vector<128x16xbf16>, vector<16x32xbf16>, vector<128x32xf32> -> vector<128x32xf32>
    %37 = arith.addf %28, %36 : vector<128x32xf32>
    %38 = vector.extract_strided_slice %0 {offsets = [0, 0, 1, 0], sizes = [2, 8, 8, 16], strides = [1, 1, 1, 1]} : vector<2x9x9x16xf32> to vector<2x8x8x16xf32>
    %cst_32 = arith.constant 0.000000e+00 : f32
    %39 = vector.broadcast %cst_32 : f32 to vector<2x8x8x16xf32>
    %40 = arith.maximumf %38, %39 : vector<2x8x8x16xf32>
    %41 = vector.shape_cast %40 : vector<2x8x8x16xf32> to vector<128x16xf32>
    %42 = arith.truncf %41 : vector<128x16xf32> to vector<128x16xbf16>
    %c2 = arith.constant 2 : index
    %c0_33 = arith.constant 0 : index
    %c0_34 = arith.constant 0 : index
    %43 = vector.load %arg5[%c2, %c0_33, %c0_34] : memref<9x16x32xbf16, #tpu.memory_space<vmem>>, vector<1x16x32xbf16>
    %44 = vector.shape_cast %43 : vector<1x16x32xbf16> to vector<16x32xbf16>
    %cst_35 = arith.constant dense<0.000000e+00> : vector<128x32xf32>
    %45 = tpu.matmul %42, %44, %cst_35 {dimension_numbers = #tpu.dot_dimension_numbers<[1], [0], [0], [1], [0, 0, 1, 1], [], []>} : vector<128x16xbf16>, vector<16x32xbf16>, vector<128x32xf32> -> vector<128x32xf32>
    %46 = arith.addf %37, %45 : vector<128x32xf32>
    %47 = vector.extract_strided_slice %2 {offsets = [0, 0, 0, 0], sizes = [2, 8, 8, 16], strides = [1, 1, 1, 1]} : vector<2x9x9x16xf32> to vector<2x8x8x16xf32>
    %cst_36 = arith.constant 0.000000e+00 : f32
    %48 = vector.broadcast %cst_36 : f32 to vector<2x8x8x16xf32>
    %49 = arith.maximumf %47, %48 : vector<2x8x8x16xf32>
    %50 = vector.shape_cast %49 : vector<2x8x8x16xf32> to vector<128x16xf32>
    %51 = arith.truncf %50 : vector<128x16xf32> to vector<128x16xbf16>
    %c3 = arith.constant 3 : index
    %c0_37 = arith.constant 0 : index
    %c0_38 = arith.constant 0 : index
    %52 = vector.load %arg5[%c3, %c0_37, %c0_38] : memref<9x16x32xbf16, #tpu.memory_space<vmem>>, vector<1x16x32xbf16>
    %53 = vector.shape_cast %52 : vector<1x16x32xbf16> to vector<16x32xbf16>
    %cst_39 = arith.constant dense<0.000000e+00> : vector<128x32xf32>
    %54 = tpu.matmul %51, %53, %cst_39 {dimension_numbers = #tpu.dot_dimension_numbers<[1], [0], [0], [1], [0, 0, 1, 1], [], []>} : vector<128x16xbf16>, vector<16x32xbf16>, vector<128x32xf32> -> vector<128x32xf32>
    %55 = arith.addf %46, %54 : vector<128x32xf32>
    %56 = vector.extract_strided_slice %3 {offsets = [0, 0, 0, 0], sizes = [2, 8, 8, 16], strides = [1, 1, 1, 1]} : vector<2x9x9x16xf32> to vector<2x8x8x16xf32>
    %cst_40 = arith.constant 0.000000e+00 : f32
    %57 = vector.broadcast %cst_40 : f32 to vector<2x8x8x16xf32>
    %58 = arith.maximumf %56, %57 : vector<2x8x8x16xf32>
    %59 = vector.shape_cast %58 : vector<2x8x8x16xf32> to vector<128x16xf32>
    %60 = arith.truncf %59 : vector<128x16xf32> to vector<128x16xbf16>
    %c4 = arith.constant 4 : index
    %c0_41 = arith.constant 0 : index
    %c0_42 = arith.constant 0 : index
    %61 = vector.load %arg5[%c4, %c0_41, %c0_42] : memref<9x16x32xbf16, #tpu.memory_space<vmem>>, vector<1x16x32xbf16>
    %62 = vector.shape_cast %61 : vector<1x16x32xbf16> to vector<16x32xbf16>
    %cst_43 = arith.constant dense<0.000000e+00> : vector<128x32xf32>
    %63 = tpu.matmul %60, %62, %cst_43 {dimension_numbers = #tpu.dot_dimension_numbers<[1], [0], [0], [1], [0, 0, 1, 1], [], []>} : vector<128x16xbf16>, vector<16x32xbf16>, vector<128x32xf32> -> vector<128x32xf32>
    %64 = arith.addf %55, %63 : vector<128x32xf32>
    %65 = vector.extract_strided_slice %2 {offsets = [0, 0, 1, 0], sizes = [2, 8, 8, 16], strides = [1, 1, 1, 1]} : vector<2x9x9x16xf32> to vector<2x8x8x16xf32>
    %cst_44 = arith.constant 0.000000e+00 : f32
    %66 = vector.broadcast %cst_44 : f32 to vector<2x8x8x16xf32>
    %67 = arith.maximumf %65, %66 : vector<2x8x8x16xf32>
    %68 = vector.shape_cast %67 : vector<2x8x8x16xf32> to vector<128x16xf32>
    %69 = arith.truncf %68 : vector<128x16xf32> to vector<128x16xbf16>
    %c5 = arith.constant 5 : index
    %c0_45 = arith.constant 0 : index
    %c0_46 = arith.constant 0 : index
    %70 = vector.load %arg5[%c5, %c0_45, %c0_46] : memref<9x16x32xbf16, #tpu.memory_space<vmem>>, vector<1x16x32xbf16>
    %71 = vector.shape_cast %70 : vector<1x16x32xbf16> to vector<16x32xbf16>
    %cst_47 = arith.constant dense<0.000000e+00> : vector<128x32xf32>
    %72 = tpu.matmul %69, %71, %cst_47 {dimension_numbers = #tpu.dot_dimension_numbers<[1], [0], [0], [1], [0, 0, 1, 1], [], []>} : vector<128x16xbf16>, vector<16x32xbf16>, vector<128x32xf32> -> vector<128x32xf32>
    %73 = arith.addf %64, %72 : vector<128x32xf32>
    %74 = vector.extract_strided_slice %0 {offsets = [0, 1, 0, 0], sizes = [2, 8, 8, 16], strides = [1, 1, 1, 1]} : vector<2x9x9x16xf32> to vector<2x8x8x16xf32>
    %cst_48 = arith.constant 0.000000e+00 : f32
    %75 = vector.broadcast %cst_48 : f32 to vector<2x8x8x16xf32>
    %76 = arith.maximumf %74, %75 : vector<2x8x8x16xf32>
    %77 = vector.shape_cast %76 : vector<2x8x8x16xf32> to vector<128x16xf32>
    %78 = arith.truncf %77 : vector<128x16xf32> to vector<128x16xbf16>
    %c6 = arith.constant 6 : index
    %c0_49 = arith.constant 0 : index
    %c0_50 = arith.constant 0 : index
    %79 = vector.load %arg5[%c6, %c0_49, %c0_50] : memref<9x16x32xbf16, #tpu.memory_space<vmem>>, vector<1x16x32xbf16>
    %80 = vector.shape_cast %79 : vector<1x16x32xbf16> to vector<16x32xbf16>
    %cst_51 = arith.constant dense<0.000000e+00> : vector<128x32xf32>
    %81 = tpu.matmul %78, %80, %cst_51 {dimension_numbers = #tpu.dot_dimension_numbers<[1], [0], [0], [1], [0, 0, 1, 1], [], []>} : vector<128x16xbf16>, vector<16x32xbf16>, vector<128x32xf32> -> vector<128x32xf32>
    %82 = arith.addf %73, %81 : vector<128x32xf32>
    %83 = vector.extract_strided_slice %1 {offsets = [0, 1, 0, 0], sizes = [2, 8, 8, 16], strides = [1, 1, 1, 1]} : vector<2x9x9x16xf32> to vector<2x8x8x16xf32>
    %cst_52 = arith.constant 0.000000e+00 : f32
    %84 = vector.broadcast %cst_52 : f32 to vector<2x8x8x16xf32>
    %85 = arith.maximumf %83, %84 : vector<2x8x8x16xf32>
    %86 = vector.shape_cast %85 : vector<2x8x8x16xf32> to vector<128x16xf32>
    %87 = arith.truncf %86 : vector<128x16xf32> to vector<128x16xbf16>
    %c7 = arith.constant 7 : index
    %c0_53 = arith.constant 0 : index
    %c0_54 = arith.constant 0 : index
    %88 = vector.load %arg5[%c7, %c0_53, %c0_54] : memref<9x16x32xbf16, #tpu.memory_space<vmem>>, vector<1x16x32xbf16>
    %89 = vector.shape_cast %88 : vector<1x16x32xbf16> to vector<16x32xbf16>
    %cst_55 = arith.constant dense<0.000000e+00> : vector<128x32xf32>
    %90 = tpu.matmul %87, %89, %cst_55 {dimension_numbers = #tpu.dot_dimension_numbers<[1], [0], [0], [1], [0, 0, 1, 1], [], []>} : vector<128x16xbf16>, vector<16x32xbf16>, vector<128x32xf32> -> vector<128x32xf32>
    %91 = arith.addf %82, %90 : vector<128x32xf32>
    %92 = vector.extract_strided_slice %0 {offsets = [0, 1, 1, 0], sizes = [2, 8, 8, 16], strides = [1, 1, 1, 1]} : vector<2x9x9x16xf32> to vector<2x8x8x16xf32>
    %cst_56 = arith.constant 0.000000e+00 : f32
    %93 = vector.broadcast %cst_56 : f32 to vector<2x8x8x16xf32>
    %94 = arith.maximumf %92, %93 : vector<2x8x8x16xf32>
    %95 = vector.shape_cast %94 : vector<2x8x8x16xf32> to vector<128x16xf32>
    %96 = arith.truncf %95 : vector<128x16xf32> to vector<128x16xbf16>
    %c8 = arith.constant 8 : index
    %c0_57 = arith.constant 0 : index
    %c0_58 = arith.constant 0 : index
    %97 = vector.load %arg5[%c8, %c0_57, %c0_58] : memref<9x16x32xbf16, #tpu.memory_space<vmem>>, vector<1x16x32xbf16>
    %98 = vector.shape_cast %97 : vector<1x16x32xbf16> to vector<16x32xbf16>
    %cst_59 = arith.constant dense<0.000000e+00> : vector<128x32xf32>
    %99 = tpu.matmul %96, %98, %cst_59 {dimension_numbers = #tpu.dot_dimension_numbers<[1], [0], [0], [1], [0, 0, 1, 1], [], []>} : vector<128x16xbf16>, vector<16x32xbf16>, vector<128x32xf32> -> vector<128x32xf32>
    %100 = arith.addf %91, %99 : vector<128x32xf32>
    %101 = vector.shape_cast %100 : vector<128x32xf32> to vector<2x8x8x32xf32>
    %c0_60 = arith.constant 0 : index
    %c0_61 = arith.constant 0 : index
    %c0_62 = arith.constant 0 : index
    %c0_63 = arith.constant 0 : index
    %102 = vector.load %arg7[%c0_60, %c0_61, %c0_62, %c0_63] : memref<2x8x8x32xf32, #tpu.memory_space<vmem>>, vector<2x8x8x32xf32>
    tpu.vector_store %arg7[%c0_60, %c0_61, %c0_62, %c0_63], %101 {strides = array<i32>} : memref<2x8x8x32xf32, #tpu.memory_space<vmem>>, vector<2x8x8x32xf32>,
    %cst_64 = arith.constant dense<0.000000e+00> : vector<32xf32>
    %103 = vector.multi_reduction <add>, %100, %cst_64 [0] : vector<128x32xf32> to vector<32xf32>
    %104 = vector.shape_cast %103 : vector<32xf32> to vector<1x1x32xf32>
    %c0_65 = arith.constant 0 : index
    %c0_66 = arith.constant 0 : index
    %c0_67 = arith.constant 0 : index
    %105 = vector.load %arg9[%c0_65, %c0_66, %c0_67] : memref<1x1x32xf32, #tpu.memory_space<vmem>>, vector<1x1x32xf32>
    tpu.vector_store %arg9[%c0_65, %c0_66, %c0_67], %104 {strides = array<i32>} : memref<1x1x32xf32, #tpu.memory_space<vmem>>, vector<1x1x32xf32>,
    %106 = arith.mulf %100, %100 : vector<128x32xf32>
    %cst_68 = arith.constant dense<0.000000e+00> : vector<32xf32>
    %107 = vector.multi_reduction <add>, %106, %cst_68 [0] : vector<128x32xf32> to vector<32xf32>
    %108 = vector.shape_cast %107 : vector<32xf32> to vector<1x1x32xf32>
    %c0_69 = arith.constant 0 : index
    %c0_70 = arith.constant 0 : index
    %c0_71 = arith.constant 0 : index
    %109 = vector.load %arg10[%c0_69, %c0_70, %c0_71] : memref<1x1x32xf32, #tpu.memory_space<vmem>>, vector<1x1x32xf32>
    tpu.vector_store %arg10[%c0_69, %c0_70, %c0_71], %108 {strides = array<i32>} : memref<1x1x32xf32, #tpu.memory_space<vmem>>, vector<1x1x32xf32>,
    return
  }
  func.func @transform_0(%arg0: i32) -> (i32, i32, i32, i32) {
    %c0_i32 = arith.constant 0 : i32
    %c0_i32_0 = arith.constant 0 : i32
    %c0_i32_1 = arith.constant 0 : i32
    %c0_i32_2 = arith.constant 0 : i32
    return %arg0, %c0_i32, %c0_i32_0, %c0_i32_1 : i32, i32, i32, i32
  }
  func.func @transform_1(%arg0: i32) -> (i32, i32, i32, i32) {
    %c0_i32 = arith.constant 0 : i32
    %c0_i32_0 = arith.constant 0 : i32
    %c0_i32_1 = arith.constant 0 : i32
    %c0_i32_2 = arith.constant 0 : i32
    return %arg0, %c0_i32, %c0_i32_0, %c0_i32_1 : i32, i32, i32, i32
  }
  func.func @transform_2(%arg0: i32) -> (i32, i32, i32, i32) {
    %c0_i32 = arith.constant 0 : i32
    %c0_i32_0 = arith.constant 0 : i32
    %c0_i32_1 = arith.constant 0 : i32
    %c0_i32_2 = arith.constant 0 : i32
    return %arg0, %c0_i32, %c0_i32_0, %c0_i32_1 : i32, i32, i32, i32
  }
  func.func @transform_3(%arg0: i32) -> (i32, i32, i32, i32) {
    %c0_i32 = arith.constant 0 : i32
    %c0_i32_0 = arith.constant 0 : i32
    %c0_i32_1 = arith.constant 0 : i32
    %c0_i32_2 = arith.constant 0 : i32
    return %arg0, %c0_i32, %c0_i32_0, %c0_i32_1 : i32, i32, i32, i32
  }
  func.func @transform_4(%arg0: i32) -> (i32, i32, i32) {
    %c0_i32 = arith.constant 0 : i32
    %c0_i32_0 = arith.constant 0 : i32
    %c0_i32_1 = arith.constant 0 : i32
    %c0_i32_2 = arith.constant 0 : i32
    return %c0_i32, %c0_i32_0, %c0_i32_1 : i32, i32, i32
  }
  func.func @transform_5(%arg0: i32) -> (i32, i32) {
    %c0_i32 = arith.constant 0 : i32
    %c0_i32_0 = arith.constant 0 : i32
    %c0_i32_1 = arith.constant 0 : i32
    return %c0_i32, %c0_i32_0 : i32, i32
  }
  func.func @transform_6(%arg0: i32) -> (i32, i32, i32, i32) {
    %c0_i32 = arith.constant 0 : i32
    %c0_i32_0 = arith.constant 0 : i32
    %c0_i32_1 = arith.constant 0 : i32
    %c0_i32_2 = arith.constant 0 : i32
    return %arg0, %c0_i32, %c0_i32_0, %c0_i32_1 : i32, i32, i32, i32
  }
  func.func @transform_7(%arg0: i32) -> (i32, i32, i32, i32) {
    %c0_i32 = arith.constant 0 : i32
    %c0_i32_0 = arith.constant 0 : i32
    %c0_i32_1 = arith.constant 0 : i32
    %c0_i32_2 = arith.constant 0 : i32
    return %arg0, %c0_i32, %c0_i32_0, %c0_i32_1 : i32, i32, i32, i32
  }
  func.func @transform_8(%arg0: i32) -> (i32, i32, i32) {
    %c0_i32 = arith.constant 0 : i32
    %c0_i32_0 = arith.constant 0 : i32
    %c0_i32_1 = arith.constant 0 : i32
    return %arg0, %c0_i32, %c0_i32_0 : i32, i32, i32
  }
  func.func @transform_9(%arg0: i32) -> (i32, i32, i32) {
    %c0_i32 = arith.constant 0 : i32
    %c0_i32_0 = arith.constant 0 : i32
    %c0_i32_1 = arith.constant 0 : i32
    return %arg0, %c0_i32, %c0_i32_0 : i32, i32, i32
  }
}

module attributes {stable_mosaic.version = 11 : i64} {
  func.func @kernel(%arg0: i32, %arg1: memref<2x8x8x32xf32, #tpu.memory_space<vmem>>, %arg2: memref<1x32xf32, #tpu.memory_space<vmem>>, %arg3: memref<1x32xf32, #tpu.memory_space<vmem>>, %arg4: memref<9x32x32xbf16, #tpu.memory_space<vmem>>, %arg5: memref<2x8x8x32xf32, #tpu.memory_space<vmem>>, %arg6: memref<1x1x32xf32, #tpu.memory_space<vmem>>, %arg7: memref<1x1x32xf32, #tpu.memory_space<vmem>>, %arg8: memref<2x10x10x32xf32, #tpu.memory_space<vmem>>) attributes {dimension_semantics = [#tpu.dimension_semantics<parallel>], iteration_bounds = array<i64: 1>, scalar_prefetch = 0 : i64, scratch_operands = 1 : i64, tpu.core_type = #tpu.core_type<tc>, window_params = [{transform_indices = @transform_0, window_bounds = array<i64: 2, 8, 8, 32>}, {pipeline_mode = #tpu.pipeline_mode<synchronous>, transform_indices = @transform_1, window_bounds = array<i64: 1, 32>}, {pipeline_mode = #tpu.pipeline_mode<synchronous>, transform_indices = @transform_2, window_bounds = array<i64: 1, 32>}, {pipeline_mode = #tpu.pipeline_mode<synchronous>, transform_indices = @transform_3, window_bounds = array<i64: 9, 32, 32>}, {transform_indices = @transform_4, window_bounds = array<i64: 2, 8, 8, 32>}, {transform_indices = @transform_5, window_bounds = array<i64: 1, 1, 32>}, {transform_indices = @transform_6, window_bounds = array<i64: 1, 1, 32>}]} {
    %c0 = arith.constant 0 : index
    %c0_0 = arith.constant 0 : index
    %c0_1 = arith.constant 0 : index
    %c0_2 = arith.constant 0 : index
    %0 = vector.load %arg1[%c0, %c0_0, %c0_1, %c0_2] : memref<2x8x8x32xf32, #tpu.memory_space<vmem>>, vector<2x8x8x32xf32>
    %c0_3 = arith.constant 0 : index
    %c0_4 = arith.constant 0 : index
    %1 = vector.load %arg2[%c0_3, %c0_4] : memref<1x32xf32, #tpu.memory_space<vmem>>, vector<1x32xf32>
    %2 = vector.shape_cast %1 : vector<1x32xf32> to vector<1x1x1x32xf32>
    %3 = vector.broadcast %2 : vector<1x1x1x32xf32> to vector<2x8x8x32xf32>
    %4 = arith.mulf %0, %3 : vector<2x8x8x32xf32>
    %c0_5 = arith.constant 0 : index
    %c0_6 = arith.constant 0 : index
    %5 = vector.load %arg3[%c0_5, %c0_6] : memref<1x32xf32, #tpu.memory_space<vmem>>, vector<1x32xf32>
    %6 = vector.shape_cast %5 : vector<1x32xf32> to vector<1x1x1x32xf32>
    %7 = vector.broadcast %6 : vector<1x1x1x32xf32> to vector<2x8x8x32xf32>
    %8 = arith.addf %4, %7 : vector<2x8x8x32xf32>
    %cst = arith.constant 0.000000e+00 : f32
    %9 = vector.broadcast %cst : f32 to vector<2x8x8x32xf32>
    %10 = arith.maximumf %8, %9 : vector<2x8x8x32xf32>
    %cst_7 = arith.constant 0.000000e+00 : f32
    %11 = vector.broadcast %cst_7 : f32 to vector<2x1x10x32xf32>
    %cst_8 = arith.constant 0.000000e+00 : f32
    %12 = vector.broadcast %cst_8 : f32 to vector<2x10x1x32xf32>
    %c0_9 = arith.constant 0 : index
    %c0_10 = arith.constant 0 : index
    %c0_11 = arith.constant 0 : index
    %c0_12 = arith.constant 0 : index
    %13 = vector.load %arg8[%c0_9, %c0_10, %c0_11, %c0_12] : memref<2x10x10x32xf32, #tpu.memory_space<vmem>>, vector<2x1x10x32xf32>
    tpu.vector_store %arg8[%c0_9, %c0_10, %c0_11, %c0_12], %11 {strides = array<i32>} : memref<2x10x10x32xf32, #tpu.memory_space<vmem>>, vector<2x1x10x32xf32>,
    %c0_13 = arith.constant 0 : index
    %c9 = arith.constant 9 : index
    %c0_14 = arith.constant 0 : index
    %c0_15 = arith.constant 0 : index
    %14 = vector.load %arg8[%c0_13, %c9, %c0_14, %c0_15] : memref<2x10x10x32xf32, #tpu.memory_space<vmem>>, vector<2x1x10x32xf32>
    tpu.vector_store %arg8[%c0_13, %c9, %c0_14, %c0_15], %11 {strides = array<i32>} : memref<2x10x10x32xf32, #tpu.memory_space<vmem>>, vector<2x1x10x32xf32>,
    %c0_16 = arith.constant 0 : index
    %c0_17 = arith.constant 0 : index
    %c0_18 = arith.constant 0 : index
    %c0_19 = arith.constant 0 : index
    %15 = vector.load %arg8[%c0_16, %c0_17, %c0_18, %c0_19] : memref<2x10x10x32xf32, #tpu.memory_space<vmem>>, vector<2x10x1x32xf32>
    tpu.vector_store %arg8[%c0_16, %c0_17, %c0_18, %c0_19], %12 {strides = array<i32>} : memref<2x10x10x32xf32, #tpu.memory_space<vmem>>, vector<2x10x1x32xf32>,
    %c0_20 = arith.constant 0 : index
    %c0_21 = arith.constant 0 : index
    %c9_22 = arith.constant 9 : index
    %c0_23 = arith.constant 0 : index
    %16 = vector.load %arg8[%c0_20, %c0_21, %c9_22, %c0_23] : memref<2x10x10x32xf32, #tpu.memory_space<vmem>>, vector<2x10x1x32xf32>
    tpu.vector_store %arg8[%c0_20, %c0_21, %c9_22, %c0_23], %12 {strides = array<i32>} : memref<2x10x10x32xf32, #tpu.memory_space<vmem>>, vector<2x10x1x32xf32>,
    %c0_24 = arith.constant 0 : index
    %c1 = arith.constant 1 : index
    %c1_25 = arith.constant 1 : index
    %c0_26 = arith.constant 0 : index
    %17 = vector.load %arg8[%c0_24, %c1, %c1_25, %c0_26] : memref<2x10x10x32xf32, #tpu.memory_space<vmem>>, vector<2x8x8x32xf32>
    tpu.vector_store %arg8[%c0_24, %c1, %c1_25, %c0_26], %10 {strides = array<i32>} : memref<2x10x10x32xf32, #tpu.memory_space<vmem>>, vector<2x8x8x32xf32>,
    %cst_27 = arith.constant 0.000000e+00 : f32
    %18 = vector.broadcast %cst_27 : f32 to vector<128x32xf32>
    %c0_28 = arith.constant 0 : index
    %c0_29 = arith.constant 0 : index
    %c0_30 = arith.constant 0 : index
    %c0_31 = arith.constant 0 : index
    %19 = vector.load %arg8[%c0_28, %c0_29, %c0_30, %c0_31] : memref<2x10x10x32xf32, #tpu.memory_space<vmem>>, vector<2x8x8x32xf32>
    %20 = vector.shape_cast %19 : vector<2x8x8x32xf32> to vector<128x32xf32>
    %21 = arith.truncf %20 : vector<128x32xf32> to vector<128x32xbf16>
    %c0_32 = arith.constant 0 : index
    %c0_33 = arith.constant 0 : index
    %c0_34 = arith.constant 0 : index
    %22 = vector.load %arg4[%c0_32, %c0_33, %c0_34] : memref<9x32x32xbf16, #tpu.memory_space<vmem>>, vector<1x32x32xbf16>
    %23 = vector.shape_cast %22 : vector<1x32x32xbf16> to vector<32x32xbf16>
    %cst_35 = arith.constant dense<0.000000e+00> : vector<128x32xf32>
    %24 = tpu.matmul %21, %23, %cst_35 {dimension_numbers = #tpu.dot_dimension_numbers<[1], [0], [0], [1], [0, 0, 1, 1], [], []>} : vector<128x32xbf16>, vector<32x32xbf16>, vector<128x32xf32> -> vector<128x32xf32>
    %25 = arith.addf %18, %24 : vector<128x32xf32>
    %c0_36 = arith.constant 0 : index
    %c0_37 = arith.constant 0 : index
    %c1_38 = arith.constant 1 : index
    %c0_39 = arith.constant 0 : index
    %26 = vector.load %arg8[%c0_36, %c0_37, %c1_38, %c0_39] : memref<2x10x10x32xf32, #tpu.memory_space<vmem>>, vector<2x8x8x32xf32>
    %27 = vector.shape_cast %26 : vector<2x8x8x32xf32> to vector<128x32xf32>
    %28 = arith.truncf %27 : vector<128x32xf32> to vector<128x32xbf16>
    %c1_40 = arith.constant 1 : index
    %c0_41 = arith.constant 0 : index
    %c0_42 = arith.constant 0 : index
    %29 = vector.load %arg4[%c1_40, %c0_41, %c0_42] : memref<9x32x32xbf16, #tpu.memory_space<vmem>>, vector<1x32x32xbf16>
    %30 = vector.shape_cast %29 : vector<1x32x32xbf16> to vector<32x32xbf16>
    %cst_43 = arith.constant dense<0.000000e+00> : vector<128x32xf32>
    %31 = tpu.matmul %28, %30, %cst_43 {dimension_numbers = #tpu.dot_dimension_numbers<[1], [0], [0], [1], [0, 0, 1, 1], [], []>} : vector<128x32xbf16>, vector<32x32xbf16>, vector<128x32xf32> -> vector<128x32xf32>
    %32 = arith.addf %25, %31 : vector<128x32xf32>
    %c0_44 = arith.constant 0 : index
    %c0_45 = arith.constant 0 : index
    %c2 = arith.constant 2 : index
    %c0_46 = arith.constant 0 : index
    %33 = vector.load %arg8[%c0_44, %c0_45, %c2, %c0_46] : memref<2x10x10x32xf32, #tpu.memory_space<vmem>>, vector<2x8x8x32xf32>
    %34 = vector.shape_cast %33 : vector<2x8x8x32xf32> to vector<128x32xf32>
    %35 = arith.truncf %34 : vector<128x32xf32> to vector<128x32xbf16>
    %c2_47 = arith.constant 2 : index
    %c0_48 = arith.constant 0 : index
    %c0_49 = arith.constant 0 : index
    %36 = vector.load %arg4[%c2_47, %c0_48, %c0_49] : memref<9x32x32xbf16, #tpu.memory_space<vmem>>, vector<1x32x32xbf16>
    %37 = vector.shape_cast %36 : vector<1x32x32xbf16> to vector<32x32xbf16>
    %cst_50 = arith.constant dense<0.000000e+00> : vector<128x32xf32>
    %38 = tpu.matmul %35, %37, %cst_50 {dimension_numbers = #tpu.dot_dimension_numbers<[1], [0], [0], [1], [0, 0, 1, 1], [], []>} : vector<128x32xbf16>, vector<32x32xbf16>, vector<128x32xf32> -> vector<128x32xf32>
    %39 = arith.addf %32, %38 : vector<128x32xf32>
    %c0_51 = arith.constant 0 : index
    %c1_52 = arith.constant 1 : index
    %c0_53 = arith.constant 0 : index
    %c0_54 = arith.constant 0 : index
    %40 = vector.load %arg8[%c0_51, %c1_52, %c0_53, %c0_54] : memref<2x10x10x32xf32, #tpu.memory_space<vmem>>, vector<2x8x8x32xf32>
    %41 = vector.shape_cast %40 : vector<2x8x8x32xf32> to vector<128x32xf32>
    %42 = arith.truncf %41 : vector<128x32xf32> to vector<128x32xbf16>
    %c3 = arith.constant 3 : index
    %c0_55 = arith.constant 0 : index
    %c0_56 = arith.constant 0 : index
    %43 = vector.load %arg4[%c3, %c0_55, %c0_56] : memref<9x32x32xbf16, #tpu.memory_space<vmem>>, vector<1x32x32xbf16>
    %44 = vector.shape_cast %43 : vector<1x32x32xbf16> to vector<32x32xbf16>
    %cst_57 = arith.constant dense<0.000000e+00> : vector<128x32xf32>
    %45 = tpu.matmul %42, %44, %cst_57 {dimension_numbers = #tpu.dot_dimension_numbers<[1], [0], [0], [1], [0, 0, 1, 1], [], []>} : vector<128x32xbf16>, vector<32x32xbf16>, vector<128x32xf32> -> vector<128x32xf32>
    %46 = arith.addf %39, %45 : vector<128x32xf32>
    %c0_58 = arith.constant 0 : index
    %c1_59 = arith.constant 1 : index
    %c1_60 = arith.constant 1 : index
    %c0_61 = arith.constant 0 : index
    %47 = vector.load %arg8[%c0_58, %c1_59, %c1_60, %c0_61] : memref<2x10x10x32xf32, #tpu.memory_space<vmem>>, vector<2x8x8x32xf32>
    %48 = vector.shape_cast %47 : vector<2x8x8x32xf32> to vector<128x32xf32>
    %49 = arith.truncf %48 : vector<128x32xf32> to vector<128x32xbf16>
    %c4 = arith.constant 4 : index
    %c0_62 = arith.constant 0 : index
    %c0_63 = arith.constant 0 : index
    %50 = vector.load %arg4[%c4, %c0_62, %c0_63] : memref<9x32x32xbf16, #tpu.memory_space<vmem>>, vector<1x32x32xbf16>
    %51 = vector.shape_cast %50 : vector<1x32x32xbf16> to vector<32x32xbf16>
    %cst_64 = arith.constant dense<0.000000e+00> : vector<128x32xf32>
    %52 = tpu.matmul %49, %51, %cst_64 {dimension_numbers = #tpu.dot_dimension_numbers<[1], [0], [0], [1], [0, 0, 1, 1], [], []>} : vector<128x32xbf16>, vector<32x32xbf16>, vector<128x32xf32> -> vector<128x32xf32>
    %53 = arith.addf %46, %52 : vector<128x32xf32>
    %c0_65 = arith.constant 0 : index
    %c1_66 = arith.constant 1 : index
    %c2_67 = arith.constant 2 : index
    %c0_68 = arith.constant 0 : index
    %54 = vector.load %arg8[%c0_65, %c1_66, %c2_67, %c0_68] : memref<2x10x10x32xf32, #tpu.memory_space<vmem>>, vector<2x8x8x32xf32>
    %55 = vector.shape_cast %54 : vector<2x8x8x32xf32> to vector<128x32xf32>
    %56 = arith.truncf %55 : vector<128x32xf32> to vector<128x32xbf16>
    %c5 = arith.constant 5 : index
    %c0_69 = arith.constant 0 : index
    %c0_70 = arith.constant 0 : index
    %57 = vector.load %arg4[%c5, %c0_69, %c0_70] : memref<9x32x32xbf16, #tpu.memory_space<vmem>>, vector<1x32x32xbf16>
    %58 = vector.shape_cast %57 : vector<1x32x32xbf16> to vector<32x32xbf16>
    %cst_71 = arith.constant dense<0.000000e+00> : vector<128x32xf32>
    %59 = tpu.matmul %56, %58, %cst_71 {dimension_numbers = #tpu.dot_dimension_numbers<[1], [0], [0], [1], [0, 0, 1, 1], [], []>} : vector<128x32xbf16>, vector<32x32xbf16>, vector<128x32xf32> -> vector<128x32xf32>
    %60 = arith.addf %53, %59 : vector<128x32xf32>
    %c0_72 = arith.constant 0 : index
    %c2_73 = arith.constant 2 : index
    %c0_74 = arith.constant 0 : index
    %c0_75 = arith.constant 0 : index
    %61 = vector.load %arg8[%c0_72, %c2_73, %c0_74, %c0_75] : memref<2x10x10x32xf32, #tpu.memory_space<vmem>>, vector<2x8x8x32xf32>
    %62 = vector.shape_cast %61 : vector<2x8x8x32xf32> to vector<128x32xf32>
    %63 = arith.truncf %62 : vector<128x32xf32> to vector<128x32xbf16>
    %c6 = arith.constant 6 : index
    %c0_76 = arith.constant 0 : index
    %c0_77 = arith.constant 0 : index
    %64 = vector.load %arg4[%c6, %c0_76, %c0_77] : memref<9x32x32xbf16, #tpu.memory_space<vmem>>, vector<1x32x32xbf16>
    %65 = vector.shape_cast %64 : vector<1x32x32xbf16> to vector<32x32xbf16>
    %cst_78 = arith.constant dense<0.000000e+00> : vector<128x32xf32>
    %66 = tpu.matmul %63, %65, %cst_78 {dimension_numbers = #tpu.dot_dimension_numbers<[1], [0], [0], [1], [0, 0, 1, 1], [], []>} : vector<128x32xbf16>, vector<32x32xbf16>, vector<128x32xf32> -> vector<128x32xf32>
    %67 = arith.addf %60, %66 : vector<128x32xf32>
    %c0_79 = arith.constant 0 : index
    %c2_80 = arith.constant 2 : index
    %c1_81 = arith.constant 1 : index
    %c0_82 = arith.constant 0 : index
    %68 = vector.load %arg8[%c0_79, %c2_80, %c1_81, %c0_82] : memref<2x10x10x32xf32, #tpu.memory_space<vmem>>, vector<2x8x8x32xf32>
    %69 = vector.shape_cast %68 : vector<2x8x8x32xf32> to vector<128x32xf32>
    %70 = arith.truncf %69 : vector<128x32xf32> to vector<128x32xbf16>
    %c7 = arith.constant 7 : index
    %c0_83 = arith.constant 0 : index
    %c0_84 = arith.constant 0 : index
    %71 = vector.load %arg4[%c7, %c0_83, %c0_84] : memref<9x32x32xbf16, #tpu.memory_space<vmem>>, vector<1x32x32xbf16>
    %72 = vector.shape_cast %71 : vector<1x32x32xbf16> to vector<32x32xbf16>
    %cst_85 = arith.constant dense<0.000000e+00> : vector<128x32xf32>
    %73 = tpu.matmul %70, %72, %cst_85 {dimension_numbers = #tpu.dot_dimension_numbers<[1], [0], [0], [1], [0, 0, 1, 1], [], []>} : vector<128x32xbf16>, vector<32x32xbf16>, vector<128x32xf32> -> vector<128x32xf32>
    %74 = arith.addf %67, %73 : vector<128x32xf32>
    %c0_86 = arith.constant 0 : index
    %c2_87 = arith.constant 2 : index
    %c2_88 = arith.constant 2 : index
    %c0_89 = arith.constant 0 : index
    %75 = vector.load %arg8[%c0_86, %c2_87, %c2_88, %c0_89] : memref<2x10x10x32xf32, #tpu.memory_space<vmem>>, vector<2x8x8x32xf32>
    %76 = vector.shape_cast %75 : vector<2x8x8x32xf32> to vector<128x32xf32>
    %77 = arith.truncf %76 : vector<128x32xf32> to vector<128x32xbf16>
    %c8 = arith.constant 8 : index
    %c0_90 = arith.constant 0 : index
    %c0_91 = arith.constant 0 : index
    %78 = vector.load %arg4[%c8, %c0_90, %c0_91] : memref<9x32x32xbf16, #tpu.memory_space<vmem>>, vector<1x32x32xbf16>
    %79 = vector.shape_cast %78 : vector<1x32x32xbf16> to vector<32x32xbf16>
    %cst_92 = arith.constant dense<0.000000e+00> : vector<128x32xf32>
    %80 = tpu.matmul %77, %79, %cst_92 {dimension_numbers = #tpu.dot_dimension_numbers<[1], [0], [0], [1], [0, 0, 1, 1], [], []>} : vector<128x32xbf16>, vector<32x32xbf16>, vector<128x32xf32> -> vector<128x32xf32>
    %81 = arith.addf %74, %80 : vector<128x32xf32>
    %82 = vector.shape_cast %81 : vector<128x32xf32> to vector<2x8x8x32xf32>
    %c0_93 = arith.constant 0 : index
    %c0_94 = arith.constant 0 : index
    %c0_95 = arith.constant 0 : index
    %c0_96 = arith.constant 0 : index
    %83 = vector.load %arg5[%c0_93, %c0_94, %c0_95, %c0_96] : memref<2x8x8x32xf32, #tpu.memory_space<vmem>>, vector<2x8x8x32xf32>
    tpu.vector_store %arg5[%c0_93, %c0_94, %c0_95, %c0_96], %82 {strides = array<i32>} : memref<2x8x8x32xf32, #tpu.memory_space<vmem>>, vector<2x8x8x32xf32>,
    %cst_97 = arith.constant dense<0.000000e+00> : vector<32xf32>
    %84 = vector.multi_reduction <add>, %81, %cst_97 [0] : vector<128x32xf32> to vector<32xf32>
    %85 = vector.shape_cast %84 : vector<32xf32> to vector<1x1x32xf32>
    %c0_98 = arith.constant 0 : index
    %c0_99 = arith.constant 0 : index
    %c0_100 = arith.constant 0 : index
    %86 = vector.load %arg6[%c0_98, %c0_99, %c0_100] : memref<1x1x32xf32, #tpu.memory_space<vmem>>, vector<1x1x32xf32>
    tpu.vector_store %arg6[%c0_98, %c0_99, %c0_100], %85 {strides = array<i32>} : memref<1x1x32xf32, #tpu.memory_space<vmem>>, vector<1x1x32xf32>,
    %87 = arith.mulf %81, %81 : vector<128x32xf32>
    %cst_101 = arith.constant dense<0.000000e+00> : vector<32xf32>
    %88 = vector.multi_reduction <add>, %87, %cst_101 [0] : vector<128x32xf32> to vector<32xf32>
    %89 = vector.shape_cast %88 : vector<32xf32> to vector<1x1x32xf32>
    %c0_102 = arith.constant 0 : index
    %c0_103 = arith.constant 0 : index
    %c0_104 = arith.constant 0 : index
    %90 = vector.load %arg7[%c0_102, %c0_103, %c0_104] : memref<1x1x32xf32, #tpu.memory_space<vmem>>, vector<1x1x32xf32>
    tpu.vector_store %arg7[%c0_102, %c0_103, %c0_104], %89 {strides = array<i32>} : memref<1x1x32xf32, #tpu.memory_space<vmem>>, vector<1x1x32xf32>,
    return
  }
  func.func @transform_0(%arg0: i32) -> (i32, i32, i32, i32) {
    %c0_i32 = arith.constant 0 : i32
    %c0_i32_0 = arith.constant 0 : i32
    %c0_i32_1 = arith.constant 0 : i32
    %c0_i32_2 = arith.constant 0 : i32
    return %arg0, %c0_i32, %c0_i32_0, %c0_i32_1 : i32, i32, i32, i32
  }
  func.func @transform_1(%arg0: i32) -> (i32, i32) {
    %c0_i32 = arith.constant 0 : i32
    %c0_i32_0 = arith.constant 0 : i32
    %c0_i32_1 = arith.constant 0 : i32
    return %c0_i32, %c0_i32_0 : i32, i32
  }
  func.func @transform_2(%arg0: i32) -> (i32, i32) {
    %c0_i32 = arith.constant 0 : i32
    %c0_i32_0 = arith.constant 0 : i32
    %c0_i32_1 = arith.constant 0 : i32
    return %c0_i32, %c0_i32_0 : i32, i32
  }
  func.func @transform_3(%arg0: i32) -> (i32, i32, i32) {
    %c0_i32 = arith.constant 0 : i32
    %c0_i32_0 = arith.constant 0 : i32
    %c0_i32_1 = arith.constant 0 : i32
    %c0_i32_2 = arith.constant 0 : i32
    return %c0_i32, %c0_i32_0, %c0_i32_1 : i32, i32, i32
  }
  func.func @transform_4(%arg0: i32) -> (i32, i32, i32, i32) {
    %c0_i32 = arith.constant 0 : i32
    %c0_i32_0 = arith.constant 0 : i32
    %c0_i32_1 = arith.constant 0 : i32
    %c0_i32_2 = arith.constant 0 : i32
    return %arg0, %c0_i32, %c0_i32_0, %c0_i32_1 : i32, i32, i32, i32
  }
  func.func @transform_5(%arg0: i32) -> (i32, i32, i32) {
    %c0_i32 = arith.constant 0 : i32
    %c0_i32_0 = arith.constant 0 : i32
    %c0_i32_1 = arith.constant 0 : i32
    return %arg0, %c0_i32, %c0_i32_0 : i32, i32, i32
  }
  func.func @transform_6(%arg0: i32) -> (i32, i32, i32) {
    %c0_i32 = arith.constant 0 : i32
    %c0_i32_0 = arith.constant 0 : i32
    %c0_i32_1 = arith.constant 0 : i32
    return %arg0, %c0_i32, %c0_i32_0 : i32, i32, i32
  }
}

module attributes {stable_mosaic.version = 11 : i64} {
  func.func @_affine_add_kernel(%arg0: i32, %arg1: memref<32x128xf32, #tpu.memory_space<vmem>>, %arg2: memref<32x128xf32, #tpu.memory_space<vmem>>, %arg3: memref<1x128xf32, #tpu.memory_space<vmem>>, %arg4: memref<1x128xf32, #tpu.memory_space<vmem>>, %arg5: memref<1x128xf32, #tpu.memory_space<vmem>>, %arg6: memref<1x128xf32, #tpu.memory_space<vmem>>, %arg7: memref<32x128xf32, #tpu.memory_space<vmem>>) attributes {dimension_semantics = [#tpu.dimension_semantics<parallel>], iteration_bounds = array<i64: 1>, scalar_prefetch = 0 : i64, scratch_operands = 0 : i64, tpu.core_type = #tpu.core_type<tc>, window_params = [{transform_indices = @transform_0, window_bounds = array<i64: 32, 128>}, {transform_indices = @transform_1, window_bounds = array<i64: 32, 128>}, {pipeline_mode = #tpu.pipeline_mode<synchronous>, transform_indices = @transform_2, window_bounds = array<i64: 1, 128>}, {pipeline_mode = #tpu.pipeline_mode<synchronous>, transform_indices = @transform_3, window_bounds = array<i64: 1, 128>}, {pipeline_mode = #tpu.pipeline_mode<synchronous>, transform_indices = @transform_4, window_bounds = array<i64: 1, 128>}, {pipeline_mode = #tpu.pipeline_mode<synchronous>, transform_indices = @transform_5, window_bounds = array<i64: 1, 128>}, {transform_indices = @transform_6, window_bounds = array<i64: 32, 128>}]} {
    %c0 = arith.constant 0 : index
    %c0_0 = arith.constant 0 : index
    %0 = vector.load %arg1[%c0, %c0_0] : memref<32x128xf32, #tpu.memory_space<vmem>>, vector<32x128xf32>
    %c0_1 = arith.constant 0 : index
    %c0_2 = arith.constant 0 : index
    %1 = vector.load %arg3[%c0_1, %c0_2] : memref<1x128xf32, #tpu.memory_space<vmem>>, vector<1x128xf32>
    %2 = vector.broadcast %1 : vector<1x128xf32> to vector<32x128xf32>
    %3 = arith.mulf %0, %2 : vector<32x128xf32>
    %c0_3 = arith.constant 0 : index
    %c0_4 = arith.constant 0 : index
    %4 = vector.load %arg4[%c0_3, %c0_4] : memref<1x128xf32, #tpu.memory_space<vmem>>, vector<1x128xf32>
    %5 = vector.broadcast %4 : vector<1x128xf32> to vector<32x128xf32>
    %6 = arith.addf %3, %5 : vector<32x128xf32>
    %c0_5 = arith.constant 0 : index
    %c0_6 = arith.constant 0 : index
    %7 = vector.load %arg2[%c0_5, %c0_6] : memref<32x128xf32, #tpu.memory_space<vmem>>, vector<32x128xf32>
    %c0_7 = arith.constant 0 : index
    %c0_8 = arith.constant 0 : index
    %8 = vector.load %arg5[%c0_7, %c0_8] : memref<1x128xf32, #tpu.memory_space<vmem>>, vector<1x128xf32>
    %9 = vector.broadcast %8 : vector<1x128xf32> to vector<32x128xf32>
    %10 = arith.mulf %7, %9 : vector<32x128xf32>
    %11 = arith.addf %6, %10 : vector<32x128xf32>
    %c0_9 = arith.constant 0 : index
    %c0_10 = arith.constant 0 : index
    %12 = vector.load %arg6[%c0_9, %c0_10] : memref<1x128xf32, #tpu.memory_space<vmem>>, vector<1x128xf32>
    %13 = vector.broadcast %12 : vector<1x128xf32> to vector<32x128xf32>
    %14 = arith.addf %11, %13 : vector<32x128xf32>
    %c0_11 = arith.constant 0 : index
    %c0_12 = arith.constant 0 : index
    %15 = vector.load %arg7[%c0_11, %c0_12] : memref<32x128xf32, #tpu.memory_space<vmem>>, vector<32x128xf32>
    tpu.vector_store %arg7[%c0_11, %c0_12], %14 {strides = array<i32>} : memref<32x128xf32, #tpu.memory_space<vmem>>, vector<32x128xf32>,
    return
  }
  func.func @transform_0(%arg0: i32) -> (i32, i32) {
    %c0_i32 = arith.constant 0 : i32
    %c0_i32_0 = arith.constant 0 : i32
    return %arg0, %c0_i32 : i32, i32
  }
  func.func @transform_1(%arg0: i32) -> (i32, i32) {
    %c0_i32 = arith.constant 0 : i32
    %c0_i32_0 = arith.constant 0 : i32
    return %arg0, %c0_i32 : i32, i32
  }
  func.func @transform_2(%arg0: i32) -> (i32, i32) {
    %c0_i32 = arith.constant 0 : i32
    %c0_i32_0 = arith.constant 0 : i32
    %c0_i32_1 = arith.constant 0 : i32
    return %c0_i32, %c0_i32_0 : i32, i32
  }
  func.func @transform_3(%arg0: i32) -> (i32, i32) {
    %c0_i32 = arith.constant 0 : i32
    %c0_i32_0 = arith.constant 0 : i32
    %c0_i32_1 = arith.constant 0 : i32
    return %c0_i32, %c0_i32_0 : i32, i32
  }
  func.func @transform_4(%arg0: i32) -> (i32, i32) {
    %c0_i32 = arith.constant 0 : i32
    %c0_i32_0 = arith.constant 0 : i32
    %c0_i32_1 = arith.constant 0 : i32
    return %c0_i32, %c0_i32_0 : i32, i32
  }
  func.func @transform_5(%arg0: i32) -> (i32, i32) {
    %c0_i32 = arith.constant 0 : i32
    %c0_i32_0 = arith.constant 0 : i32
    %c0_i32_1 = arith.constant 0 : i32
    return %c0_i32, %c0_i32_0 : i32, i32
  }
  func.func @transform_6(%arg0: i32) -> (i32, i32) {
    %c0_i32 = arith.constant 0 : i32
    %c0_i32_0 = arith.constant 0 : i32
    return %arg0, %c0_i32 : i32, i32
  }
}

</mosaic_0001>

<llo_original>
// kernel: tile.10
$region0: #{tile.10}
  #allocation0 [shape = 's32[1]{0}', space=sflag, size = 0x4, scoped, tag = 'scoped memory for tile.10']
  %s0 = inlined_call_operand.<no memory space> [shape: f32[], index: 0, kind: input, shape index: {}]
  %s1 = inlined_call_operand.vmem [shape: f32[1,128], index: 1, kind: output, shape index: {}]
  %v2 = vstv %s0
  %3 = vst [vmem:[%s1] sm:$0x1] %v2

// kernel: resnet_basicblock_forward.5
$region0: #{resnet_basicblock_forward.5}
  #allocation0 [shape = 'u32[]', space=smem, size = 0x4, offset = 0x4, fixed_abs, tag = 'smem constant byte address 0x4 - core index']
  #allocation1 [shape = 'u32[144,128]{1,0:T(1,128)}', space=vmem, size = 0x12000, scoped, tag = 'internal scratch']
  %s0 = inlined_call_operand.vmem [shape: f32[32,128], index: 0, kind: input, shape index: {}]
  %s1 = inlined_call_operand.vmem [shape: f32[32,128], index: 1, kind: input, shape index: {}]
  %s2 = inlined_call_operand.vmem [shape: f32[1,128], index: 2, kind: input, shape index: {}]
  %s3 = inlined_call_operand.vmem [shape: f32[1,128], index: 3, kind: input, shape index: {}]
  %s4 = inlined_call_operand.vmem [shape: f32[1,128], index: 4, kind: input, shape index: {}]
  %s5 = inlined_call_operand.vmem [shape: f32[1,128], index: 5, kind: input, shape index: {}]
  %s6 = inlined_call_operand.vmem [shape: f32[32,128], index: 6, kind: output, shape index: {}]
  %s7 = sld [smem:[#allocation0]]
  $region34: #{resnet_basicblock_forward.5} parent=0
    _
  %s9 = ssub.s32 1, %s7
  %s10 = scalar_select 0, %s9, %s7
  // Predicated region
  $region2: #{resnet_basicblock_forward.5} parent=0 // pred_check
    _
  $region3: #{resnet_basicblock_forward.5} parent=0 // pred_check_branch
    %12 = sbr.rel (0) target = $region5
  $region4: #{resnet_basicblock_forward.5} parent=0 // pred_region
    _
  $region5: #{resnet_basicblock_forward.5} parent=0 // pred_fallthru
    _
  // Predicated region
  $region6: #{resnet_basicblock_forward.5} parent=0 // pred_check
    _
  $region7: #{resnet_basicblock_forward.5} parent=0 // pred_check_branch
    %14 = sbr.rel (0) target = $region9
  $region8: #{resnet_basicblock_forward.5} parent=0 // pred_region
    _
  $region9: #{resnet_basicblock_forward.5} parent=0 // pred_fallthru
    _
  // Predicated region
  $region10: #{resnet_basicblock_forward.5} parent=0 // pred_check
    _
  $region11: #{resnet_basicblock_forward.5} parent=0 // pred_check_branch
    %16 = sbr.rel (0) target = $region13
  $region12: #{resnet_basicblock_forward.5} parent=0 // pred_region
    _
  $region13: #{resnet_basicblock_forward.5} parent=0 // pred_fallthru
    _
  // Predicated region
  $region14: #{resnet_basicblock_forward.5} parent=0 // pred_check
    _
  $region15: #{resnet_basicblock_forward.5} parent=0 // pred_check_branch
    %18 = sbr.rel (0) target = $region17
  $region16: #{resnet_basicblock_forward.5} parent=0 // pred_region
    _
  $region17: #{resnet_basicblock_forward.5} parent=0 // pred_fallthru
    _
  // Predicated region
  $region18: #{resnet_basicblock_forward.5} parent=0 // pred_check
    _
  $region19: #{resnet_basicblock_forward.5} parent=0 // pred_check_branch
    %20 = sbr.rel (0) target = $region21
  $region20: #{resnet_basicblock_forward.5} parent=0 // pred_region
    _
  $region21: #{resnet_basicblock_forward.5} parent=0 // pred_fallthru
    _
  // Predicated region
  $region22: #{resnet_basicblock_forward.5} parent=0 // pred_check
    _
  $region23: #{resnet_basicblock_forward.5} parent=0 // pred_check_branch
    %22 = sbr.rel (0) target = $region25
  $region24: #{resnet_basicblock_forward.5} parent=0 // pred_region
    _
  $region25: #{resnet_basicblock_forward.5} parent=0 // pred_fallthru
    _
  %v23 = vld [vmem:[%s0] sm:$0xff]
  %v24 = vld [vmem:[%s0 + $0x8] sm:$0xff]
  %v25 = vld [vmem:[%s0 + $0x10] sm:$0xff]
  %v26 = vld [vmem:[%s0 + $0x18] sm:$0xff]
  %v27 = vld [vmem:[%s2] sm:$0x1]
  %v29 = vlaneseq
  %v30 = vshrl.u32 %v29, 7
  %v31 = vsub.s32 0, %v30
  %v32 = vrot.slane %v27, %v31
  %v34 = vmul.f32 %v23, %v32
  %v35 = vmul.f32 %v24, %v32
  %v36 = vmul.f32 %v25, %v32
  %v37 = vmul.f32 %v26, %v32
  %v38 = vld [vmem:[%s3] sm:$0x1]
  %v40 = vlaneseq
  %v41 = vshrl.u32 %v40, 7
  %v42 = vsub.s32 0, %v41
  %v43 = vrot.slane %v38, %v42
  %v45 = vadd.f32 %v34, %v43
  %v46 = vadd.f32 %v35, %v43
  %v47 = vadd.f32 %v36, %v43
  %v48 = vadd.f32 %v37, %v43
  %v49 = vld [vmem:[%s1] sm:$0xff]
  %v50 = vld [vmem:[%s1 + $0x8] sm:$0xff]
  %v51 = vld [vmem:[%s1 + $0x10] sm:$0xff]
  %v52 = vld [vmem:[%s1 + $0x18] sm:$0xff]
  %v53 = vld [vmem:[%s4] sm:$0x1]
  %v55 = vlaneseq
  %v56 = vshrl.u32 %v55, 7
  %v57 = vsub.s32 0, %v56
  %v58 = vrot.slane %v53, %v57
  %v60 = vmul.f32 %v49, %v58
  %v61 = vmul.f32 %v50, %v58
  %v62 = vmul.f32 %v51, %v58
  %v63 = vmul.f32 %v52, %v58
  %v64 = vadd.f32 %v45, %v60
  %v65 = vadd.f32 %v46, %v61
  %v66 = vadd.f32 %v47, %v62
  %v67 = vadd.f32 %v48, %v63
  %v68 = vld [vmem:[%s5] sm:$0x1]
  %v70 = vlaneseq
  %v71 = vshrl.u32 %v70, 7
  %v72 = vsub.s32 0, %v71
  %v73 = vrot.slane %v68, %v72
  %v75 = vadd.f32 %v64, %v73
  %v76 = vadd.f32 %v65, %v73
  %v77 = vadd.f32 %v66, %v73
  %v78 = vadd.f32 %v67, %v73
  %79 = vst [vmem:[%s6] sm:$0xff] %v75
  %80 = vst [vmem:[%s6 + $0x8] sm:$0xff] %v76
  %81 = vst [vmem:[%s6 + $0x10] sm:$0xff] %v77
  %82 = vst [vmem:[%s6 + $0x18] sm:$0xff] %v78
  // Predicated region
  $region26: #{resnet_basicblock_forward.5} parent=0 // pred_check
    _
  $region27: #{resnet_basicblock_forward.5} parent=0 // pred_check_branch
    %84 = sbr.rel (0) target = $region29
  $region28: #{resnet_basicblock_forward.5} parent=0 // pred_region
    _
  $region29: #{resnet_basicblock_forward.5} parent=0 // pred_fallthru
    _
  // Predicated region
  $region30: #{resnet_basicblock_forward.5} parent=0 // pred_check
    _
  $region31: #{resnet_basicblock_forward.5} parent=0 // pred_check_branch
    %86 = sbr.rel (0) target = $region33
  $region32: #{resnet_basicblock_forward.5} parent=0 // pred_region
    _
  $region33: #{resnet_basicblock_forward.5} parent=0 // pred_fallthru
    _

// kernel: resnet_basicblock_forward.4
$region0: #{resnet_basicblock_forward.4}
  #allocation0 [shape = 'u32[]', space=smem, size = 0x4, offset = 0x4, fixed_abs, tag = 'smem constant byte address 0x4 - core index']
  #allocation1 [shape = 'u32[144,128]{1,0:T(1,128)}', space=vmem, size = 0x12000, scoped, tag = 'internal scratch']
  #allocation2 [shape = 'f32[2,10,10,32]{3,2,1,0:T(8,128)}', space=vmem, size = 0x28000, scoped, tag = 'scratch operand']
  %s0 = inlined_call_operand.vmem [shape: f32[2,8,8,32], index: 0, kind: input, shape index: {}]
  %s1 = inlined_call_operand.vmem [shape: f32[1,32], index: 1, kind: input, shape index: {}]
  %s2 = inlined_call_operand.vmem [shape: f32[1,32], index: 2, kind: input, shape index: {}]
  %s3 = inlined_call_operand.vmem [shape: bf16[9,32,32], index: 3, kind: input, shape index: {}]
  %s4 = inlined_call_operand.vmem [shape: f32[2,8,8,32], index: 4, kind: output, shape index: {0}]
  %s5 = inlined_call_operand.vmem [shape: f32[1,1,32], index: 5, kind: output, shape index: {1}]
  %s6 = inlined_call_operand.vmem [shape: f32[1,1,32], index: 6, kind: output, shape index: {2}]
  %7 = xla_tuple %s4, %s5, %s6
  %s8 = sld [smem:[#allocation0]]
  $region42: #{resnet_basicblock_forward.4} parent=0
    _
  %s10 = ssub.s32 1, %s8
  %s11 = scalar_select 0, %s10, %s8
  // Predicated region
  $region2: #{resnet_basicblock_forward.4} parent=0 // pred_check
    _
  $region3: #{resnet_basicblock_forward.4} parent=0 // pred_check_branch
    %13 = sbr.rel (0) target = $region5
  $region4: #{resnet_basicblock_forward.4} parent=0 // pred_region
    _
  $region5: #{resnet_basicblock_forward.4} parent=0 // pred_fallthru
    _
  // Predicated region
  $region6: #{resnet_basicblock_forward.4} parent=0 // pred_check
    _
  $region7: #{resnet_basicblock_forward.4} parent=0 // pred_check_branch
    %15 = sbr.rel (0) target = $region9
  $region8: #{resnet_basicblock_forward.4} parent=0 // pred_region
    _
  $region9: #{resnet_basicblock_forward.4} parent=0 // pred_fallthru
    _
  // Predicated region
  $region10: #{resnet_basicblock_forward.4} parent=0 // pred_check
    _
  $region11: #{resnet_basicblock_forward.4} parent=0 // pred_check_branch
    %17 = sbr.rel (0) target = $region13
  $region12: #{resnet_basicblock_forward.4} parent=0 // pred_region
    _
  $region13: #{resnet_basicblock_forward.4} parent=0 // pred_fallthru
    _
  // Predicated region
  $region14: #{resnet_basicblock_forward.4} parent=0 // pred_check
    _
  $region15: #{resnet_basicblock_forward.4} parent=0 // pred_check_branch
    %19 = sbr.rel (0) target = $region17
  $region16: #{resnet_basicblock_forward.4} parent=0 // pred_region
    _
  $region17: #{resnet_basicblock_forward.4} parent=0 // pred_fallthru
    _
  %v21 = vld [vmem:[%s0] sm:$0xff]
  %v22 = vld [vmem:[%s0 + $0x8] sm:$0xff]
  %v23 = vld [vmem:[%s0 + $0x10] sm:$0xff]
  %v24 = vld [vmem:[%s0 + $0x18] sm:$0xff]
  %v25 = vld [vmem:[%s0 + $0x20] sm:$0xff]
  %v26 = vld [vmem:[%s0 + $0x28] sm:$0xff]
  %v27 = vld [vmem:[%s0 + $0x30] sm:$0xff]
  %v28 = vld [vmem:[%s0 + $0x38] sm:$0xff]
  %v29 = vld [vmem:[%s0 + $0x40] sm:$0xff]
  %v30 = vld [vmem:[%s0 + $0x48] sm:$0xff]
  %v31 = vld [vmem:[%s0 + $0x50] sm:$0xff]
  %v32 = vld [vmem:[%s0 + $0x58] sm:$0xff]
  %v33 = vld [vmem:[%s0 + $0x60] sm:$0xff]
  %v34 = vld [vmem:[%s0 + $0x68] sm:$0xff]
  %v35 = vld [vmem:[%s0 + $0x70] sm:$0xff]
  %v36 = vld [vmem:[%s0 + $0x78] sm:$0xff]
  %v37 = vld [vmem:[%s1] sm:$0x1]
  %v39 = vlaneseq
  %v40 = vshrl.u32 %v39, 7
  %v41 = vsub.s32 0, %v40
  %v42 = vrot.slane %v37, %v41
  %v44 = vmul.f32 %v21, %v42
  %v45 = vmul.f32 %v22, %v42
  %v46 = vmul.f32 %v23, %v42
  %v47 = vmul.f32 %v24, %v42
  %v48 = vmul.f32 %v25, %v42
  %v49 = vmul.f32 %v26, %v42
  %v50 = vmul.f32 %v27, %v42
  %v51 = vmul.f32 %v28, %v42
  %v52 = vmul.f32 %v29, %v42
  %v53 = vmul.f32 %v30, %v42
  %v54 = vmul.f32 %v31, %v42
  %v55 = vmul.f32 %v32, %v42
  %v56 = vmul.f32 %v33, %v42
  %v57 = vmul.f32 %v34, %v42
  %v58 = vmul.f32 %v35, %v42
  %v59 = vmul.f32 %v36, %v42
  %v60 = vld [vmem:[%s2] sm:$0x1]
  %v62 = vlaneseq
  %v63 = vshrl.u32 %v62, 7
  %v64 = vsub.s32 0, %v63
  %v65 = vrot.slane %v60, %v64
  %v67 = vadd.f32 %v44, %v65
  %v68 = vadd.f32 %v45, %v65
  %v69 = vadd.f32 %v46, %v65
  %v70 = vadd.f32 %v47, %v65
  %v71 = vadd.f32 %v48, %v65
  %v72 = vadd.f32 %v49, %v65
  %v73 = vadd.f32 %v50, %v65
  %v74 = vadd.f32 %v51, %v65
  %v75 = vadd.f32 %v52, %v65
  %v76 = vadd.f32 %v53, %v65
  %v77 = vadd.f32 %v54, %v65
  %v78 = vadd.f32 %v55, %v65
  %v79 = vadd.f32 %v56, %v65
  %v80 = vadd.f32 %v57, %v65
  %v81 = vadd.f32 %v58, %v65
  %v82 = vadd.f32 %v59, %v65
  %v83 = vmax.f32 %v67, 0.0
  %v84 = vmax.f32 %v68, 0.0
  %v85 = vmax.f32 %v69, 0.0
  %v86 = vmax.f32 %v70, 0.0
  %v87 = vmax.f32 %v71, 0.0
  %v88 = vmax.f32 %v72, 0.0
  %v89 = vmax.f32 %v73, 0.0
  %v90 = vmax.f32 %v74, 0.0
  %v91 = vmax.f32 %v75, 0.0
  %v92 = vmax.f32 %v76, 0.0
  %v93 = vmax.f32 %v77, 0.0
  %v94 = vmax.f32 %v78, 0.0
  %v95 = vmax.f32 %v79, 0.0
  %v96 = vmax.f32 %v80, 0.0
  %v97 = vmax.f32 %v81, 0.0
  %v98 = vmax.f32 %v82, 0.0
  %vm99 = vcmask 261120
  %100 = vst.msk [vmem:[#allocation2] sm:$0xff] %vm99, 0.0
  %vm101 = vcmask 254976
  %102 = vst.msk [vmem:[#allocation2 + $0x8] sm:$0x3] %vm101, 0.0
  %103 = vst.msk [vmem:[#allocation2 + $0xa0] sm:$0xff] %vm99, 0.0
  %104 = vst.msk [vmem:[#allocation2 + $0xa8] sm:$0x3] %vm101, 0.0
  %s105 = scalar_lea.vmem [#allocation2], 144
  %106 = vst.msk [vmem:[%s105] sm:$0xff] %vm99, 0.0
  %107 = vst.msk [vmem:[%s105 + $0x8] sm:$0x3] %vm101, 0.0
  %108 = vst.msk [vmem:[%s105 + $0xa0] sm:$0xff] %vm99, 0.0
  %109 = vst.msk [vmem:[%s105 + $0xa8] sm:$0x3] %vm101, 0.0
  %vm110 = vcmask 253952
  %111 = vst.msk [vmem:[#allocation2] sm:$0x1] %vm110, 0.0
  %112 = vst.msk [vmem:[#allocation2 + $0x10] sm:$0x1] %vm110, 0.0
  %113 = vst.msk [vmem:[#allocation2 + $0x20] sm:$0x1] %vm110, 0.0
  %114 = vst.msk [vmem:[#allocation2 + $0x30] sm:$0x1] %vm110, 0.0
  %115 = vst.msk [vmem:[#allocation2 + $0x40] sm:$0x1] %vm110, 0.0
  %116 = vst.msk [vmem:[#allocation2 + $0x50] sm:$0x1] %vm110, 0.0
  %117 = vst.msk [vmem:[#allocation2 + $0x60] sm:$0x1] %vm110, 0.0
  %118 = vst.msk [vmem:[#allocation2 + $0x70] sm:$0x1] %vm110, 0.0
  %119 = vst.msk [vmem:[#allocation2 + $0x80] sm:$0x1] %vm110, 0.0
  %120 = vst.msk [vmem:[#allocation2 + $0x90] sm:$0x1] %vm110, 0.0
  %121 = vst.msk [vmem:[#allocation2 + $0xa0] sm:$0x1] %vm110, 0.0
  %122 = vst.msk [vmem:[#allocation2 + $0xb0] sm:$0x1] %vm110, 0.0
  %123 = vst.msk [vmem:[#allocation2 + $0xc0] sm:$0x1] %vm110, 0.0
  %124 = vst.msk [vmem:[#allocation2 + $0xd0] sm:$0x1] %vm110, 0.0
  %125 = vst.msk [vmem:[#allocation2 + $0xe0] sm:$0x1] %vm110, 0.0
  %126 = vst.msk [vmem:[#allocation2 + $0xf0] sm:$0x1] %vm110, 0.0
  %127 = vst.msk [vmem:[#allocation2 + $0x100] sm:$0x1] %vm110, 0.0
  %128 = vst.msk [vmem:[#allocation2 + $0x110] sm:$0x1] %vm110, 0.0
  %129 = vst.msk [vmem:[#allocation2 + $0x120] sm:$0x1] %vm110, 0.0
  %130 = vst.msk [vmem:[#allocation2 + $0x130] sm:$0x1] %vm110, 0.0
  %131 = vst.msk [vmem:[#allocation2 + $0x9] sm:$0x1] %vm110, 0.0
  %132 = vst.msk [vmem:[#allocation2 + $0x19] sm:$0x1] %vm110, 0.0
  %133 = vst.msk [vmem:[#allocation2 + $0x29] sm:$0x1] %vm110, 0.0
  %134 = vst.msk [vmem:[#allocation2 + $0x39] sm:$0x1] %vm110, 0.0
  %135 = vst.msk [vmem:[#allocation2 + $0x49] sm:$0x1] %vm110, 0.0
  %136 = vst.msk [vmem:[#allocation2 + $0x59] sm:$0x1] %vm110, 0.0
  %137 = vst.msk [vmem:[#allocation2 + $0x69] sm:$0x1] %vm110, 0.0
  %138 = vst.msk [vmem:[#allocation2 + $0x79] sm:$0x1] %vm110, 0.0
  %139 = vst.msk [vmem:[#allocation2 + $0x89] sm:$0x1] %vm110, 0.0
  %140 = vst.msk [vmem:[#allocation2 + $0x99] sm:$0x1] %vm110, 0.0
  %141 = vst.msk [vmem:[#allocation2 + $0xa9] sm:$0x1] %vm110, 0.0
  %142 = vst.msk [vmem:[#allocation2 + $0xb9] sm:$0x1] %vm110, 0.0
  %143 = vst.msk [vmem:[#allocation2 + $0xc9] sm:$0x1] %vm110, 0.0
  %144 = vst.msk [vmem:[#allocation2 + $0xd9] sm:$0x1] %vm110, 0.0
  %145 = vst.msk [vmem:[#allocation2 + $0xe9] sm:$0x1] %vm110, 0.0
  %146 = vst.msk [vmem:[#allocation2 + $0xf9] sm:$0x1] %vm110, 0.0
  %147 = vst.msk [vmem:[#allocation2 + $0x109] sm:$0x1] %vm110, 0.0
  %148 = vst.msk [vmem:[#allocation2 + $0x119] sm:$0x1] %vm110, 0.0
  %149 = vst.msk [vmem:[#allocation2 + $0x129] sm:$0x1] %vm110, 0.0
  %150 = vst.msk [vmem:[#allocation2 + $0x139] sm:$0x1] %vm110, 0.0
  %s151 = scalar_lea.vmem [#allocation2], 16
  %152 = vst.msk [vmem:[%s151 + $0x1] sm:$0xff] %vm99, %v83
  %153 = vst.msk [vmem:[%s151 + $0x11] sm:$0xff] %vm99, %v84
  %154 = vst.msk [vmem:[%s151 + $0x21] sm:$0xff] %vm99, %v85
  %155 = vst.msk [vmem:[%s151 + $0x31] sm:$0xff] %vm99, %v86
  %156 = vst.msk [vmem:[%s151 + $0x41] sm:$0xff] %vm99, %v87
  %157 = vst.msk [vmem:[%s151 + $0x51] sm:$0xff] %vm99, %v88
  %158 = vst.msk [vmem:[%s151 + $0x61] sm:$0xff] %vm99, %v89
  %159 = vst.msk [vmem:[%s151 + $0x71] sm:$0xff] %vm99, %v90
  %160 = vst.msk [vmem:[%s151 + $0xa1] sm:$0xff] %vm99, %v91
  %161 = vst.msk [vmem:[%s151 + $0xb1] sm:$0xff] %vm99, %v92
  %162 = vst.msk [vmem:[%s151 + $0xc1] sm:$0xff] %vm99, %v93
  %163 = vst.msk [vmem:[%s151 + $0xd1] sm:$0xff] %vm99, %v94
  %164 = vst.msk [vmem:[%s151 + $0xe1] sm:$0xff] %vm99, %v95
  %165 = vst.msk [vmem:[%s151 + $0xf1] sm:$0xff] %vm99, %v96
  %166 = vst.msk [vmem:[%s151 + $0x101] sm:$0xff] %vm99, %v97
  %167 = vst.msk [vmem:[%s151 + $0x111] sm:$0xff] %vm99, %v98
  %v168 = vld [vmem:[#allocation2] sm:$0xff]
  %v169 = vld [vmem:[#allocation2 + $0x10] sm:$0xff]
  %v170 = vld [vmem:[#allocation2 + $0x20] sm:$0xff]
  %v171 = vld [vmem:[#allocation2 + $0x30] sm:$0xff]
  %v172 = vld [vmem:[#allocation2 + $0x40] sm:$0xff]
  %v173 = vld [vmem:[#allocation2 + $0x50] sm:$0xff]
  %v174 = vld [vmem:[#allocation2 + $0x60] sm:$0xff]
  %v175 = vld [vmem:[#allocation2 + $0x70] sm:$0xff]
  %v176 = vld [vmem:[#allocation2 + $0xa0] sm:$0xff]
  %v177 = vld [vmem:[#allocation2 + $0xb0] sm:$0xff]
  %v178 = vld [vmem:[#allocation2 + $0xc0] sm:$0xff]
  %v179 = vld [vmem:[#allocation2 + $0xd0] sm:$0xff]
  %v180 = vld [vmem:[#allocation2 + $0xe0] sm:$0xff]
  %v181 = vld [vmem:[#allocation2 + $0xf0] sm:$0xff]
  %v182 = vld [vmem:[#allocation2 + $0x100] sm:$0xff]
  %v183 = vld [vmem:[#allocation2 + $0x110] sm:$0xff]
  %v184 = vpack.c.bf16 %v169, %v168
  %v185 = vpack.c.bf16 %v171, %v170
  %v186 = vpack.c.bf16 %v173, %v172
  %v187 = vpack.c.bf16 %v175, %v174
  %v188 = vpack.c.bf16 %v177, %v176
  %v189 = vpack.c.bf16 %v179, %v178
  %v190 = vpack.c.bf16 %v181, %v180
  %v191 = vpack.c.bf16 %v183, %v182
  %v192 = vld [vmem:[%s3] sm:$0xf]
  %v193 = vld [vmem:[%s3 + $0x4] sm:$0xf]
  %v194 = vld [vmem:[%s3 + $0x8] sm:$0xf]
  %v195 = vld [vmem:[%s3 + $0xc] sm:$0xf]
  %v196 = vld [vmem:[#allocation2 + $0x1] sm:$0xff]
  %v197 = vld [vmem:[#allocation2 + $0x11] sm:$0xff]
  %v198 = vld [vmem:[#allocation2 + $0x21] sm:$0xff]
  %v199 = vld [vmem:[#allocation2 + $0x31] sm:$0xff]
  %v200 = vld [vmem:[#allocation2 + $0x41] sm:$0xff]
  %v201 = vld [vmem:[#allocation2 + $0x51] sm:$0xff]
  %v202 = vld [vmem:[#allocation2 + $0x61] sm:$0xff]
  %v203 = vld [vmem:[#allocation2 + $0x71] sm:$0xff]
  %v204 = vld [vmem:[#allocation2 + $0xa1] sm:$0xff]
  %v205 = vld [vmem:[#allocation2 + $0xb1] sm:$0xff]
  %v206 = vld [vmem:[#allocation2 + $0xc1] sm:$0xff]
  %v207 = vld [vmem:[#allocation2 + $0xd1] sm:$0xff]
  %v208 = vld [vmem:[#allocation2 + $0xe1] sm:$0xff]
  %v209 = vld [vmem:[#allocation2 + $0xf1] sm:$0xff]
  %v210 = vld [vmem:[#allocation2 + $0x101] sm:$0xff]
  %v211 = vld [vmem:[#allocation2 + $0x111] sm:$0xff]
  %v212 = vpack.c.bf16 %v197, %v196
  %v213 = vpack.c.bf16 %v199, %v198
  %v214 = vpack.c.bf16 %v201, %v200
  %v215 = vpack.c.bf16 %v203, %v202
  %v216 = vpack.c.bf16 %v205, %v204
  %v217 = vpack.c.bf16 %v207, %v206
  %v218 = vpack.c.bf16 %v209, %v208
  %v219 = vpack.c.bf16 %v211, %v210
  %s220 = scalar_lea.vmem %s3, 16
  %v221 = vld [vmem:[%s220] sm:$0xf]
  %v222 = vld [vmem:[%s220 + $0x4] sm:$0xf]
  %v223 = vld [vmem:[%s220 + $0x8] sm:$0xf]
  %v224 = vld [vmem:[%s220 + $0xc] sm:$0xf]
  %v229 = vunpack.c.l.b16 %v221
  %v230 = vunpack.c.l.b16 %v222
  %v231 = vunpack.c.l.b16 %v223
  %v232 = vunpack.c.l.b16 %v224
  %v233 = vpack.c.b16 %v230, %v229
  %v234 = vpack.c.b16 %v232, %v231
  %v238 = vsel %vm99, %v212, 0
  %v241 = vsel %vm99, %v213, 0
  %v244 = vsel %vm99, %v214, 0
  %v247 = vsel %vm99, %v215, 0
  %v250 = vsel %vm99, %v216, 0
  %v253 = vsel %vm99, %v217, 0
  %v256 = vsel %vm99, %v218, 0
  %v259 = vsel %vm99, %v219, 0
  %261 = vmatprep.subr.bf16.mxu0 0
  %262 = vmatpush1.bf16.msra.mxu0 %v233
  %263 = vmatprep.subr.bf16.mxu0 0
  %264 = vmatpush1.bf16.msra.mxu0 %v234
  %265 = vmatprep.subr.bf16.mxu0 0
  %266 = vmatpush1.bf16.msra.mxu0 0
  %267 = vmatprep.subr.bf16.mxu0 0
  %268 = vmatpush1.bf16.msra.mxu0 0
  %269 = vmatprep.subr.bf16.mxu0 0
  %270 = vmatpush1.bf16.msra.mxu0 0
  %271 = vmatprep.subr.bf16.mxu0 0
  %272 = vmatpush1.bf16.msra.mxu0 0
  %273 = vmatprep.subr.bf16.mxu0 0
  %274 = vmatpush1.bf16.msra.mxu0 0
  %275 = vmatprep.subr.bf16.mxu0 0
  %276 = vmatpush1.bf16.msra.mxu0 0
  %277 = vmatprep.subr.bf16.mxu0 0
  %278 = vmatpush1.bf16.msra.mxu0 0
  %279 = vmatprep.subr.bf16.mxu0 0
  %280 = vmatpush1.bf16.msra.mxu0 0
  %281 = vmatprep.subr.bf16.mxu0 0
  %282 = vmatpush1.bf16.msra.mxu0 0
  %283 = vmatprep.subr.bf16.mxu0 0
  %284 = vmatpush1.bf16.msra.mxu0 0
  %285 = vmatprep.subr.bf16.mxu0 0
  %286 = vmatpush1.bf16.msra.mxu0 0
  %287 = vmatprep.subr.bf16.mxu0 0
  %288 = vmatpush1.bf16.msra.mxu0 0
  %289 = vmatprep.subr.bf16.mxu0 0
  %290 = vmatpush1.bf16.msra.mxu0 0
  %291 = vmatprep.subr.bf16.mxu0 0
  %292 = vmatpush1.bf16.msra.mxu0 0
  %293 = vmatprep.mubr.bf16.mxu0 0
  %294 = vmatmul.mubr.bf16.gmra.mrb[0].mxu0 %v238
  %v295 = vpop.f32.mrb[0].mxu0
  %v296 = vadd.f32 0.0, %v295
  %v297 = vpop.f32.mrb[0].mxu0
  %v298 = vpop.f32.mrb[0].mxu0
  %v299 = vadd.f32 0.0, %v298
  %v300 = vpop.f32.mrb[0].mxu0
  %301 = vmatprep.mubr.bf16.mxu0 0
  %302 = vmatmul.mubr.bf16.gmra.mrb[0].mxu0 %v241
  %v303 = vpop.f32.mrb[0].mxu0
  %v304 = vadd.f32 0.0, %v303
  %v305 = vpop.f32.mrb[0].mxu0
  %v306 = vpop.f32.mrb[0].mxu0
  %v307 = vadd.f32 0.0, %v306
  %v308 = vpop.f32.mrb[0].mxu0
  %309 = vmatprep.mubr.bf16.mxu0 0
  %310 = vmatmul.mubr.bf16.gmra.mrb[0].mxu0 %v244
  %v311 = vpop.f32.mrb[0].mxu0
  %v312 = vadd.f32 0.0, %v311
  %v313 = vpop.f32.mrb[0].mxu0
  %v314 = vpop.f32.mrb[0].mxu0
  %v315 = vadd.f32 0.0, %v314
  %v316 = vpop.f32.mrb[0].mxu0
  %317 = vmatprep.mubr.bf16.mxu0 0
  %318 = vmatmul.mubr.bf16.gmra.mrb[0].mxu0 %v247
  %v319 = vpop.f32.mrb[0].mxu0
  %v320 = vadd.f32 0.0, %v319
  %v321 = vpop.f32.mrb[0].mxu0
  %v322 = vpop.f32.mrb[0].mxu0
  %v323 = vadd.f32 0.0, %v322
  %v324 = vpop.f32.mrb[0].mxu0
  %325 = vmatprep.mubr.bf16.mxu0 0
  %326 = vmatmul.mubr.bf16.gmra.mrb[0].mxu0 %v250
  %v327 = vpop.f32.mrb[0].mxu0
  %v328 = vadd.f32 0.0, %v327
  %v329 = vpop.f32.mrb[0].mxu0
  %v330 = vpop.f32.mrb[0].mxu0
  %v331 = vadd.f32 0.0, %v330
  %v332 = vpop.f32.mrb[0].mxu0
  %333 = vmatprep.mubr.bf16.mxu0 0
  %334 = vmatmul.mubr.bf16.gmra.mrb[0].mxu0 %v253
  %v335 = vpop.f32.mrb[0].mxu0
  %v336 = vadd.f32 0.0, %v335
  %v337 = vpop.f32.mrb[0].mxu0
  %v338 = vpop.f32.mrb[0].mxu0
  %v339 = vadd.f32 0.0, %v338
  %v340 = vpop.f32.mrb[0].mxu0
  %341 = vmatprep.mubr.bf16.mxu0 0
  %342 = vmatmul.mubr.bf16.gmra.mrb[0].mxu0 %v256
  %v343 = vpop.f32.mrb[0].mxu0
  %v344 = vadd.f32 0.0, %v343
  %v345 = vpop.f32.mrb[0].mxu0
  %v346 = vpop.f32.mrb[0].mxu0
  %v347 = vadd.f32 0.0, %v346
  %v348 = vpop.f32.mrb[0].mxu0
  %349 = vmatprep.mubr.bf16.mxu0 0
  %350 = vmatmul.mubr.bf16.gmra.mrb[0].mxu0 %v259
  %v351 = vpop.f32.mrb[0].mxu0
  %v352 = vadd.f32 0.0, %v351
  %v353 = vpop.f32.mrb[0].mxu0
  %v354 = vpop.f32.mrb[0].mxu0
  %v355 = vadd.f32 0.0, %v354
  %v356 = vpop.f32.mrb[0].mxu0
  %357 = vdwg.mxu0
  %v362 = vunpack.c.l.b16 %v192
  %v363 = vunpack.c.l.b16 %v193
  %v364 = vunpack.c.l.b16 %v194
  %v365 = vunpack.c.l.b16 %v195
  %v366 = vpack.c.b16 %v363, %v362
  %v367 = vpack.c.b16 %v365, %v364
  %v371 = vsel %vm99, %v184, 0
  %v374 = vsel %vm99, %v185, 0
  %v377 = vsel %vm99, %v186, 0
  %v380 = vsel %vm99, %v187, 0
  %v383 = vsel %vm99, %v188, 0
  %v386 = vsel %vm99, %v189, 0
  %v389 = vsel %vm99, %v190, 0
  %v392 = vsel %vm99, %v191, 0
  %394 = vmatprep.subr.bf16.mxu0 0
  %395 = vmatpush1.bf16.msra.mxu0 %v366
  %396 = vmatprep.subr.bf16.mxu0 0
  %397 = vmatpush1.bf16.msra.mxu0 %v367
  %398 = vmatprep.subr.bf16.mxu0 0
  %399 = vmatpush1.bf16.msra.mxu0 0
  %400 = vmatprep.subr.bf16.mxu0 0
  %401 = vmatpush1.bf16.msra.mxu0 0
  %402 = vmatprep.subr.bf16.mxu0 0
  %403 = vmatpush1.bf16.msra.mxu0 0
  %404 = vmatprep.subr.bf16.mxu0 0
  %405 = vmatpush1.bf16.msra.mxu0 0
  %406 = vmatprep.subr.bf16.mxu0 0
  %407 = vmatpush1.bf16.msra.mxu0 0
  %408 = vmatprep.subr.bf16.mxu0 0
  %409 = vmatpush1.bf16.msra.mxu0 0
  %410 = vmatprep.subr.bf16.mxu0 0
  %411 = vmatpush1.bf16.msra.mxu0 0
  %412 = vmatprep.subr.bf16.mxu0 0
  %413 = vmatpush1.bf16.msra.mxu0 0
  %414 = vmatprep.subr.bf16.mxu0 0
  %415 = vmatpush1.bf16.msra.mxu0 0
  %416 = vmatprep.subr.bf16.mxu0 0
  %417 = vmatpush1.bf16.msra.mxu0 0
  %418 = vmatprep.subr.bf16.mxu0 0
  %419 = vmatpush1.bf16.msra.mxu0 0
  %420 = vmatprep.subr.bf16.mxu0 0
  %421 = vmatpush1.bf16.msra.mxu0 0
  %422 = vmatprep.subr.bf16.mxu0 0
  %423 = vmatpush1.bf16.msra.mxu0 0
  %424 = vmatprep.subr.bf16.mxu0 0
  %425 = vmatpush1.bf16.msra.mxu0 0
  %426 = vmatprep.mubr.bf16.mxu0 0
  %427 = vmatmul.mubr.bf16.gmra.mrb[0].mxu0 %v371
  %v428 = vpop.f32.mrb[0].mxu0
  %v429 = vadd.f32 %v296, %v428
  %v430 = vpop.f32.mrb[0].mxu0
  %v431 = vpop.f32.mrb[0].mxu0
  %v432 = vadd.f32 %v299, %v431
  %v433 = vpop.f32.mrb[0].mxu0
  %434 = vmatprep.mubr.bf16.mxu0 0
  %435 = vmatmul.mubr.bf16.gmra.mrb[0].mxu0 %v374
  %v436 = vpop.f32.mrb[0].mxu0
  %v437 = vadd.f32 %v304, %v436
  %v438 = vpop.f32.mrb[0].mxu0
  %v439 = vpop.f32.mrb[0].mxu0
  %v440 = vadd.f32 %v307, %v439
  %v441 = vpop.f32.mrb[0].mxu0
  %442 = vmatprep.mubr.bf16.mxu0 0
  %443 = vmatmul.mubr.bf16.gmra.mrb[0].mxu0 %v377
  %v444 = vpop.f32.mrb[0].mxu0
  %v445 = vadd.f32 %v312, %v444
  %v446 = vpop.f32.mrb[0].mxu0
  %v447 = vpop.f32.mrb[0].mxu0
  %v448 = vadd.f32 %v315, %v447
  %v449 = vpop.f32.mrb[0].mxu0
  %450 = vmatprep.mubr.bf16.mxu0 0
  %451 = vmatmul.mubr.bf16.gmra.mrb[0].mxu0 %v380
  %v452 = vpop.f32.mrb[0].mxu0
  %v453 = vadd.f32 %v320, %v452
  %v454 = vpop.f32.mrb[0].mxu0
  %v455 = vpop.f32.mrb[0].mxu0
  %v456 = vadd.f32 %v323, %v455
  %v457 = vpop.f32.mrb[0].mxu0
  %458 = vmatprep.mubr.bf16.mxu0 0
  %459 = vmatmul.mubr.bf16.gmra.mrb[0].mxu0 %v383
  %v460 = vpop.f32.mrb[0].mxu0
  %v461 = vadd.f32 %v328, %v460
  %v462 = vpop.f32.mrb[0].mxu0
  %v463 = vpop.f32.mrb[0].mxu0
  %v464 = vadd.f32 %v331, %v463
  %v465 = vpop.f32.mrb[0].mxu0
  %466 = vmatprep.mubr.bf16.mxu0 0
  %467 = vmatmul.mubr.bf16.gmra.mrb[0].mxu0 %v386
  %v468 = vpop.f32.mrb[0].mxu0
  %v469 = vadd.f32 %v336, %v468
  %v470 = vpop.f32.mrb[0].mxu0
  %v471 = vpop.f32.mrb[0].mxu0
  %v472 = vadd.f32 %v339, %v471
  %v473 = vpop.f32.mrb[0].mxu0
  %474 = vmatprep.mubr.bf16.mxu0 0
  %475 = vmatmul.mubr.bf16.gmra.mrb[0].mxu0 %v389
  %v476 = vpop.f32.mrb[0].mxu0
  %v477 = vadd.f32 %v344, %v476
  %v478 = vpop.f32.mrb[0].mxu0
  %v479 = vpop.f32.mrb[0].mxu0
  %v480 = vadd.f32 %v347, %v479
  %v481 = vpop.f32.mrb[0].mxu0
  %482 = vmatprep.mubr.bf16.mxu0 0
  %483 = vmatmul.mubr.bf16.gmra.mrb[0].mxu0 %v392
  %v484 = vpop.f32.mrb[0].mxu0
  %v485 = vadd.f32 %v352, %v484
  %v486 = vpop.f32.mrb[0].mxu0
  %v487 = vpop.f32.mrb[0].mxu0
  %v488 = vadd.f32 %v355, %v487
  %v489 = vpop.f32.mrb[0].mxu0
  %490 = vdwg.mxu0
  %v491 = vld [vmem:[#allocation2 + $0x2] sm:$0xff]
  %v492 = vld [vmem:[#allocation2 + $0x12] sm:$0xff]
  %v493 = vld [vmem:[#allocation2 + $0x22] sm:$0xff]
  %v494 = vld [vmem:[#allocation2 + $0x32] sm:$0xff]
  %v495 = vld [vmem:[#allocation2 + $0x42] sm:$0xff]
  %v496 = vld [vmem:[#allocation2 + $0x52] sm:$0xff]
  %v497 = vld [vmem:[#allocation2 + $0x62] sm:$0xff]
  %v498 = vld [vmem:[#allocation2 + $0x72] sm:$0xff]
  %v499 = vld [vmem:[#allocation2 + $0xa2] sm:$0xff]
  %v500 = vld [vmem:[#allocation2 + $0xb2] sm:$0xff]
  %v501 = vld [vmem:[#allocation2 + $0xc2] sm:$0xff]
  %v502 = vld [vmem:[#allocation2 + $0xd2] sm:$0xff]
  %v503 = vld [vmem:[#allocation2 + $0xe2] sm:$0xff]
  %v504 = vld [vmem:[#allocation2 + $0xf2] sm:$0xff]
  %v505 = vld [vmem:[#allocation2 + $0x102] sm:$0xff]
  %v506 = vld [vmem:[#allocation2 + $0x112] sm:$0xff]
  %v507 = vpack.c.bf16 %v492, %v491
  %v508 = vpack.c.bf16 %v494, %v493
  %v509 = vpack.c.bf16 %v496, %v495
  %v510 = vpack.c.bf16 %v498, %v497
  %v511 = vpack.c.bf16 %v500, %v499
  %v512 = vpack.c.bf16 %v502, %v501
  %v513 = vpack.c.bf16 %v504, %v503
  %v514 = vpack.c.bf16 %v506, %v505
  %s515 = scalar_lea.vmem %s3, 32
  %v516 = vld [vmem:[%s515] sm:$0xf]
  %v517 = vld [vmem:[%s515 + $0x4] sm:$0xf]
  %v518 = vld [vmem:[%s515 + $0x8] sm:$0xf]
  %v519 = vld [vmem:[%s515 + $0xc] sm:$0xf]
  %v524 = vunpack.c.l.b16 %v516
  %v525 = vunpack.c.l.b16 %v517
  %v526 = vunpack.c.l.b16 %v518
  %v527 = vunpack.c.l.b16 %v519
  %v528 = vpack.c.b16 %v525, %v524
  %v529 = vpack.c.b16 %v527, %v526
  %v533 = vsel %vm99, %v507, 0
  %v536 = vsel %vm99, %v508, 0
  %v539 = vsel %vm99, %v509, 0
  %v542 = vsel %vm99, %v510, 0
  %v545 = vsel %vm99, %v511, 0
  %v548 = vsel %vm99, %v512, 0
  %v551 = vsel %vm99, %v513, 0
  %v554 = vsel %vm99, %v514, 0
  %556 = vmatprep.subr.bf16.mxu0 0
  %557 = vmatpush1.bf16.msra.mxu0 %v528
  %558 = vmatprep.subr.bf16.mxu0 0
  %559 = vmatpush1.bf16.msra.mxu0 %v529
  %560 = vmatprep.subr.bf16.mxu0 0
  %561 = vmatpush1.bf16.msra.mxu0 0
  %562 = vmatprep.subr.bf16.mxu0 0
  %563 = vmatpush1.bf16.msra.mxu0 0
  %564 = vmatprep.subr.bf16.mxu0 0
  %565 = vmatpush1.bf16.msra.mxu0 0
  %566 = vmatprep.subr.bf16.mxu0 0
  %567 = vmatpush1.bf16.msra.mxu0 0
  %568 = vmatprep.subr.bf16.mxu0 0
  %569 = vmatpush1.bf16.msra.mxu0 0
  %570 = vmatprep.subr.bf16.mxu0 0
  %571 = vmatpush1.bf16.msra.mxu0 0
  %572 = vmatprep.subr.bf16.mxu0 0
  %573 = vmatpush1.bf16.msra.mxu0 0
  %574 = vmatprep.subr.bf16.mxu0 0
  %575 = vmatpush1.bf16.msra.mxu0 0
  %576 = vmatprep.subr.bf16.mxu0 0
  %577 = vmatpush1.bf16.msra.mxu0 0
  %578 = vmatprep.subr.bf16.mxu0 0
  %579 = vmatpush1.bf16.msra.mxu0 0
  %580 = vmatprep.subr.bf16.mxu0 0
  %581 = vmatpush1.bf16.msra.mxu0 0
  %582 = vmatprep.subr.bf16.mxu0 0
  %583 = vmatpush1.bf16.msra.mxu0 0
  %584 = vmatprep.subr.bf16.mxu0 0
  %585 = vmatpush1.bf16.msra.mxu0 0
  %586 = vmatprep.subr.bf16.mxu0 0
  %587 = vmatpush1.bf16.msra.mxu0 0
  %588 = vmatprep.mubr.bf16.mxu0 0
  %589 = vmatmul.mubr.bf16.gmra.mrb[0].mxu0 %v533
  %v590 = vpop.f32.mrb[0].mxu0
  %v591 = vadd.f32 0.0, %v590
  %v592 = vpop.f32.mrb[0].mxu0
  %v593 = vpop.f32.mrb[0].mxu0
  %v594 = vadd.f32 0.0, %v593
  %v595 = vpop.f32.mrb[0].mxu0
  %596 = vmatprep.mubr.bf16.mxu0 0
  %597 = vmatmul.mubr.bf16.gmra.mrb[0].mxu0 %v536
  %v598 = vpop.f32.mrb[0].mxu0
  %v599 = vadd.f32 0.0, %v598
  %v600 = vpop.f32.mrb[0].mxu0
  %v601 = vpop.f32.mrb[0].mxu0
  %v602 = vadd.f32 0.0, %v601
  %v603 = vpop.f32.mrb[0].mxu0
  %604 = vmatprep.mubr.bf16.mxu0 0
  %605 = vmatmul.mubr.bf16.gmra.mrb[0].mxu0 %v539
  %v606 = vpop.f32.mrb[0].mxu0
  %v607 = vadd.f32 0.0, %v606
  %v608 = vpop.f32.mrb[0].mxu0
  %v609 = vpop.f32.mrb[0].mxu0
  %v610 = vadd.f32 0.0, %v609
  %v611 = vpop.f32.mrb[0].mxu0
  %612 = vmatprep.mubr.bf16.mxu0 0
  %613 = vmatmul.mubr.bf16.gmra.mrb[0].mxu0 %v542
  %v614 = vpop.f32.mrb[0].mxu0
  %v615 = vadd.f32 0.0, %v614
  %v616 = vpop.f32.mrb[0].mxu0
  %v617 = vpop.f32.mrb[0].mxu0
  %v618 = vadd.f32 0.0, %v617
  %v619 = vpop.f32.mrb[0].mxu0
  %620 = vmatprep.mubr.bf16.mxu0 0
  %621 = vmatmul.mubr.bf16.gmra.mrb[0].mxu0 %v545
  %v622 = vpop.f32.mrb[0].mxu0
  %v623 = vadd.f32 0.0, %v622
  %v624 = vpop.f32.mrb[0].mxu0
  %v625 = vpop.f32.mrb[0].mxu0
  %v626 = vadd.f32 0.0, %v625
  %v627 = vpop.f32.mrb[0].mxu0
  %628 = vmatprep.mubr.bf16.mxu0 0
  %629 = vmatmul.mubr.bf16.gmra.mrb[0].mxu0 %v548
  %v630 = vpop.f32.mrb[0].mxu0
  %v631 = vadd.f32 0.0, %v630
  %v632 = vpop.f32.mrb[0].mxu0
  %v633 = vpop.f32.mrb[0].mxu0
  %v634 = vadd.f32 0.0, %v633
  %v635 = vpop.f32.mrb[0].mxu0
  %636 = vmatprep.mubr.bf16.mxu0 0
  %637 = vmatmul.mubr.bf16.gmra.mrb[0].mxu0 %v551
  %v638 = vpop.f32.mrb[0].mxu0
  %v639 = vadd.f32 0.0, %v638
  %v640 = vpop.f32.mrb[0].mxu0
  %v641 = vpop.f32.mrb[0].mxu0
  %v642 = vadd.f32 0.0, %v641
  %v643 = vpop.f32.mrb[0].mxu0
  %644 = vmatprep.mubr.bf16.mxu0 0
  %645 = vmatmul.mubr.bf16.gmra.mrb[0].mxu0 %v554
  %v646 = vpop.f32.mrb[0].mxu0
  %v647 = vadd.f32 0.0, %v646
  %v648 = vpop.f32.mrb[0].mxu0
  %v649 = vpop.f32.mrb[0].mxu0
  %v650 = vadd.f32 0.0, %v649
  %v651 = vpop.f32.mrb[0].mxu0
  %652 = vdwg.mxu0
  %v653 = vadd.f32 %v429, %v591
  %v654 = vadd.f32 %v432, %v594
  %v655 = vadd.f32 %v437, %v599
  %v656 = vadd.f32 %v440, %v602
  %v657 = vadd.f32 %v445, %v607
  %v658 = vadd.f32 %v448, %v610
  %v659 = vadd.f32 %v453, %v615
  %v660 = vadd.f32 %v456, %v618
  %v661 = vadd.f32 %v461, %v623
  %v662 = vadd.f32 %v464, %v626
  %v663 = vadd.f32 %v469, %v631
  %v664 = vadd.f32 %v472, %v634
  %v665 = vadd.f32 %v477, %v639
  %v666 = vadd.f32 %v480, %v642
  %v667 = vadd.f32 %v485, %v647
  %v668 = vadd.f32 %v488, %v650
  %v669 = vld [vmem:[%s151] sm:$0xff]
  %v670 = vld [vmem:[%s151 + $0x10] sm:$0xff]
  %v671 = vld [vmem:[%s151 + $0x20] sm:$0xff]
  %v672 = vld [vmem:[%s151 + $0x30] sm:$0xff]
  %v673 = vld [vmem:[%s151 + $0x40] sm:$0xff]
  %v674 = vld [vmem:[%s151 + $0x50] sm:$0xff]
  %v675 = vld [vmem:[%s151 + $0x60] sm:$0xff]
  %v676 = vld [vmem:[%s151 + $0x70] sm:$0xff]
  %v677 = vld [vmem:[%s151 + $0xa0] sm:$0xff]
  %v678 = vld [vmem:[%s151 + $0xb0] sm:$0xff]
  %v679 = vld [vmem:[%s151 + $0xc0] sm:$0xff]
  %v680 = vld [vmem:[%s151 + $0xd0] sm:$0xff]
  %v681 = vld [vmem:[%s151 + $0xe0] sm:$0xff]
  %v682 = vld [vmem:[%s151 + $0xf0] sm:$0xff]
  %v683 = vld [vmem:[%s151 + $0x100] sm:$0xff]
  %v684 = vld [vmem:[%s151 + $0x110] sm:$0xff]
  %v685 = vpack.c.bf16 %v670, %v669
  %v686 = vpack.c.bf16 %v672, %v671
  %v687 = vpack.c.bf16 %v674, %v673
  %v688 = vpack.c.bf16 %v676, %v675
  %v689 = vpack.c.bf16 %v678, %v677
  %v690 = vpack.c.bf16 %v680, %v679
  %v691 = vpack.c.bf16 %v682, %v681
  %v692 = vpack.c.bf16 %v684, %v683
  %s693 = scalar_lea.vmem %s3, 48
  %v694 = vld [vmem:[%s693] sm:$0xf]
  %v695 = vld [vmem:[%s693 + $0x4] sm:$0xf]
  %v696 = vld [vmem:[%s693 + $0x8] sm:$0xf]
  %v697 = vld [vmem:[%s693 + $0xc] sm:$0xf]
  %v702 = vunpack.c.l.b16 %v694
  %v703 = vunpack.c.l.b16 %v695
  %v704 = vunpack.c.l.b16 %v696
  %v705 = vunpack.c.l.b16 %v697
  %v706 = vpack.c.b16 %v703, %v702
  %v707 = vpack.c.b16 %v705, %v704
  %v711 = vsel %vm99, %v685, 0
  %v714 = vsel %vm99, %v686, 0
  %v717 = vsel %vm99, %v687, 0
  %v720 = vsel %vm99, %v688, 0
  %v723 = vsel %vm99, %v689, 0
  %v726 = vsel %vm99, %v690, 0
  %v729 = vsel %vm99, %v691, 0
  %v732 = vsel %vm99, %v692, 0
  %734 = vmatprep.subr.bf16.mxu0 0
  %735 = vmatpush1.bf16.msra.mxu0 %v706
  %736 = vmatprep.subr.bf16.mxu0 0
  %737 = vmatpush1.bf16.msra.mxu0 %v707
  %738 = vmatprep.subr.bf16.mxu0 0
  %739 = vmatpush1.bf16.msra.mxu0 0
  %740 = vmatprep.subr.bf16.mxu0 0
  %741 = vmatpush1.bf16.msra.mxu0 0
  %742 = vmatprep.subr.bf16.mxu0 0
  %743 = vmatpush1.bf16.msra.mxu0 0
  %744 = vmatprep.subr.bf16.mxu0 0
  %745 = vmatpush1.bf16.msra.mxu0 0
  %746 = vmatprep.subr.bf16.mxu0 0
  %747 = vmatpush1.bf16.msra.mxu0 0
  %748 = vmatprep.subr.bf16.mxu0 0
  %749 = vmatpush1.bf16.msra.mxu0 0
  %750 = vmatprep.subr.bf16.mxu0 0
  %751 = vmatpush1.bf16.msra.mxu0 0
  %752 = vmatprep.subr.bf16.mxu0 0
  %753 = vmatpush1.bf16.msra.mxu0 0
  %754 = vmatprep.subr.bf16.mxu0 0
  %755 = vmatpush1.bf16.msra.mxu0 0
  %756 = vmatprep.subr.bf16.mxu0 0
  %757 = vmatpush1.bf16.msra.mxu0 0
  %758 = vmatprep.subr.bf16.mxu0 0
  %759 = vmatpush1.bf16.msra.mxu0 0
  %760 = vmatprep.subr.bf16.mxu0 0
  %761 = vmatpush1.bf16.msra.mxu0 0
  %762 = vmatprep.subr.bf16.mxu0 0
  %763 = vmatpush1.bf16.msra.mxu0 0
  %764 = vmatprep.subr.bf16.mxu0 0
  %765 = vmatpush1.bf16.msra.mxu0 0
  %766 = vmatprep.mubr.bf16.mxu0 0
  %767 = vmatmul.mubr.bf16.gmra.mrb[0].mxu0 %v711
  %v768 = vpop.f32.mrb[0].mxu0
  %v769 = vadd.f32 0.0, %v768
  %v770 = vpop.f32.mrb[0].mxu0
  %v771 = vpop.f32.mrb[0].mxu0
  %v772 = vadd.f32 0.0, %v771
  %v773 = vpop.f32.mrb[0].mxu0
  %774 = vmatprep.mubr.bf16.mxu0 0
  %775 = vmatmul.mubr.bf16.gmra.mrb[0].mxu0 %v714
  %v776 = vpop.f32.mrb[0].mxu0
  %v777 = vadd.f32 0.0, %v776
  %v778 = vpop.f32.mrb[0].mxu0
  %v779 = vpop.f32.mrb[0].mxu0
  %v780 = vadd.f32 0.0, %v779
  %v781 = vpop.f32.mrb[0].mxu0
  %782 = vmatprep.mubr.bf16.mxu0 0
  %783 = vmatmul.mubr.bf16.gmra.mrb[0].mxu0 %v717
  %v784 = vpop.f32.mrb[0].mxu0
  %v785 = vadd.f32 0.0, %v784
  %v786 = vpop.f32.mrb[0].mxu0
  %v787 = vpop.f32.mrb[0].mxu0
  %v788 = vadd.f32 0.0, %v787
  %v789 = vpop.f32.mrb[0].mxu0
  %790 = vmatprep.mubr.bf16.mxu0 0
  %791 = vmatmul.mubr.bf16.gmra.mrb[0].mxu0 %v720
  %v792 = vpop.f32.mrb[0].mxu0
  %v793 = vadd.f32 0.0, %v792
  %v794 = vpop.f32.mrb[0].mxu0
  %v795 = vpop.f32.mrb[0].mxu0
  %v796 = vadd.f32 0.0, %v795
  %v797 = vpop.f32.mrb[0].mxu0
  %798 = vmatprep.mubr.bf16.mxu0 0
  %799 = vmatmul.mubr.bf16.gmra.mrb[0].mxu0 %v723
  %v800 = vpop.f32.mrb[0].mxu0
  %v801 = vadd.f32 0.0, %v800
  %v802 = vpop.f32.mrb[0].mxu0
  %v803 = vpop.f32.mrb[0].mxu0
  %v804 = vadd.f32 0.0, %v803
  %v805 = vpop.f32.mrb[0].mxu0
  %806 = vmatprep.mubr.bf16.mxu0 0
  %807 = vmatmul.mubr.bf16.gmra.mrb[0].mxu0 %v726
  %v808 = vpop.f32.mrb[0].mxu0
  %v809 = vadd.f32 0.0, %v808
  %v810 = vpop.f32.mrb[0].mxu0
  %v811 = vpop.f32.mrb[0].mxu0
  %v812 = vadd.f32 0.0, %v811
  %v813 = vpop.f32.mrb[0].mxu0
  %814 = vmatprep.mubr.bf16.mxu0 0
  %815 = vmatmul.mubr.bf16.gmra.mrb[0].mxu0 %v729
  %v816 = vpop.f32.mrb[0].mxu0
  %v817 = vadd.f32 0.0, %v816
  %v818 = vpop.f32.mrb[0].mxu0
  %v819 = vpop.f32.mrb[0].mxu0
  %v820 = vadd.f32 0.0, %v819
  %v821 = vpop.f32.mrb[0].mxu0
  %822 = vmatprep.mubr.bf16.mxu0 0
  %823 = vmatmul.mubr.bf16.gmra.mrb[0].mxu0 %v732
  %v824 = vpop.f32.mrb[0].mxu0
  %v825 = vadd.f32 0.0, %v824
  %v826 = vpop.f32.mrb[0].mxu0
  %v827 = vpop.f32.mrb[0].mxu0
  %v828 = vadd.f32 0.0, %v827
  %v829 = vpop.f32.mrb[0].mxu0
  %830 = vdwg.mxu0
  %v831 = vadd.f32 %v653, %v769
  %v832 = vadd.f32 %v654, %v772
  %v833 = vadd.f32 %v655, %v777
  %v834 = vadd.f32 %v656, %v780
  %v835 = vadd.f32 %v657, %v785
  %v836 = vadd.f32 %v658, %v788
  %v837 = vadd.f32 %v659, %v793
  %v838 = vadd.f32 %v660, %v796
  %v839 = vadd.f32 %v661, %v801
  %v840 = vadd.f32 %v662, %v804
  %v841 = vadd.f32 %v663, %v809
  %v842 = vadd.f32 %v664, %v812
  %v843 = vadd.f32 %v665, %v817
  %v844 = vadd.f32 %v666, %v820
  %v845 = vadd.f32 %v667, %v825
  %v846 = vadd.f32 %v668, %v828
  %v847 = vld [vmem:[%s151 + $0x1] sm:$0xff]
  %v848 = vld [vmem:[%s151 + $0x11] sm:$0xff]
  %v849 = vld [vmem:[%s151 + $0x21] sm:$0xff]
  %v850 = vld [vmem:[%s151 + $0x31] sm:$0xff]
  %v851 = vld [vmem:[%s151 + $0x41] sm:$0xff]
  %v852 = vld [vmem:[%s151 + $0x51] sm:$0xff]
  %v853 = vld [vmem:[%s151 + $0x61] sm:$0xff]
  %v854 = vld [vmem:[%s151 + $0x71] sm:$0xff]
  %v855 = vld [vmem:[%s151 + $0xa1] sm:$0xff]
  %v856 = vld [vmem:[%s151 + $0xb1] sm:$0xff]
  %v857 = vld [vmem:[%s151 + $0xc1] sm:$0xff]
  %v858 = vld [vmem:[%s151 + $0xd1] sm:$0xff]
  %v859 = vld [vmem:[%s151 + $0xe1] sm:$0xff]
  %v860 = vld [vmem:[%s151 + $0xf1] sm:$0xff]
  %v861 = vld [vmem:[%s151 + $0x101] sm:$0xff]
  %v862 = vld [vmem:[%s151 + $0x111] sm:$0xff]
  %v863 = vpack.c.bf16 %v848, %v847
  %v864 = vpack.c.bf16 %v850, %v849
  %v865 = vpack.c.bf16 %v852, %v851
  %v866 = vpack.c.bf16 %v854, %v853
  %v867 = vpack.c.bf16 %v856, %v855
  %v868 = vpack.c.bf16 %v858, %v857
  %v869 = vpack.c.bf16 %v860, %v859
  %v870 = vpack.c.bf16 %v862, %v861
  %s871 = scalar_lea.vmem %s3, 64
  %v872 = vld [vmem:[%s871] sm:$0xf]
  %v873 = vld [vmem:[%s871 + $0x4] sm:$0xf]
  %v874 = vld [vmem:[%s871 + $0x8] sm:$0xf]
  %v875 = vld [vmem:[%s871 + $0xc] sm:$0xf]
  %v880 = vunpack.c.l.b16 %v872
  %v881 = vunpack.c.l.b16 %v873
  %v882 = vunpack.c.l.b16 %v874
  %v883 = vunpack.c.l.b16 %v875
  %v884 = vpack.c.b16 %v881, %v880
  %v885 = vpack.c.b16 %v883, %v882
  %v889 = vsel %vm99, %v863, 0
  %v892 = vsel %vm99, %v864, 0
  %v895 = vsel %vm99, %v865, 0
  %v898 = vsel %vm99, %v866, 0
  %v901 = vsel %vm99, %v867, 0
  %v904 = vsel %vm99, %v868, 0
  %v907 = vsel %vm99, %v869, 0
  %v910 = vsel %vm99, %v870, 0
  %912 = vmatprep.subr.bf16.mxu0 0
  %913 = vmatpush1.bf16.msra.mxu0 %v884
  %914 = vmatprep.subr.bf16.mxu0 0
  %915 = vmatpush1.bf16.msra.mxu0 %v885
  %916 = vmatprep.subr.bf16.mxu0 0
  %917 = vmatpush1.bf16.msra.mxu0 0
  %918 = vmatprep.subr.bf16.mxu0 0
  %919 = vmatpush1.bf16.msra.mxu0 0
  %920 = vmatprep.subr.bf16.mxu0 0
  %921 = vmatpush1.bf16.msra.mxu0 0
  %922 = vmatprep.subr.bf16.mxu0 0
  %923 = vmatpush1.bf16.msra.mxu0 0
  %924 = vmatprep.subr.bf16.mxu0 0
  %925 = vmatpush1.bf16.msra.mxu0 0
  %926 = vmatprep.subr.bf16.mxu0 0
  %927 = vmatpush1.bf16.msra.mxu0 0
  %928 = vmatprep.subr.bf16.mxu0 0
  %929 = vmatpush1.bf16.msra.mxu0 0
  %930 = vmatprep.subr.bf16.mxu0 0
  %931 = vmatpush1.bf16.msra.mxu0 0
  %932 = vmatprep.subr.bf16.mxu0 0
  %933 = vmatpush1.bf16.msra.mxu0 0
  %934 = vmatprep.subr.bf16.mxu0 0
  %935 = vmatpush1.bf16.msra.mxu0 0
  %936 = vmatprep.subr.bf16.mxu0 0
  %937 = vmatpush1.bf16.msra.mxu0 0
  %938 = vmatprep.subr.bf16.mxu0 0
  %939 = vmatpush1.bf16.msra.mxu0 0
  %940 = vmatprep.subr.bf16.mxu0 0
  %941 = vmatpush1.bf16.msra.mxu0 0
  %942 = vmatprep.subr.bf16.mxu0 0
  %943 = vmatpush1.bf16.msra.mxu0 0
  %944 = vmatprep.mubr.bf16.mxu0 0
  %945 = vmatmul.mubr.bf16.gmra.mrb[0].mxu0 %v889
  %v946 = vpop.f32.mrb[0].mxu0
  %v947 = vadd.f32 0.0, %v946
  %v948 = vpop.f32.mrb[0].mxu0
  %v949 = vpop.f32.mrb[0].mxu0
  %v950 = vadd.f32 0.0, %v949
  %v951 = vpop.f32.mrb[0].mxu0
  %952 = vmatprep.mubr.bf16.mxu0 0
  %953 = vmatmul.mubr.bf16.gmra.mrb[0].mxu0 %v892
  %v954 = vpop.f32.mrb[0].mxu0
  %v955 = vadd.f32 0.0, %v954
  %v956 = vpop.f32.mrb[0].mxu0
  %v957 = vpop.f32.mrb[0].mxu0
  %v958 = vadd.f32 0.0, %v957
  %v959 = vpop.f32.mrb[0].mxu0
  %960 = vmatprep.mubr.bf16.mxu0 0
  %961 = vmatmul.mubr.bf16.gmra.mrb[0].mxu0 %v895
  %v962 = vpop.f32.mrb[0].mxu0
  %v963 = vadd.f32 0.0, %v962
  %v964 = vpop.f32.mrb[0].mxu0
  %v965 = vpop.f32.mrb[0].mxu0
  %v966 = vadd.f32 0.0, %v965
  %v967 = vpop.f32.mrb[0].mxu0
  %968 = vmatprep.mubr.bf16.mxu0 0
  %969 = vmatmul.mubr.bf16.gmra.mrb[0].mxu0 %v898
  %v970 = vpop.f32.mrb[0].mxu0
  %v971 = vadd.f32 0.0, %v970
  %v972 = vpop.f32.mrb[0].mxu0
  %v973 = vpop.f32.mrb[0].mxu0
  %v974 = vadd.f32 0.0, %v973
  %v975 = vpop.f32.mrb[0].mxu0
  %976 = vmatprep.mubr.bf16.mxu0 0
  %977 = vmatmul.mubr.bf16.gmra.mrb[0].mxu0 %v901
  %v978 = vpop.f32.mrb[0].mxu0
  %v979 = vadd.f32 0.0, %v978
  %v980 = vpop.f32.mrb[0].mxu0
  %v981 = vpop.f32.mrb[0].mxu0
  %v982 = vadd.f32 0.0, %v981
  %v983 = vpop.f32.mrb[0].mxu0
  %984 = vmatprep.mubr.bf16.mxu0 0
  %985 = vmatmul.mubr.bf16.gmra.mrb[0].mxu0 %v904
  %v986 = vpop.f32.mrb[0].mxu0
  %v987 = vadd.f32 0.0, %v986
  %v988 = vpop.f32.mrb[0].mxu0
  %v989 = vpop.f32.mrb[0].mxu0
  %v990 = vadd.f32 0.0, %v989
  %v991 = vpop.f32.mrb[0].mxu0
  %992 = vmatprep.mubr.bf16.mxu0 0
  %993 = vmatmul.mubr.bf16.gmra.mrb[0].mxu0 %v907
  %v994 = vpop.f32.mrb[0].mxu0
  %v995 = vadd.f32 0.0, %v994
  %v996 = vpop.f32.mrb[0].mxu0
  %v997 = vpop.f32.mrb[0].mxu0
  %v998 = vadd.f32 0.0, %v997
  %v999 = vpop.f32.mrb[0].mxu0
  %1000 = vmatprep.mubr.bf16.mxu0 0
  %1001 = vmatmul.mubr.bf16.gmra.mrb[0].mxu0 %v910
  %v1002 = vpop.f32.mrb[0].mxu0
  %v1003 = vadd.f32 0.0, %v1002
  %v1004 = vpop.f32.mrb[0].mxu0
  %v1005 = vpop.f32.mrb[0].mxu0
  %v1006 = vadd.f32 0.0, %v1005
  %v1007 = vpop.f32.mrb[0].mxu0
  %1008 = vdwg.mxu0
  %v1009 = vadd.f32 %v831, %v947
  %v1010 = vadd.f32 %v832, %v950
  %v1011 = vadd.f32 %v833, %v955
  %v1012 = vadd.f32 %v834, %v958
  %v1013 = vadd.f32 %v835, %v963
  %v1014 = vadd.f32 %v836, %v966
  %v1015 = vadd.f32 %v837, %v971
  %v1016 = vadd.f32 %v838, %v974
  %v1017 = vadd.f32 %v839, %v979
  %v1018 = vadd.f32 %v840, %v982
  %v1019 = vadd.f32 %v841, %v987
  %v1020 = vadd.f32 %v842, %v990
  %v1021 = vadd.f32 %v843, %v995
  %v1022 = vadd.f32 %v844, %v998
  %v1023 = vadd.f32 %v845, %v1003
  %v1024 = vadd.f32 %v846, %v1006
  %v1025 = vld [vmem:[%s151 + $0x2] sm:$0xff]
  %v1026 = vld [vmem:[%s151 + $0x12] sm:$0xff]
  %v1027 = vld [vmem:[%s151 + $0x22] sm:$0xff]
  %v1028 = vld [vmem:[%s151 + $0x32] sm:$0xff]
  %v1029 = vld [vmem:[%s151 + $0x42] sm:$0xff]
  %v1030 = vld [vmem:[%s151 + $0x52] sm:$0xff]
  %v1031 = vld [vmem:[%s151 + $0x62] sm:$0xff]
  %v1032 = vld [vmem:[%s151 + $0x72] sm:$0xff]
  %v1033 = vld [vmem:[%s151 + $0xa2] sm:$0xff]
  %v1034 = vld [vmem:[%s151 + $0xb2] sm:$0xff]
  %v1035 = vld [vmem:[%s151 + $0xc2] sm:$0xff]
  %v1036 = vld [vmem:[%s151 + $0xd2] sm:$0xff]
  %v1037 = vld [vmem:[%s151 + $0xe2] sm:$0xff]
  %v1038 = vld [vmem:[%s151 + $0xf2] sm:$0xff]
  %v1039 = vld [vmem:[%s151 + $0x102] sm:$0xff]
  %v1040 = vld [vmem:[%s151 + $0x112] sm:$0xff]
  %v1041 = vpack.c.bf16 %v1026, %v1025
  %v1042 = vpack.c.bf16 %v1028, %v1027
  %v1043 = vpack.c.bf16 %v1030, %v1029
  %v1044 = vpack.c.bf16 %v1032, %v1031
  %v1045 = vpack.c.bf16 %v1034, %v1033
  %v1046 = vpack.c.bf16 %v1036, %v1035
  %v1047 = vpack.c.bf16 %v1038, %v1037
  %v1048 = vpack.c.bf16 %v1040, %v1039
  %s1049 = scalar_lea.vmem %s3, 80
  %v1050 = vld [vmem:[%s1049] sm:$0xf]
  %v1051 = vld [vmem:[%s1049 + $0x4] sm:$0xf]
  %v1052 = vld [vmem:[%s1049 + $0x8] sm:$0xf]
  %v1053 = vld [vmem:[%s1049 + $0xc] sm:$0xf]
  %v1058 = vunpack.c.l.b16 %v1050
  %v1059 = vunpack.c.l.b16 %v1051
  %v1060 = vunpack.c.l.b16 %v1052
  %v1061 = vunpack.c.l.b16 %v1053
  %v1062 = vpack.c.b16 %v1059, %v1058
  %v1063 = vpack.c.b16 %v1061, %v1060
  %v1067 = vsel %vm99, %v1041, 0
  %v1070 = vsel %vm99, %v1042, 0
  %v1073 = vsel %vm99, %v1043, 0
  %v1076 = vsel %vm99, %v1044, 0
  %v1079 = vsel %vm99, %v1045, 0
  %v1082 = vsel %vm99, %v1046, 0
  %v1085 = vsel %vm99, %v1047, 0
  %v1088 = vsel %vm99, %v1048, 0
  %1090 = vmatprep.subr.bf16.mxu0 0
  %1091 = vmatpush1.bf16.msra.mxu0 %v1062
  %1092 = vmatprep.subr.bf16.mxu0 0
  %1093 = vmatpush1.bf16.msra.mxu0 %v1063
  %1094 = vmatprep.subr.bf16.mxu0 0
  %1095 = vmatpush1.bf16.msra.mxu0 0
  %1096 = vmatprep.subr.bf16.mxu0 0
  %1097 = vmatpush1.bf16.msra.mxu0 0
  %1098 = vmatprep.subr.bf16.mxu0 0
  %1099 = vmatpush1.bf16.msra.mxu0 0
  %1100 = vmatprep.subr.bf16.mxu0 0
  %1101 = vmatpush1.bf16.msra.mxu0 0
  %1102 = vmatprep.subr.bf16.mxu0 0
  %1103 = vmatpush1.bf16.msra.mxu0 0
  %1104 = vmatprep.subr.bf16.mxu0 0
  %1105 = vmatpush1.bf16.msra.mxu0 0
  %1106 = vmatprep.subr.bf16.mxu0 0
  %1107 = vmatpush1.bf16.msra.mxu0 0
  %1108 = vmatprep.subr.bf16.mxu0 0
  %1109 = vmatpush1.bf16.msra.mxu0 0
  %1110 = vmatprep.subr.bf16.mxu0 0
  %1111 = vmatpush1.bf16.msra.mxu0 0
  %1112 = vmatprep.subr.bf16.mxu0 0
  %1113 = vmatpush1.bf16.msra.mxu0 0
  %1114 = vmatprep.subr.bf16.mxu0 0
  %1115 = vmatpush1.bf16.msra.mxu0 0
  %1116 = vmatprep.subr.bf16.mxu0 0
  %1117 = vmatpush1.bf16.msra.mxu0 0
  %1118 = vmatprep.subr.bf16.mxu0 0
  %1119 = vmatpush1.bf16.msra.mxu0 0
  %1120 = vmatprep.subr.bf16.mxu0 0
  %1121 = vmatpush1.bf16.msra.mxu0 0
  %1122 = vmatprep.mubr.bf16.mxu0 0
  %1123 = vmatmul.mubr.bf16.gmra.mrb[0].mxu0 %v1067
  %v1124 = vpop.f32.mrb[0].mxu0
  %v1125 = vadd.f32 0.0, %v1124
  %v1126 = vpop.f32.mrb[0].mxu0
  %v1127 = vpop.f32.mrb[0].mxu0
  %v1128 = vadd.f32 0.0, %v1127
  %v1129 = vpop.f32.mrb[0].mxu0
  %1130 = vmatprep.mubr.bf16.mxu0 0
  %1131 = vmatmul.mubr.bf16.gmra.mrb[0].mxu0 %v1070
  %v1132 = vpop.f32.mrb[0].mxu0
  %v1133 = vadd.f32 0.0, %v1132
  %v1134 = vpop.f32.mrb[0].mxu0
  %v1135 = vpop.f32.mrb[0].mxu0
  %v1136 = vadd.f32 0.0, %v1135
  %v1137 = vpop.f32.mrb[0].mxu0
  %1138 = vmatprep.mubr.bf16.mxu0 0
  %1139 = vmatmul.mubr.bf16.gmra.mrb[0].mxu0 %v1073
  %v1140 = vpop.f32.mrb[0].mxu0
  %v1141 = vadd.f32 0.0, %v1140
  %v1142 = vpop.f32.mrb[0].mxu0
  %v1143 = vpop.f32.mrb[0].mxu0
  %v1144 = vadd.f32 0.0, %v1143
  %v1145 = vpop.f32.mrb[0].mxu0
  %1146 = vmatprep.mubr.bf16.mxu0 0
  %1147 = vmatmul.mubr.bf16.gmra.mrb[0].mxu0 %v1076
  %v1148 = vpop.f32.mrb[0].mxu0
  %v1149 = vadd.f32 0.0, %v1148
  %v1150 = vpop.f32.mrb[0].mxu0
  %v1151 = vpop.f32.mrb[0].mxu0
  %v1152 = vadd.f32 0.0, %v1151
  %v1153 = vpop.f32.mrb[0].mxu0
  %1154 = vmatprep.mubr.bf16.mxu0 0
  %1155 = vmatmul.mubr.bf16.gmra.mrb[0].mxu0 %v1079
  %v1156 = vpop.f32.mrb[0].mxu0
  %v1157 = vadd.f32 0.0, %v1156
  %v1158 = vpop.f32.mrb[0].mxu0
  %v1159 = vpop.f32.mrb[0].mxu0
  %v1160 = vadd.f32 0.0, %v1159
  %v1161 = vpop.f32.mrb[0].mxu0
  %1162 = vmatprep.mubr.bf16.mxu0 0
  %1163 = vmatmul.mubr.bf16.gmra.mrb[0].mxu0 %v1082
  %v1164 = vpop.f32.mrb[0].mxu0
  %v1165 = vadd.f32 0.0, %v1164
  %v1166 = vpop.f32.mrb[0].mxu0
  %v1167 = vpop.f32.mrb[0].mxu0
  %v1168 = vadd.f32 0.0, %v1167
  %v1169 = vpop.f32.mrb[0].mxu0
  %1170 = vmatprep.mubr.bf16.mxu0 0
  %1171 = vmatmul.mubr.bf16.gmra.mrb[0].mxu0 %v1085
  %v1172 = vpop.f32.mrb[0].mxu0
  %v1173 = vadd.f32 0.0, %v1172
  %v1174 = vpop.f32.mrb[0].mxu0
  %v1175 = vpop.f32.mrb[0].mxu0
  %v1176 = vadd.f32 0.0, %v1175
  %v1177 = vpop.f32.mrb[0].mxu0
  %1178 = vmatprep.mubr.bf16.mxu0 0
  %1179 = vmatmul.mubr.bf16.gmra.mrb[0].mxu0 %v1088
  %v1180 = vpop.f32.mrb[0].mxu0
  %v1181 = vadd.f32 0.0, %v1180
  %v1182 = vpop.f32.mrb[0].mxu0
  %v1183 = vpop.f32.mrb[0].mxu0
  %v1184 = vadd.f32 0.0, %v1183
  %v1185 = vpop.f32.mrb[0].mxu0
  %1186 = vdwg.mxu0
  %v1187 = vadd.f32 %v1009, %v1125
  %v1188 = vadd.f32 %v1010, %v1128
  %v1189 = vadd.f32 %v1011, %v1133
  %v1190 = vadd.f32 %v1012, %v1136
  %v1191 = vadd.f32 %v1013, %v1141
  %v1192 = vadd.f32 %v1014, %v1144
  %v1193 = vadd.f32 %v1015, %v1149
  %v1194 = vadd.f32 %v1016, %v1152
  %v1195 = vadd.f32 %v1017, %v1157
  %v1196 = vadd.f32 %v1018, %v1160
  %v1197 = vadd.f32 %v1019, %v1165
  %v1198 = vadd.f32 %v1020, %v1168
  %v1199 = vadd.f32 %v1021, %v1173
  %v1200 = vadd.f32 %v1022, %v1176
  %v1201 = vadd.f32 %v1023, %v1181
  %v1202 = vadd.f32 %v1024, %v1184
  %s1203 = scalar_lea.vmem [#allocation2], 32
  %v1204 = vld [vmem:[%s1203] sm:$0xff]
  %v1205 = vld [vmem:[%s1203 + $0x10] sm:$0xff]
  %v1206 = vld [vmem:[%s1203 + $0x20] sm:$0xff]
  %v1207 = vld [vmem:[%s1203 + $0x30] sm:$0xff]
  %v1208 = vld [vmem:[%s1203 + $0x40] sm:$0xff]
  %v1209 = vld [vmem:[%s1203 + $0x50] sm:$0xff]
  %v1210 = vld [vmem:[%s1203 + $0x60] sm:$0xff]
  %v1211 = vld [vmem:[%s1203 + $0x70] sm:$0xff]
  %v1212 = vld [vmem:[%s1203 + $0xa0] sm:$0xff]
  %v1213 = vld [vmem:[%s1203 + $0xb0] sm:$0xff]
  %v1214 = vld [vmem:[%s1203 + $0xc0] sm:$0xff]
  %v1215 = vld [vmem:[%s1203 + $0xd0] sm:$0xff]
  %v1216 = vld [vmem:[%s1203 + $0xe0] sm:$0xff]
  %v1217 = vld [vmem:[%s1203 + $0xf0] sm:$0xff]
  %v1218 = vld [vmem:[%s1203 + $0x100] sm:$0xff]
  %v1219 = vld [vmem:[%s1203 + $0x110] sm:$0xff]
  %v1220 = vpack.c.bf16 %v1205, %v1204
  %v1221 = vpack.c.bf16 %v1207, %v1206
  %v1222 = vpack.c.bf16 %v1209, %v1208
  %v1223 = vpack.c.bf16 %v1211, %v1210
  %v1224 = vpack.c.bf16 %v1213, %v1212
  %v1225 = vpack.c.bf16 %v1215, %v1214
  %v1226 = vpack.c.bf16 %v1217, %v1216
  %v1227 = vpack.c.bf16 %v1219, %v1218
  %s1228 = scalar_lea.vmem %s3, 96
  %v1229 = vld [vmem:[%s1228] sm:$0xf]
  %v1230 = vld [vmem:[%s1228 + $0x4] sm:$0xf]
  %v1231 = vld [vmem:[%s1228 + $0x8] sm:$0xf]
  %v1232 = vld [vmem:[%s1228 + $0xc] sm:$0xf]
  %v1237 = vunpack.c.l.b16 %v1229
  %v1238 = vunpack.c.l.b16 %v1230
  %v1239 = vunpack.c.l.b16 %v1231
  %v1240 = vunpack.c.l.b16 %v1232
  %v1241 = vpack.c.b16 %v1238, %v1237
  %v1242 = vpack.c.b16 %v1240, %v1239
  %v1246 = vsel %vm99, %v1220, 0
  %v1249 = vsel %vm99, %v1221, 0
  %v1252 = vsel %vm99, %v1222, 0
  %v1255 = vsel %vm99, %v1223, 0
  %v1258 = vsel %vm99, %v1224, 0
  %v1261 = vsel %vm99, %v1225, 0
  %v1264 = vsel %vm99, %v1226, 0
  %v1267 = vsel %vm99, %v1227, 0
  %1269 = vmatprep.subr.bf16.mxu0 0
  %1270 = vmatpush1.bf16.msra.mxu0 %v1241
  %1271 = vmatprep.subr.bf16.mxu0 0
  %1272 = vmatpush1.bf16.msra.mxu0 %v1242
  %1273 = vmatprep.subr.bf16.mxu0 0
  %1274 = vmatpush1.bf16.msra.mxu0 0
  %1275 = vmatprep.subr.bf16.mxu0 0
  %1276 = vmatpush1.bf16.msra.mxu0 0
  %1277 = vmatprep.subr.bf16.mxu0 0
  %1278 = vmatpush1.bf16.msra.mxu0 0
  %1279 = vmatprep.subr.bf16.mxu0 0
  %1280 = vmatpush1.bf16.msra.mxu0 0
  %1281 = vmatprep.subr.bf16.mxu0 0
  %1282 = vmatpush1.bf16.msra.mxu0 0
  %1283 = vmatprep.subr.bf16.mxu0 0
  %1284 = vmatpush1.bf16.msra.mxu0 0
  %1285 = vmatprep.subr.bf16.mxu0 0
  %1286 = vmatpush1.bf16.msra.mxu0 0
  %1287 = vmatprep.subr.bf16.mxu0 0
  %1288 = vmatpush1.bf16.msra.mxu0 0
  %1289 = vmatprep.subr.bf16.mxu0 0
  %1290 = vmatpush1.bf16.msra.mxu0 0
  %1291 = vmatprep.subr.bf16.mxu0 0
  %1292 = vmatpush1.bf16.msra.mxu0 0
  %1293 = vmatprep.subr.bf16.mxu0 0
  %1294 = vmatpush1.bf16.msra.mxu0 0
  %1295 = vmatprep.subr.bf16.mxu0 0
  %1296 = vmatpush1.bf16.msra.mxu0 0
  %1297 = vmatprep.subr.bf16.mxu0 0
  %1298 = vmatpush1.bf16.msra.mxu0 0
  %1299 = vmatprep.subr.bf16.mxu0 0
  %1300 = vmatpush1.bf16.msra.mxu0 0
  %1301 = vmatprep.mubr.bf16.mxu0 0
  %1302 = vmatmul.mubr.bf16.gmra.mrb[0].mxu0 %v1246
  %v1303 = vpop.f32.mrb[0].mxu0
  %v1304 = vadd.f32 0.0, %v1303
  %v1305 = vpop.f32.mrb[0].mxu0
  %v1306 = vpop.f32.mrb[0].mxu0
  %v1307 = vadd.f32 0.0, %v1306
  %v1308 = vpop.f32.mrb[0].mxu0
  %1309 = vmatprep.mubr.bf16.mxu0 0
  %1310 = vmatmul.mubr.bf16.gmra.mrb[0].mxu0 %v1249
  %v1311 = vpop.f32.mrb[0].mxu0
  %v1312 = vadd.f32 0.0, %v1311
  %v1313 = vpop.f32.mrb[0].mxu0
  %v1314 = vpop.f32.mrb[0].mxu0
  %v1315 = vadd.f32 0.0, %v1314
  %v1316 = vpop.f32.mrb[0].mxu0
  %1317 = vmatprep.mubr.bf16.mxu0 0
  %1318 = vmatmul.mubr.bf16.gmra.mrb[0].mxu0 %v1252
  %v1319 = vpop.f32.mrb[0].mxu0
  %v1320 = vadd.f32 0.0, %v1319
  %v1321 = vpop.f32.mrb[0].mxu0
  %v1322 = vpop.f32.mrb[0].mxu0
  %v1323 = vadd.f32 0.0, %v1322
  %v1324 = vpop.f32.mrb[0].mxu0
  %1325 = vmatprep.mubr.bf16.mxu0 0
  %1326 = vmatmul.mubr.bf16.gmra.mrb[0].mxu0 %v1255
  %v1327 = vpop.f32.mrb[0].mxu0
  %v1328 = vadd.f32 0.0, %v1327
  %v1329 = vpop.f32.mrb[0].mxu0
  %v1330 = vpop.f32.mrb[0].mxu0
  %v1331 = vadd.f32 0.0, %v1330
  %v1332 = vpop.f32.mrb[0].mxu0
  %1333 = vmatprep.mubr.bf16.mxu0 0
  %1334 = vmatmul.mubr.bf16.gmra.mrb[0].mxu0 %v1258
  %v1335 = vpop.f32.mrb[0].mxu0
  %v1336 = vadd.f32 0.0, %v1335
  %v1337 = vpop.f32.mrb[0].mxu0
  %v1338 = vpop.f32.mrb[0].mxu0
  %v1339 = vadd.f32 0.0, %v1338
  %v1340 = vpop.f32.mrb[0].mxu0
  %1341 = vmatprep.mubr.bf16.mxu0 0
  %1342 = vmatmul.mubr.bf16.gmra.mrb[0].mxu0 %v1261
  %v1343 = vpop.f32.mrb[0].mxu0
  %v1344 = vadd.f32 0.0, %v1343
  %v1345 = vpop.f32.mrb[0].mxu0
  %v1346 = vpop.f32.mrb[0].mxu0
  %v1347 = vadd.f32 0.0, %v1346
  %v1348 = vpop.f32.mrb[0].mxu0
  %1349 = vmatprep.mubr.bf16.mxu0 0
  %1350 = vmatmul.mubr.bf16.gmra.mrb[0].mxu0 %v1264
  %v1351 = vpop.f32.mrb[0].mxu0
  %v1352 = vadd.f32 0.0, %v1351
  %v1353 = vpop.f32.mrb[0].mxu0
  %v1354 = vpop.f32.mrb[0].mxu0
  %v1355 = vadd.f32 0.0, %v1354
  %v1356 = vpop.f32.mrb[0].mxu0
  %1357 = vmatprep.mubr.bf16.mxu0 0
  %1358 = vmatmul.mubr.bf16.gmra.mrb[0].mxu0 %v1267
  %v1359 = vpop.f32.mrb[0].mxu0
  %v1360 = vadd.f32 0.0, %v1359
  %v1361 = vpop.f32.mrb[0].mxu0
  %v1362 = vpop.f32.mrb[0].mxu0
  %v1363 = vadd.f32 0.0, %v1362
  %v1364 = vpop.f32.mrb[0].mxu0
  %1365 = vdwg.mxu0
  %v1366 = vadd.f32 %v1187, %v1304
  %v1367 = vadd.f32 %v1188, %v1307
  %v1368 = vadd.f32 %v1189, %v1312
  %v1369 = vadd.f32 %v1190, %v1315
  %v1370 = vadd.f32 %v1191, %v1320
  %v1371 = vadd.f32 %v1192, %v1323
  %v1372 = vadd.f32 %v1193, %v1328
  %v1373 = vadd.f32 %v1194, %v1331
  %v1374 = vadd.f32 %v1195, %v1336
  %v1375 = vadd.f32 %v1196, %v1339
  %v1376 = vadd.f32 %v1197, %v1344
  %v1377 = vadd.f32 %v1198, %v1347
  %v1378 = vadd.f32 %v1199, %v1352
  %v1379 = vadd.f32 %v1200, %v1355
  %v1380 = vadd.f32 %v1201, %v1360
  %v1381 = vadd.f32 %v1202, %v1363
  %v1382 = vld [vmem:[%s1203 + $0x1] sm:$0xff]
  %v1383 = vld [vmem:[%s1203 + $0x11] sm:$0xff]
  %v1384 = vld [vmem:[%s1203 + $0x21] sm:$0xff]
  %v1385 = vld [vmem:[%s1203 + $0x31] sm:$0xff]
  %v1386 = vld [vmem:[%s1203 + $0x41] sm:$0xff]
  %v1387 = vld [vmem:[%s1203 + $0x51] sm:$0xff]
  %v1388 = vld [vmem:[%s1203 + $0x61] sm:$0xff]
  %v1389 = vld [vmem:[%s1203 + $0x71] sm:$0xff]
  %v1390 = vld [vmem:[%s1203 + $0xa1] sm:$0xff]
  %v1391 = vld [vmem:[%s1203 + $0xb1] sm:$0xff]
  %v1392 = vld [vmem:[%s1203 + $0xc1] sm:$0xff]
  %v1393 = vld [vmem:[%s1203 + $0xd1] sm:$0xff]
  %v1394 = vld [vmem:[%s1203 + $0xe1] sm:$0xff]
  %v1395 = vld [vmem:[%s1203 + $0xf1] sm:$0xff]
  %v1396 = vld [vmem:[%s1203 + $0x101] sm:$0xff]
  %v1397 = vld [vmem:[%s1203 + $0x111] sm:$0xff]
  %v1398 = vpack.c.bf16 %v1383, %v1382
  %v1399 = vpack.c.bf16 %v1385, %v1384
  %v1400 = vpack.c.bf16 %v1387, %v1386
  %v1401 = vpack.c.bf16 %v1389, %v1388
  %v1402 = vpack.c.bf16 %v1391, %v1390
  %v1403 = vpack.c.bf16 %v1393, %v1392
  %v1404 = vpack.c.bf16 %v1395, %v1394
  %v1405 = vpack.c.bf16 %v1397, %v1396
  %s1406 = scalar_lea.vmem %s3, 112
  %v1407 = vld [vmem:[%s1406] sm:$0xf]
  %v1408 = vld [vmem:[%s1406 + $0x4] sm:$0xf]
  %v1409 = vld [vmem:[%s1406 + $0x8] sm:$0xf]
  %v1410 = vld [vmem:[%s1406 + $0xc] sm:$0xf]
  %v1415 = vunpack.c.l.b16 %v1407
  %v1416 = vunpack.c.l.b16 %v1408
  %v1417 = vunpack.c.l.b16 %v1409
  %v1418 = vunpack.c.l.b16 %v1410
  %v1419 = vpack.c.b16 %v1416, %v1415
  %v1420 = vpack.c.b16 %v1418, %v1417
  %v1424 = vsel %vm99, %v1398, 0
  %v1427 = vsel %vm99, %v1399, 0
  %v1430 = vsel %vm99, %v1400, 0
  %v1433 = vsel %vm99, %v1401, 0
  %v1436 = vsel %vm99, %v1402, 0
  %v1439 = vsel %vm99, %v1403, 0
  %v1442 = vsel %vm99, %v1404, 0
  %v1445 = vsel %vm99, %v1405, 0
  %1447 = vmatprep.subr.bf16.mxu0 0
  %1448 = vmatpush1.bf16.msra.mxu0 %v1419
  %1449 = vmatprep.subr.bf16.mxu0 0
  %1450 = vmatpush1.bf16.msra.mxu0 %v1420
  %1451 = vmatprep.subr.bf16.mxu0 0
  %1452 = vmatpush1.bf16.msra.mxu0 0
  %1453 = vmatprep.subr.bf16.mxu0 0
  %1454 = vmatpush1.bf16.msra.mxu0 0
  %1455 = vmatprep.subr.bf16.mxu0 0
  %1456 = vmatpush1.bf16.msra.mxu0 0
  %1457 = vmatprep.subr.bf16.mxu0 0
  %1458 = vmatpush1.bf16.msra.mxu0 0
  %1459 = vmatprep.subr.bf16.mxu0 0
  %1460 = vmatpush1.bf16.msra.mxu0 0
  %1461 = vmatprep.subr.bf16.mxu0 0
  %1462 = vmatpush1.bf16.msra.mxu0 0
  %1463 = vmatprep.subr.bf16.mxu0 0
  %1464 = vmatpush1.bf16.msra.mxu0 0
  %1465 = vmatprep.subr.bf16.mxu0 0
  %1466 = vmatpush1.bf16.msra.mxu0 0
  %1467 = vmatprep.subr.bf16.mxu0 0
  %1468 = vmatpush1.bf16.msra.mxu0 0
  %1469 = vmatprep.subr.bf16.mxu0 0
  %1470 = vmatpush1.bf16.msra.mxu0 0
  %1471 = vmatprep.subr.bf16.mxu0 0
  %1472 = vmatpush1.bf16.msra.mxu0 0
  %1473 = vmatprep.subr.bf16.mxu0 0
  %1474 = vmatpush1.bf16.msra.mxu0 0
  %1475 = vmatprep.subr.bf16.mxu0 0
  %1476 = vmatpush1.bf16.msra.mxu0 0
  %1477 = vmatprep.subr.bf16.mxu0 0
  %1478 = vmatpush1.bf16.msra.mxu0 0
  %1479 = vmatprep.mubr.bf16.mxu0 0
  %1480 = vmatmul.mubr.bf16.gmra.mrb[0].mxu0 %v1424
  %v1481 = vpop.f32.mrb[0].mxu0
  %v1482 = vadd.f32 0.0, %v1481
  %v1483 = vpop.f32.mrb[0].mxu0
  %v1484 = vpop.f32.mrb[0].mxu0
  %v1485 = vadd.f32 0.0, %v1484
  %v1486 = vpop.f32.mrb[0].mxu0
  %1487 = vmatprep.mubr.bf16.mxu0 0
  %1488 = vmatmul.mubr.bf16.gmra.mrb[0].mxu0 %v1427
  %v1489 = vpop.f32.mrb[0].mxu0
  %v1490 = vadd.f32 0.0, %v1489
  %v1491 = vpop.f32.mrb[0].mxu0
  %v1492 = vpop.f32.mrb[0].mxu0
  %v1493 = vadd.f32 0.0, %v1492
  %v1494 = vpop.f32.mrb[0].mxu0
  %1495 = vmatprep.mubr.bf16.mxu0 0
  %1496 = vmatmul.mubr.bf16.gmra.mrb[0].mxu0 %v1430
  %v1497 = vpop.f32.mrb[0].mxu0
  %v1498 = vadd.f32 0.0, %v1497
  %v1499 = vpop.f32.mrb[0].mxu0
  %v1500 = vpop.f32.mrb[0].mxu0
  %v1501 = vadd.f32 0.0, %v1500
  %v1502 = vpop.f32.mrb[0].mxu0
  %1503 = vmatprep.mubr.bf16.mxu0 0
  %1504 = vmatmul.mubr.bf16.gmra.mrb[0].mxu0 %v1433
  %v1505 = vpop.f32.mrb[0].mxu0
  %v1506 = vadd.f32 0.0, %v1505
  %v1507 = vpop.f32.mrb[0].mxu0
  %v1508 = vpop.f32.mrb[0].mxu0
  %v1509 = vadd.f32 0.0, %v1508
  %v1510 = vpop.f32.mrb[0].mxu0
  %1511 = vmatprep.mubr.bf16.mxu0 0
  %1512 = vmatmul.mubr.bf16.gmra.mrb[0].mxu0 %v1436
  %v1513 = vpop.f32.mrb[0].mxu0
  %v1514 = vadd.f32 0.0, %v1513
  %v1515 = vpop.f32.mrb[0].mxu0
  %v1516 = vpop.f32.mrb[0].mxu0
  %v1517 = vadd.f32 0.0, %v1516
  %v1518 = vpop.f32.mrb[0].mxu0
  %1519 = vmatprep.mubr.bf16.mxu0 0
  %1520 = vmatmul.mubr.bf16.gmra.mrb[0].mxu0 %v1439
  %v1521 = vpop.f32.mrb[0].mxu0
  %v1522 = vadd.f32 0.0, %v1521
  %v1523 = vpop.f32.mrb[0].mxu0
  %v1524 = vpop.f32.mrb[0].mxu0
  %v1525 = vadd.f32 0.0, %v1524
  %v1526 = vpop.f32.mrb[0].mxu0
  %1527 = vmatprep.mubr.bf16.mxu0 0
  %1528 = vmatmul.mubr.bf16.gmra.mrb[0].mxu0 %v1442
  %v1529 = vpop.f32.mrb[0].mxu0
  %v1530 = vadd.f32 0.0, %v1529
  %v1531 = vpop.f32.mrb[0].mxu0
  %v1532 = vpop.f32.mrb[0].mxu0
  %v1533 = vadd.f32 0.0, %v1532
  %v1534 = vpop.f32.mrb[0].mxu0
  %1535 = vmatprep.mubr.bf16.mxu0 0
  %1536 = vmatmul.mubr.bf16.gmra.mrb[0].mxu0 %v1445
  %v1537 = vpop.f32.mrb[0].mxu0
  %v1538 = vadd.f32 0.0, %v1537
  %v1539 = vpop.f32.mrb[0].mxu0
  %v1540 = vpop.f32.mrb[0].mxu0
  %v1541 = vadd.f32 0.0, %v1540
  %v1542 = vpop.f32.mrb[0].mxu0
  %1543 = vdwg.mxu0
  %v1544 = vadd.f32 %v1366, %v1482
  %v1545 = vadd.f32 %v1367, %v1485
  %v1546 = vadd.f32 %v1368, %v1490
  %v1547 = vadd.f32 %v1369, %v1493
  %v1548 = vadd.f32 %v1370, %v1498
  %v1549 = vadd.f32 %v1371, %v1501
  %v1550 = vadd.f32 %v1372, %v1506
  %v1551 = vadd.f32 %v1373, %v1509
  %v1552 = vadd.f32 %v1374, %v1514
  %v1553 = vadd.f32 %v1375, %v1517
  %v1554 = vadd.f32 %v1376, %v1522
  %v1555 = vadd.f32 %v1377, %v1525
  %v1556 = vadd.f32 %v1378, %v1530
  %v1557 = vadd.f32 %v1379, %v1533
  %v1558 = vadd.f32 %v1380, %v1538
  %v1559 = vadd.f32 %v1381, %v1541
  %v1560 = vld [vmem:[%s1203 + $0x2] sm:$0xff]
  %v1561 = vld [vmem:[%s1203 + $0x12] sm:$0xff]
  %v1562 = vld [vmem:[%s1203 + $0x22] sm:$0xff]
  %v1563 = vld [vmem:[%s1203 + $0x32] sm:$0xff]
  %v1564 = vld [vmem:[%s1203 + $0x42] sm:$0xff]
  %v1565 = vld [vmem:[%s1203 + $0x52] sm:$0xff]
  %v1566 = vld [vmem:[%s1203 + $0x62] sm:$0xff]
  %v1567 = vld [vmem:[%s1203 + $0x72] sm:$0xff]
  %v1568 = vld [vmem:[%s1203 + $0xa2] sm:$0xff]
  %v1569 = vld [vmem:[%s1203 + $0xb2] sm:$0xff]
  %v1570 = vld [vmem:[%s1203 + $0xc2] sm:$0xff]
  %v1571 = vld [vmem:[%s1203 + $0xd2] sm:$0xff]
  %v1572 = vld [vmem:[%s1203 + $0xe2] sm:$0xff]
  %v1573 = vld [vmem:[%s1203 + $0xf2] sm:$0xff]
  %v1574 = vld [vmem:[%s1203 + $0x102] sm:$0xff]
  %v1575 = vld [vmem:[%s1203 + $0x112] sm:$0xff]
  %v1576 = vpack.c.bf16 %v1561, %v1560
  %v1577 = vpack.c.bf16 %v1563, %v1562
  %v1578 = vpack.c.bf16 %v1565, %v1564
  %v1579 = vpack.c.bf16 %v1567, %v1566
  %v1580 = vpack.c.bf16 %v1569, %v1568
  %v1581 = vpack.c.bf16 %v1571, %v1570
  %v1582 = vpack.c.bf16 %v1573, %v1572
  %v1583 = vpack.c.bf16 %v1575, %v1574
  %s1584 = scalar_lea.vmem %s3, 128
  %v1585 = vld [vmem:[%s1584] sm:$0xf]
  %v1586 = vld [vmem:[%s1584 + $0x4] sm:$0xf]
  %v1587 = vld [vmem:[%s1584 + $0x8] sm:$0xf]
  %v1588 = vld [vmem:[%s1584 + $0xc] sm:$0xf]
  %v1593 = vunpack.c.l.b16 %v1585
  %v1594 = vunpack.c.l.b16 %v1586
  %v1595 = vunpack.c.l.b16 %v1587
  %v1596 = vunpack.c.l.b16 %v1588
  %v1597 = vpack.c.b16 %v1594, %v1593
  %v1598 = vpack.c.b16 %v1596, %v1595
  %v1602 = vsel %vm99, %v1576, 0
  %v1605 = vsel %vm99, %v1577, 0
  %v1608 = vsel %vm99, %v1578, 0
  %v1611 = vsel %vm99, %v1579, 0
  %v1614 = vsel %vm99, %v1580, 0
  %v1617 = vsel %vm99, %v1581, 0
  %v1620 = vsel %vm99, %v1582, 0
  %v1623 = vsel %vm99, %v1583, 0
  %1625 = vmatprep.subr.bf16.mxu0 0
  %1626 = vmatpush1.bf16.msra.mxu0 %v1597
  %1627 = vmatprep.subr.bf16.mxu0 0
  %1628 = vmatpush1.bf16.msra.mxu0 %v1598
  %1629 = vmatprep.subr.bf16.mxu0 0
  %1630 = vmatpush1.bf16.msra.mxu0 0
  %1631 = vmatprep.subr.bf16.mxu0 0
  %1632 = vmatpush1.bf16.msra.mxu0 0
  %1633 = vmatprep.subr.bf16.mxu0 0
  %1634 = vmatpush1.bf16.msra.mxu0 0
  %1635 = vmatprep.subr.bf16.mxu0 0
  %1636 = vmatpush1.bf16.msra.mxu0 0
  %1637 = vmatprep.subr.bf16.mxu0 0
  %1638 = vmatpush1.bf16.msra.mxu0 0
  %1639 = vmatprep.subr.bf16.mxu0 0
  %1640 = vmatpush1.bf16.msra.mxu0 0
  %1641 = vmatprep.subr.bf16.mxu0 0
  %1642 = vmatpush1.bf16.msra.mxu0 0
  %1643 = vmatprep.subr.bf16.mxu0 0
  %1644 = vmatpush1.bf16.msra.mxu0 0
  %1645 = vmatprep.subr.bf16.mxu0 0
  %1646 = vmatpush1.bf16.msra.mxu0 0
  %1647 = vmatprep.subr.bf16.mxu0 0
  %1648 = vmatpush1.bf16.msra.mxu0 0
  %1649 = vmatprep.subr.bf16.mxu0 0
  %1650 = vmatpush1.bf16.msra.mxu0 0
  %1651 = vmatprep.subr.bf16.mxu0 0
  %1652 = vmatpush1.bf16.msra.mxu0 0
  %1653 = vmatprep.subr.bf16.mxu0 0
  %1654 = vmatpush1.bf16.msra.mxu0 0
  %1655 = vmatprep.subr.bf16.mxu0 0
  %1656 = vmatpush1.bf16.msra.mxu0 0
  %1657 = vmatprep.mubr.bf16.mxu0 0
  %1658 = vmatmul.mubr.bf16.gmra.mrb[0].mxu0 %v1602
  %v1659 = vpop.f32.mrb[0].mxu0
  %v1660 = vadd.f32 0.0, %v1659
  %v1661 = vpop.f32.mrb[0].mxu0
  %v1662 = vpop.f32.mrb[0].mxu0
  %v1663 = vadd.f32 0.0, %v1662
  %v1664 = vpop.f32.mrb[0].mxu0
  %1665 = vmatprep.mubr.bf16.mxu0 0
  %1666 = vmatmul.mubr.bf16.gmra.mrb[0].mxu0 %v1605
  %v1667 = vpop.f32.mrb[0].mxu0
  %v1668 = vadd.f32 0.0, %v1667
  %v1669 = vpop.f32.mrb[0].mxu0
  %v1670 = vpop.f32.mrb[0].mxu0
  %v1671 = vadd.f32 0.0, %v1670
  %v1672 = vpop.f32.mrb[0].mxu0
  %1673 = vmatprep.mubr.bf16.mxu0 0
  %1674 = vmatmul.mubr.bf16.gmra.mrb[0].mxu0 %v1608
  %v1675 = vpop.f32.mrb[0].mxu0
  %v1676 = vadd.f32 0.0, %v1675
  %v1677 = vpop.f32.mrb[0].mxu0
  %v1678 = vpop.f32.mrb[0].mxu0
  %v1679 = vadd.f32 0.0, %v1678
  %v1680 = vpop.f32.mrb[0].mxu0
  %1681 = vmatprep.mubr.bf16.mxu0 0
  %1682 = vmatmul.mubr.bf16.gmra.mrb[0].mxu0 %v1611
  %v1683 = vpop.f32.mrb[0].mxu0
  %v1684 = vadd.f32 0.0, %v1683
  %v1685 = vpop.f32.mrb[0].mxu0
  %v1686 = vpop.f32.mrb[0].mxu0
  %v1687 = vadd.f32 0.0, %v1686
  %v1688 = vpop.f32.mrb[0].mxu0
  %1689 = vmatprep.mubr.bf16.mxu0 0
  %1690 = vmatmul.mubr.bf16.gmra.mrb[0].mxu0 %v1614
  %v1691 = vpop.f32.mrb[0].mxu0
  %v1692 = vadd.f32 0.0, %v1691
  %v1693 = vpop.f32.mrb[0].mxu0
  %v1694 = vpop.f32.mrb[0].mxu0
  %v1695 = vadd.f32 0.0, %v1694
  %v1696 = vpop.f32.mrb[0].mxu0
  %1697 = vmatprep.mubr.bf16.mxu0 0
  %1698 = vmatmul.mubr.bf16.gmra.mrb[0].mxu0 %v1617
  %v1699 = vpop.f32.mrb[0].mxu0
  %v1700 = vadd.f32 0.0, %v1699
  %v1701 = vpop.f32.mrb[0].mxu0
  %v1702 = vpop.f32.mrb[0].mxu0
  %v1703 = vadd.f32 0.0, %v1702
  %v1704 = vpop.f32.mrb[0].mxu0
  %1705 = vmatprep.mubr.bf16.mxu0 0
  %1706 = vmatmul.mubr.bf16.gmra.mrb[0].mxu0 %v1620
  %v1707 = vpop.f32.mrb[0].mxu0
  %v1708 = vadd.f32 0.0, %v1707
  %v1709 = vpop.f32.mrb[0].mxu0
  %v1710 = vpop.f32.mrb[0].mxu0
  %v1711 = vadd.f32 0.0, %v1710
  %v1712 = vpop.f32.mrb[0].mxu0
  %1713 = vmatprep.mubr.bf16.mxu0 0
  %1714 = vmatmul.mubr.bf16.gmra.mrb[0].mxu0 %v1623
  %v1715 = vpop.f32.mrb[0].mxu0
  %v1716 = vadd.f32 0.0, %v1715
  %v1717 = vpop.f32.mrb[0].mxu0
  %v1718 = vpop.f32.mrb[0].mxu0
  %v1719 = vadd.f32 0.0, %v1718
  %v1720 = vpop.f32.mrb[0].mxu0
  %1721 = vdwg.mxu0
  %v1722 = vadd.f32 %v1544, %v1660
  %v1723 = vadd.f32 %v1545, %v1663
  %v1724 = vadd.f32 %v1546, %v1668
  %v1725 = vadd.f32 %v1547, %v1671
  %v1726 = vadd.f32 %v1548, %v1676
  %v1727 = vadd.f32 %v1549, %v1679
  %v1728 = vadd.f32 %v1550, %v1684
  %v1729 = vadd.f32 %v1551, %v1687
  %v1730 = vadd.f32 %v1552, %v1692
  %v1731 = vadd.f32 %v1553, %v1695
  %v1732 = vadd.f32 %v1554, %v1700
  %v1733 = vadd.f32 %v1555, %v1703
  %v1734 = vadd.f32 %v1556, %v1708
  %v1735 = vadd.f32 %v1557, %v1711
  %v1736 = vadd.f32 %v1558, %v1716
  %v1737 = vadd.f32 %v1559, %v1719
  %1738 = vst.msk [vmem:[%s4] sm:$0xff] %vm99, %v1722
  %1739 = vst.msk [vmem:[%s4 + $0x8] sm:$0xff] %vm99, %v1723
  %1740 = vst.msk [vmem:[%s4 + $0x10] sm:$0xff] %vm99, %v1724
  %1741 = vst.msk [vmem:[%s4 + $0x18] sm:$0xff] %vm99, %v1725
  %1742 = vst.msk [vmem:[%s4 + $0x20] sm:$0xff] %vm99, %v1726
  %1743 = vst.msk [vmem:[%s4 + $0x28] sm:$0xff] %vm99, %v1727
  %1744 = vst.msk [vmem:[%s4 + $0x30] sm:$0xff] %vm99, %v1728
  %1745 = vst.msk [vmem:[%s4 + $0x38] sm:$0xff] %vm99, %v1729
  %1746 = vst.msk [vmem:[%s4 + $0x40] sm:$0xff] %vm99, %v1730
  %1747 = vst.msk [vmem:[%s4 + $0x48] sm:$0xff] %vm99, %v1731
  %1748 = vst.msk [vmem:[%s4 + $0x50] sm:$0xff] %vm99, %v1732
  %1749 = vst.msk [vmem:[%s4 + $0x58] sm:$0xff] %vm99, %v1733
  %1750 = vst.msk [vmem:[%s4 + $0x60] sm:$0xff] %vm99, %v1734
  %1751 = vst.msk [vmem:[%s4 + $0x68] sm:$0xff] %vm99, %v1735
  %1752 = vst.msk [vmem:[%s4 + $0x70] sm:$0xff] %vm99, %v1736
  %1753 = vst.msk [vmem:[%s4 + $0x78] sm:$0xff] %vm99, %v1737
  %v1754 = vsel %vm99, %v1722, 0.0
  %v1755 = vsel %vm99, %v1723, 0.0
  %v1756 = vadd.f32 %v1754, %v1755
  %v1757 = vsel %vm99, %v1724, 0.0
  %v1758 = vadd.f32 %v1756, %v1757
  %v1759 = vsel %vm99, %v1725, 0.0
  %v1760 = vadd.f32 %v1758, %v1759
  %v1761 = vsel %vm99, %v1726, 0.0
  %v1762 = vadd.f32 %v1760, %v1761
  %v1763 = vsel %vm99, %v1727, 0.0
  %v1764 = vadd.f32 %v1762, %v1763
  %v1765 = vsel %vm99, %v1728, 0.0
  %v1766 = vadd.f32 %v1764, %v1765
  %v1767 = vsel %vm99, %v1729, 0.0
  %v1768 = vadd.f32 %v1766, %v1767
  %v1769 = vsel %vm99, %v1730, 0.0
  %v1770 = vadd.f32 %v1768, %v1769
  %v1771 = vsel %vm99, %v1731, 0.0
  %v1772 = vadd.f32 %v1770, %v1771
  %v1773 = vsel %vm99, %v1732, 0.0
  %v1774 = vadd.f32 %v1772, %v1773
  %v1775 = vsel %vm99, %v1733, 0.0
  %v1776 = vadd.f32 %v1774, %v1775
  %v1777 = vsel %vm99, %v1734, 0.0
  %v1778 = vadd.f32 %v1776, %v1777
  %v1779 = vsel %vm99, %v1735, 0.0
  %v1780 = vadd.f32 %v1778, %v1779
  %v1781 = vsel %vm99, %v1736, 0.0
  %v1782 = vadd.f32 %v1780, %v1781
  %v1783 = vsel %vm99, %v1737, 0.0
  %v1784 = vadd.f32 %v1782, %v1783
  %v1785 = vrot.slane %v1784, 4
  %v1786 = vadd.f32 %v1784, %v1785
  %v1787 = vrot.slane %v1786, 2
  %v1788 = vadd.f32 %v1786, %v1787
  %v1789 = vrot.slane %v1788, 1
  %v1790 = vadd.f32 %v1788, %v1789
  %1791 = vst.msk [vmem:[%s5] sm:$0x1] %vm110, %v1790
  %v1792 = vmul.f32 %v1722, %v1722
  %v1793 = vmul.f32 %v1723, %v1723
  %v1794 = vmul.f32 %v1724, %v1724
  %v1795 = vmul.f32 %v1725, %v1725
  %v1796 = vmul.f32 %v1726, %v1726
  %v1797 = vmul.f32 %v1727, %v1727
  %v1798 = vmul.f32 %v1728, %v1728
  %v1799 = vmul.f32 %v1729, %v1729
  %v1800 = vmul.f32 %v1730, %v1730
  %v1801 = vmul.f32 %v1731, %v1731
  %v1802 = vmul.f32 %v1732, %v1732
  %v1803 = vmul.f32 %v1733, %v1733
  %v1804 = vmul.f32 %v1734, %v1734
  %v1805 = vmul.f32 %v1735, %v1735
  %v1806 = vmul.f32 %v1736, %v1736
  %v1807 = vmul.f32 %v1737, %v1737
  %v1808 = vsel %vm99, %v1792, 0.0
  %v1809 = vsel %vm99, %v1793, 0.0
  %v1810 = vadd.f32 %v1808, %v1809
  %v1811 = vsel %vm99, %v1794, 0.0
  %v1812 = vadd.f32 %v1810, %v1811
  %v1813 = vsel %vm99, %v1795, 0.0
  %v1814 = vadd.f32 %v1812, %v1813
  %v1815 = vsel %vm99, %v1796, 0.0
  %v1816 = vadd.f32 %v1814, %v1815
  %v1817 = vsel %vm99, %v1797, 0.0
  %v1818 = vadd.f32 %v1816, %v1817
  %v1819 = vsel %vm99, %v1798, 0.0
  %v1820 = vadd.f32 %v1818, %v1819
  %v1821 = vsel %vm99, %v1799, 0.0
  %v1822 = vadd.f32 %v1820, %v1821
  %v1823 = vsel %vm99, %v1800, 0.0
  %v1824 = vadd.f32 %v1822, %v1823
  %v1825 = vsel %vm99, %v1801, 0.0
  %v1826 = vadd.f32 %v1824, %v1825
  %v1827 = vsel %vm99, %v1802, 0.0
  %v1828 = vadd.f32 %v1826, %v1827
  %v1829 = vsel %vm99, %v1803, 0.0
  %v1830 = vadd.f32 %v1828, %v1829
  %v1831 = vsel %vm99, %v1804, 0.0
  %v1832 = vadd.f32 %v1830, %v1831
  %v1833 = vsel %vm99, %v1805, 0.0
  %v1834 = vadd.f32 %v1832, %v1833
  %v1835 = vsel %vm99, %v1806, 0.0
  %v1836 = vadd.f32 %v1834, %v1835
  %v1837 = vsel %vm99, %v1807, 0.0
  %v1838 = vadd.f32 %v1836, %v1837
  %v1839 = vrot.slane %v1838, 4
  %v1840 = vadd.f32 %v1838, %v1839
  %v1841 = vrot.slane %v1840, 2
  %v1842 = vadd.f32 %v1840, %v1841
  %v1843 = vrot.slane %v1842, 1
  %v1844 = vadd.f32 %v1842, %v1843
  %1845 = vst.msk [vmem:[%s6] sm:$0x1] %vm110, %v1844
  // Predicated region
  $region18: #{resnet_basicblock_forward.4} parent=0 // pred_check
    _
  $region19: #{resnet_basicblock_forward.4} parent=0 // pred_check_branch
    %1847 = sbr.rel (0) target = $region21
  $region20: #{resnet_basicblock_forward.4} parent=0 // pred_region
    _
  $region21: #{resnet_basicblock_forward.4} parent=0 // pred_fallthru
    _
  // Predicated region
  $region22: #{resnet_basicblock_forward.4} parent=0 // pred_check
    _
  $region23: #{resnet_basicblock_forward.4} parent=0 // pred_check_branch
    %1849 = sbr.rel (0) target = $region25
  $region24: #{resnet_basicblock_forward.4} parent=0 // pred_region
    _
  $region25: #{resnet_basicblock_forward.4} parent=0 // pred_fallthru
    _
  // Predicated region
  $region26: #{resnet_basicblock_forward.4} parent=0 // pred_check
    _
  $region27: #{resnet_basicblock_forward.4} parent=0 // pred_check_branch
    %1851 = sbr.rel (0) target = $region29
  $region28: #{resnet_basicblock_forward.4} parent=0 // pred_region
    _
  $region29: #{resnet_basicblock_forward.4} parent=0 // pred_fallthru
    _
  // Predicated region
  $region30: #{resnet_basicblock_forward.4} parent=0 // pred_check
    _
  $region31: #{resnet_basicblock_forward.4} parent=0 // pred_check_branch
    %1853 = sbr.rel (0) target = $region33
  $region32: #{resnet_basicblock_forward.4} parent=0 // pred_region
    _
  $region33: #{resnet_basicblock_forward.4} parent=0 // pred_fallthru
    _
  // Predicated region
  $region34: #{resnet_basicblock_forward.4} parent=0 // pred_check
    _
  $region35: #{resnet_basicblock_forward.4} parent=0 // pred_check_branch
    %1855 = sbr.rel (0) target = $region37
  $region36: #{resnet_basicblock_forward.4} parent=0 // pred_region
    _
  $region37: #{resnet_basicblock_forward.4} parent=0 // pred_fallthru
    _
  // Predicated region
  $region38: #{resnet_basicblock_forward.4} parent=0 // pred_check
    _
  $region39: #{resnet_basicblock_forward.4} parent=0 // pred_check_branch
    %1857 = sbr.rel (0) target = $region41
  $region40: #{resnet_basicblock_forward.4} parent=0 // pred_region
    _
  $region41: #{resnet_basicblock_forward.4} parent=0 // pred_fallthru
    _

// kernel: resnet_basicblock_forward.3
$region0: #{resnet_basicblock_forward.3}
  #allocation0 [shape = 'u32[]', space=smem, size = 0x4, offset = 0x4, fixed_abs, tag = 'smem constant byte address 0x4 - core index']
  #allocation1 [shape = 'u32[144,128]{1,0:T(1,128)}', space=vmem, size = 0x12000, scoped, tag = 'internal scratch']
  %s0 = inlined_call_operand.vmem [shape: f32[2,9,9,16], index: 0, kind: input, shape index: {}]
  %s1 = inlined_call_operand.vmem [shape: f32[2,9,9,16], index: 1, kind: input, shape index: {}]
  %s2 = inlined_call_operand.vmem [shape: f32[2,9,9,16], index: 2, kind: input, shape index: {}]
  %s3 = inlined_call_operand.vmem [shape: f32[2,9,9,16], index: 3, kind: input, shape index: {}]
  %s4 = inlined_call_operand.vmem [shape: bf16[9,16,32], index: 4, kind: input, shape index: {}]
  %s5 = inlined_call_operand.vmem [shape: bf16[16,32], index: 5, kind: input, shape index: {}]
  %s6 = inlined_call_operand.vmem [shape: f32[2,8,8,32], index: 6, kind: output, shape index: {0}]
  %s7 = inlined_call_operand.vmem [shape: f32[2,8,8,32], index: 7, kind: output, shape index: {1}]
  %s8 = inlined_call_operand.vmem [shape: f32[1,1,32], index: 8, kind: output, shape index: {2}]
  %s9 = inlined_call_operand.vmem [shape: f32[1,1,32], index: 9, kind: output, shape index: {3}]
  %10 = xla_tuple %s6, %s7, %s8, %s9
  %s11 = sld [smem:[#allocation0]]
  $region58: #{resnet_basicblock_forward.3} parent=0
    _
  %s13 = ssub.s32 1, %s11
  %s14 = scalar_select 0, %s13, %s11
  // Predicated region
  $region2: #{resnet_basicblock_forward.3} parent=0 // pred_check
    _
  $region3: #{resnet_basicblock_forward.3} parent=0 // pred_check_branch
    %16 = sbr.rel (0) target = $region5
  $region4: #{resnet_basicblock_forward.3} parent=0 // pred_region
    _
  $region5: #{resnet_basicblock_forward.3} parent=0 // pred_fallthru
    _
  // Predicated region
  $region6: #{resnet_basicblock_forward.3} parent=0 // pred_check
    _
  $region7: #{resnet_basicblock_forward.3} parent=0 // pred_check_branch
    %18 = sbr.rel (0) target = $region9
  $region8: #{resnet_basicblock_forward.3} parent=0 // pred_region
    _
  $region9: #{resnet_basicblock_forward.3} parent=0 // pred_fallthru
    _
  // Predicated region
  $region10: #{resnet_basicblock_forward.3} parent=0 // pred_check
    _
  $region11: #{resnet_basicblock_forward.3} parent=0 // pred_check_branch
    %20 = sbr.rel (0) target = $region13
  $region12: #{resnet_basicblock_forward.3} parent=0 // pred_region
    _
  $region13: #{resnet_basicblock_forward.3} parent=0 // pred_fallthru
    _
  // Predicated region
  $region14: #{resnet_basicblock_forward.3} parent=0 // pred_check
    _
  $region15: #{resnet_basicblock_forward.3} parent=0 // pred_check_branch
    %22 = sbr.rel (0) target = $region17
  $region16: #{resnet_basicblock_forward.3} parent=0 // pred_region
    _
  $region17: #{resnet_basicblock_forward.3} parent=0 // pred_fallthru
    _
  // Predicated region
  $region18: #{resnet_basicblock_forward.3} parent=0 // pred_check
    _
  $region19: #{resnet_basicblock_forward.3} parent=0 // pred_check_branch
    %24 = sbr.rel (0) target = $region21
  $region20: #{resnet_basicblock_forward.3} parent=0 // pred_region
    _
  $region21: #{resnet_basicblock_forward.3} parent=0 // pred_fallthru
    _
  // Predicated region
  $region22: #{resnet_basicblock_forward.3} parent=0 // pred_check
    _
  $region23: #{resnet_basicblock_forward.3} parent=0 // pred_check_branch
    %26 = sbr.rel (0) target = $region25
  $region24: #{resnet_basicblock_forward.3} parent=0 // pred_region
    _
  $region25: #{resnet_basicblock_forward.3} parent=0 // pred_fallthru
    _
  %v28 = vld [vmem:[%s0] sm:$0xff]
  %v29 = vld [vmem:[%s0 + $0x8] sm:$0x1]
  %v30 = vld [vmem:[%s0 + $0x10] sm:$0xff]
  %v31 = vld [vmem:[%s0 + $0x18] sm:$0x1]
  %v32 = vld [vmem:[%s0 + $0x20] sm:$0xff]
  %v33 = vld [vmem:[%s0 + $0x28] sm:$0x1]
  %v34 = vld [vmem:[%s0 + $0x30] sm:$0xff]
  %v35 = vld [vmem:[%s0 + $0x38] sm:$0x1]
  %v36 = vld [vmem:[%s0 + $0x40] sm:$0xff]
  %v37 = vld [vmem:[%s0 + $0x48] sm:$0x1]
  %v38 = vld [vmem:[%s0 + $0x50] sm:$0xff]
  %v39 = vld [vmem:[%s0 + $0x58] sm:$0x1]
  %v40 = vld [vmem:[%s0 + $0x60] sm:$0xff]
  %v41 = vld [vmem:[%s0 + $0x68] sm:$0x1]
  %v42 = vld [vmem:[%s0 + $0x70] sm:$0xff]
  %v43 = vld [vmem:[%s0 + $0x78] sm:$0x1]
  %v44 = vld [vmem:[%s0 + $0x80] sm:$0xff]
  %v45 = vld [vmem:[%s0 + $0x88] sm:$0x1]
  %v46 = vld [vmem:[%s0 + $0x90] sm:$0xff]
  %v47 = vld [vmem:[%s0 + $0x98] sm:$0x1]
  %v48 = vld [vmem:[%s0 + $0xa0] sm:$0xff]
  %v49 = vld [vmem:[%s0 + $0xa8] sm:$0x1]
  %v50 = vld [vmem:[%s0 + $0xb0] sm:$0xff]
  %v51 = vld [vmem:[%s0 + $0xb8] sm:$0x1]
  %v52 = vld [vmem:[%s0 + $0xc0] sm:$0xff]
  %v53 = vld [vmem:[%s0 + $0xc8] sm:$0x1]
  %v54 = vld [vmem:[%s0 + $0xd0] sm:$0xff]
  %v55 = vld [vmem:[%s0 + $0xd8] sm:$0x1]
  %v56 = vld [vmem:[%s0 + $0xe0] sm:$0xff]
  %v57 = vld [vmem:[%s0 + $0xe8] sm:$0x1]
  %v58 = vld [vmem:[%s0 + $0xf0] sm:$0xff]
  %v59 = vld [vmem:[%s0 + $0xf8] sm:$0x1]
  %v60 = vld [vmem:[%s0 + $0x100] sm:$0xff]
  %v61 = vld [vmem:[%s0 + $0x108] sm:$0x1]
  %v62 = vld [vmem:[%s0 + $0x110] sm:$0xff]
  %v63 = vld [vmem:[%s0 + $0x118] sm:$0x1]
  %v64 = vld [vmem:[%s1] sm:$0xff]
  %v65 = vld [vmem:[%s1 + $0x10] sm:$0xff]
  %v66 = vld [vmem:[%s1 + $0x20] sm:$0xff]
  %v67 = vld [vmem:[%s1 + $0x30] sm:$0xff]
  %v68 = vld [vmem:[%s1 + $0x40] sm:$0xff]
  %v69 = vld [vmem:[%s1 + $0x50] sm:$0xff]
  %v70 = vld [vmem:[%s1 + $0x60] sm:$0xff]
  %v71 = vld [vmem:[%s1 + $0x70] sm:$0xff]
  %v72 = vld [vmem:[%s1 + $0x80] sm:$0xff]
  %v73 = vld [vmem:[%s1 + $0x90] sm:$0xff]
  %v74 = vld [vmem:[%s1 + $0xa0] sm:$0xff]
  %v75 = vld [vmem:[%s1 + $0xb0] sm:$0xff]
  %v76 = vld [vmem:[%s1 + $0xc0] sm:$0xff]
  %v77 = vld [vmem:[%s1 + $0xd0] sm:$0xff]
  %v78 = vld [vmem:[%s1 + $0xe0] sm:$0xff]
  %v79 = vld [vmem:[%s1 + $0xf0] sm:$0xff]
  %v80 = vld [vmem:[%s1 + $0x100] sm:$0xff]
  %v81 = vld [vmem:[%s1 + $0x110] sm:$0xff]
  %v82 = vld [vmem:[%s2] sm:$0xff]
  %v83 = vld [vmem:[%s2 + $0x8] sm:$0x1]
  %v84 = vld [vmem:[%s2 + $0x10] sm:$0xff]
  %v85 = vld [vmem:[%s2 + $0x18] sm:$0x1]
  %v86 = vld [vmem:[%s2 + $0x20] sm:$0xff]
  %v87 = vld [vmem:[%s2 + $0x28] sm:$0x1]
  %v88 = vld [vmem:[%s2 + $0x30] sm:$0xff]
  %v89 = vld [vmem:[%s2 + $0x38] sm:$0x1]
  %v90 = vld [vmem:[%s2 + $0x40] sm:$0xff]
  %v91 = vld [vmem:[%s2 + $0x48] sm:$0x1]
  %v92 = vld [vmem:[%s2 + $0x50] sm:$0xff]
  %v93 = vld [vmem:[%s2 + $0x58] sm:$0x1]
  %v94 = vld [vmem:[%s2 + $0x60] sm:$0xff]
  %v95 = vld [vmem:[%s2 + $0x68] sm:$0x1]
  %v96 = vld [vmem:[%s2 + $0x70] sm:$0xff]
  %v97 = vld [vmem:[%s2 + $0x78] sm:$0x1]
  %v98 = vld [vmem:[%s2 + $0x90] sm:$0xff]
  %v99 = vld [vmem:[%s2 + $0x98] sm:$0x1]
  %v100 = vld [vmem:[%s2 + $0xa0] sm:$0xff]
  %v101 = vld [vmem:[%s2 + $0xa8] sm:$0x1]
  %v102 = vld [vmem:[%s2 + $0xb0] sm:$0xff]
  %v103 = vld [vmem:[%s2 + $0xb8] sm:$0x1]
  %v104 = vld [vmem:[%s2 + $0xc0] sm:$0xff]
  %v105 = vld [vmem:[%s2 + $0xc8] sm:$0x1]
  %v106 = vld [vmem:[%s2 + $0xd0] sm:$0xff]
  %v107 = vld [vmem:[%s2 + $0xd8] sm:$0x1]
  %v108 = vld [vmem:[%s2 + $0xe0] sm:$0xff]
  %v109 = vld [vmem:[%s2 + $0xe8] sm:$0x1]
  %v110 = vld [vmem:[%s2 + $0xf0] sm:$0xff]
  %v111 = vld [vmem:[%s2 + $0xf8] sm:$0x1]
  %v112 = vld [vmem:[%s2 + $0x100] sm:$0xff]
  %v113 = vld [vmem:[%s2 + $0x108] sm:$0x1]
  %v114 = vld [vmem:[%s3] sm:$0xff]
  %v115 = vld [vmem:[%s3 + $0x10] sm:$0xff]
  %v116 = vld [vmem:[%s3 + $0x20] sm:$0xff]
  %v117 = vld [vmem:[%s3 + $0x30] sm:$0xff]
  %v118 = vld [vmem:[%s3 + $0x40] sm:$0xff]
  %v119 = vld [vmem:[%s3 + $0x50] sm:$0xff]
  %v120 = vld [vmem:[%s3 + $0x60] sm:$0xff]
  %v121 = vld [vmem:[%s3 + $0x70] sm:$0xff]
  %v122 = vld [vmem:[%s3 + $0x90] sm:$0xff]
  %v123 = vld [vmem:[%s3 + $0xa0] sm:$0xff]
  %v124 = vld [vmem:[%s3 + $0xb0] sm:$0xff]
  %v125 = vld [vmem:[%s3 + $0xc0] sm:$0xff]
  %v126 = vld [vmem:[%s3 + $0xd0] sm:$0xff]
  %v127 = vld [vmem:[%s3 + $0xe0] sm:$0xff]
  %v128 = vld [vmem:[%s3 + $0xf0] sm:$0xff]
  %v129 = vld [vmem:[%s3 + $0x100] sm:$0xff]
  %vm162 = vcmask 1046528
  %v163 = vrot.slane %v82, 1
  %v164 = vrot.slane %v83, 1
  %v165 = vsel %vm162, %v163, %v164
  %v166 = vrot.slane %v84, 1
  %v167 = vrot.slane %v85, 1
  %v168 = vsel %vm162, %v166, %v167
  %v169 = vrot.slane %v86, 1
  %v170 = vrot.slane %v87, 1
  %v171 = vsel %vm162, %v169, %v170
  %v172 = vrot.slane %v88, 1
  %v173 = vrot.slane %v89, 1
  %v174 = vsel %vm162, %v172, %v173
  %v175 = vrot.slane %v90, 1
  %v176 = vrot.slane %v91, 1
  %v177 = vsel %vm162, %v175, %v176
  %v178 = vrot.slane %v92, 1
  %v179 = vrot.slane %v93, 1
  %v180 = vsel %vm162, %v178, %v179
  %v181 = vrot.slane %v94, 1
  %v182 = vrot.slane %v95, 1
  %v183 = vsel %vm162, %v181, %v182
  %v184 = vrot.slane %v96, 1
  %v185 = vrot.slane %v97, 1
  %v186 = vsel %vm162, %v184, %v185
  %v187 = vrot.slane %v98, 1
  %v188 = vrot.slane %v99, 1
  %v189 = vsel %vm162, %v187, %v188
  %v190 = vrot.slane %v100, 1
  %v191 = vrot.slane %v101, 1
  %v192 = vsel %vm162, %v190, %v191
  %v193 = vrot.slane %v102, 1
  %v194 = vrot.slane %v103, 1
  %v195 = vsel %vm162, %v193, %v194
  %v196 = vrot.slane %v104, 1
  %v197 = vrot.slane %v105, 1
  %v198 = vsel %vm162, %v196, %v197
  %v199 = vrot.slane %v106, 1
  %v200 = vrot.slane %v107, 1
  %v201 = vsel %vm162, %v199, %v200
  %v202 = vrot.slane %v108, 1
  %v203 = vrot.slane %v109, 1
  %v204 = vsel %vm162, %v202, %v203
  %v205 = vrot.slane %v110, 1
  %v206 = vrot.slane %v111, 1
  %v207 = vsel %vm162, %v205, %v206
  %v208 = vrot.slane %v112, 1
  %v209 = vrot.slane %v113, 1
  %v210 = vsel %vm162, %v208, %v209
  %v227 = vadd.f32 %v114, %v165
  %v228 = vadd.f32 %v115, %v168
  %v229 = vadd.f32 %v116, %v171
  %v230 = vadd.f32 %v117, %v174
  %v231 = vadd.f32 %v118, %v177
  %v232 = vadd.f32 %v119, %v180
  %v233 = vadd.f32 %v120, %v183
  %v234 = vadd.f32 %v121, %v186
  %v235 = vadd.f32 %v122, %v189
  %v236 = vadd.f32 %v123, %v192
  %v237 = vadd.f32 %v124, %v195
  %v238 = vadd.f32 %v125, %v198
  %v239 = vadd.f32 %v126, %v201
  %v240 = vadd.f32 %v127, %v204
  %v241 = vadd.f32 %v128, %v207
  %v242 = vadd.f32 %v129, %v210
  %v243 = vadd.f32 %v227, %v65
  %v244 = vadd.f32 %v228, %v66
  %v245 = vadd.f32 %v229, %v67
  %v246 = vadd.f32 %v230, %v68
  %v247 = vadd.f32 %v231, %v69
  %v248 = vadd.f32 %v232, %v70
  %v249 = vadd.f32 %v233, %v71
  %v250 = vadd.f32 %v234, %v72
  %v251 = vadd.f32 %v235, %v74
  %v252 = vadd.f32 %v236, %v75
  %v253 = vadd.f32 %v237, %v76
  %v254 = vadd.f32 %v238, %v77
  %v255 = vadd.f32 %v239, %v78
  %v256 = vadd.f32 %v240, %v79
  %v257 = vadd.f32 %v241, %v80
  %v258 = vadd.f32 %v242, %v81
  %v291 = vrot.slane %v30, 1
  %v292 = vrot.slane %v31, 1
  %v293 = vsel %vm162, %v291, %v292
  %v294 = vrot.slane %v32, 1
  %v295 = vrot.slane %v33, 1
  %v296 = vsel %vm162, %v294, %v295
  %v297 = vrot.slane %v34, 1
  %v298 = vrot.slane %v35, 1
  %v299 = vsel %vm162, %v297, %v298
  %v300 = vrot.slane %v36, 1
  %v301 = vrot.slane %v37, 1
  %v302 = vsel %vm162, %v300, %v301
  %v303 = vrot.slane %v38, 1
  %v304 = vrot.slane %v39, 1
  %v305 = vsel %vm162, %v303, %v304
  %v306 = vrot.slane %v40, 1
  %v307 = vrot.slane %v41, 1
  %v308 = vsel %vm162, %v306, %v307
  %v309 = vrot.slane %v42, 1
  %v310 = vrot.slane %v43, 1
  %v311 = vsel %vm162, %v309, %v310
  %v312 = vrot.slane %v44, 1
  %v313 = vrot.slane %v45, 1
  %v314 = vsel %vm162, %v312, %v313
  %v315 = vrot.slane %v48, 1
  %v316 = vrot.slane %v49, 1
  %v317 = vsel %vm162, %v315, %v316
  %v318 = vrot.slane %v50, 1
  %v319 = vrot.slane %v51, 1
  %v320 = vsel %vm162, %v318, %v319
  %v321 = vrot.slane %v52, 1
  %v322 = vrot.slane %v53, 1
  %v323 = vsel %vm162, %v321, %v322
  %v324 = vrot.slane %v54, 1
  %v325 = vrot.slane %v55, 1
  %v326 = vsel %vm162, %v324, %v325
  %v327 = vrot.slane %v56, 1
  %v328 = vrot.slane %v57, 1
  %v329 = vsel %vm162, %v327, %v328
  %v330 = vrot.slane %v58, 1
  %v331 = vrot.slane %v59, 1
  %v332 = vsel %vm162, %v330, %v331
  %v333 = vrot.slane %v60, 1
  %v334 = vrot.slane %v61, 1
  %v335 = vsel %vm162, %v333, %v334
  %v336 = vrot.slane %v62, 1
  %v337 = vrot.slane %v63, 1
  %v338 = vsel %vm162, %v336, %v337
  %v355 = vadd.f32 %v243, %v293
  %v356 = vadd.f32 %v244, %v296
  %v357 = vadd.f32 %v245, %v299
  %v358 = vadd.f32 %v246, %v302
  %v359 = vadd.f32 %v247, %v305
  %v360 = vadd.f32 %v248, %v308
  %v361 = vadd.f32 %v249, %v311
  %v362 = vadd.f32 %v250, %v314
  %v363 = vadd.f32 %v251, %v317
  %v364 = vadd.f32 %v252, %v320
  %v365 = vadd.f32 %v253, %v323
  %v366 = vadd.f32 %v254, %v326
  %v367 = vadd.f32 %v255, %v329
  %v368 = vadd.f32 %v256, %v332
  %v369 = vadd.f32 %v257, %v335
  %v370 = vadd.f32 %v258, %v338
  %v371 = vmul.f32 %v355, 0.25
  %v372 = vmul.f32 %v356, 0.25
  %v373 = vmul.f32 %v357, 0.25
  %v374 = vmul.f32 %v358, 0.25
  %v375 = vmul.f32 %v359, 0.25
  %v376 = vmul.f32 %v360, 0.25
  %v377 = vmul.f32 %v361, 0.25
  %v378 = vmul.f32 %v362, 0.25
  %v379 = vmul.f32 %v363, 0.25
  %v380 = vmul.f32 %v364, 0.25
  %v381 = vmul.f32 %v365, 0.25
  %v382 = vmul.f32 %v366, 0.25
  %v383 = vmul.f32 %v367, 0.25
  %v384 = vmul.f32 %v368, 0.25
  %v385 = vmul.f32 %v369, 0.25
  %v386 = vmul.f32 %v370, 0.25
  %v387 = vpack.c.bf16 %v372, %v371
  %v388 = vpack.c.bf16 %v374, %v373
  %v389 = vpack.c.bf16 %v376, %v375
  %v390 = vpack.c.bf16 %v378, %v377
  %v391 = vpack.c.bf16 %v380, %v379
  %v392 = vpack.c.bf16 %v382, %v381
  %v393 = vpack.c.bf16 %v384, %v383
  %v394 = vpack.c.bf16 %v386, %v385
  %v395 = vld [vmem:[%s5] sm:$0xf]
  %v396 = vld [vmem:[%s5 + $0x4] sm:$0xf]
  %v399 = vunpack.c.l.b16 %v395
  %v400 = vunpack.c.l.b16 %v396
  %v401 = vpack.c.b16 %v400, %v399
  %vm403 = vcmask 130048
  %v405 = vsel %vm403, %v387, 0
  %v408 = vsel %vm403, %v388, 0
  %v411 = vsel %vm403, %v389, 0
  %v414 = vsel %vm403, %v390, 0
  %v417 = vsel %vm403, %v391, 0
  %v420 = vsel %vm403, %v392, 0
  %v423 = vsel %vm403, %v393, 0
  %v426 = vsel %vm403, %v394, 0
  %428 = vmatprep.subr.bf16.mxu0 0
  %429 = vmatpush1.bf16.msra.mxu0 %v401
  %430 = vmatprep.subr.bf16.mxu0 0
  %431 = vmatpush1.bf16.msra.mxu0 0
  %432 = vmatprep.subr.bf16.mxu0 0
  %433 = vmatpush1.bf16.msra.mxu0 0
  %434 = vmatprep.subr.bf16.mxu0 0
  %435 = vmatpush1.bf16.msra.mxu0 0
  %436 = vmatprep.subr.bf16.mxu0 0
  %437 = vmatpush1.bf16.msra.mxu0 0
  %438 = vmatprep.subr.bf16.mxu0 0
  %439 = vmatpush1.bf16.msra.mxu0 0
  %440 = vmatprep.subr.bf16.mxu0 0
  %441 = vmatpush1.bf16.msra.mxu0 0
  %442 = vmatprep.subr.bf16.mxu0 0
  %443 = vmatpush1.bf16.msra.mxu0 0
  %444 = vmatprep.subr.bf16.mxu0 0
  %445 = vmatpush1.bf16.msra.mxu0 0
  %446 = vmatprep.subr.bf16.mxu0 0
  %447 = vmatpush1.bf16.msra.mxu0 0
  %448 = vmatprep.subr.bf16.mxu0 0
  %449 = vmatpush1.bf16.msra.mxu0 0
  %450 = vmatprep.subr.bf16.mxu0 0
  %451 = vmatpush1.bf16.msra.mxu0 0
  %452 = vmatprep.subr.bf16.mxu0 0
  %453 = vmatpush1.bf16.msra.mxu0 0
  %454 = vmatprep.subr.bf16.mxu0 0
  %455 = vmatpush1.bf16.msra.mxu0 0
  %456 = vmatprep.subr.bf16.mxu0 0
  %457 = vmatpush1.bf16.msra.mxu0 0
  %458 = vmatprep.subr.bf16.mxu0 0
  %459 = vmatpush1.bf16.msra.mxu0 0
  %460 = vmatprep.mubr.bf16.mxu0 0
  %461 = vmatmul.mubr.bf16.gmra.mrb[0].mxu0 %v405
  %v462 = vpop.f32.mrb[0].mxu0
  %v463 = vadd.f32 0.0, %v462
  %v464 = vpop.f32.mrb[0].mxu0
  %v465 = vpop.f32.mrb[0].mxu0
  %v466 = vadd.f32 0.0, %v465
  %v467 = vpop.f32.mrb[0].mxu0
  %468 = vmatprep.mubr.bf16.mxu0 0
  %469 = vmatmul.mubr.bf16.gmra.mrb[0].mxu0 %v408
  %v470 = vpop.f32.mrb[0].mxu0
  %v471 = vadd.f32 0.0, %v470
  %v472 = vpop.f32.mrb[0].mxu0
  %v473 = vpop.f32.mrb[0].mxu0
  %v474 = vadd.f32 0.0, %v473
  %v475 = vpop.f32.mrb[0].mxu0
  %476 = vmatprep.mubr.bf16.mxu0 0
  %477 = vmatmul.mubr.bf16.gmra.mrb[0].mxu0 %v411
  %v478 = vpop.f32.mrb[0].mxu0
  %v479 = vadd.f32 0.0, %v478
  %v480 = vpop.f32.mrb[0].mxu0
  %v481 = vpop.f32.mrb[0].mxu0
  %v482 = vadd.f32 0.0, %v481
  %v483 = vpop.f32.mrb[0].mxu0
  %484 = vmatprep.mubr.bf16.mxu0 0
  %485 = vmatmul.mubr.bf16.gmra.mrb[0].mxu0 %v414
  %v486 = vpop.f32.mrb[0].mxu0
  %v487 = vadd.f32 0.0, %v486
  %v488 = vpop.f32.mrb[0].mxu0
  %v489 = vpop.f32.mrb[0].mxu0
  %v490 = vadd.f32 0.0, %v489
  %v491 = vpop.f32.mrb[0].mxu0
  %492 = vmatprep.mubr.bf16.mxu0 0
  %493 = vmatmul.mubr.bf16.gmra.mrb[0].mxu0 %v417
  %v494 = vpop.f32.mrb[0].mxu0
  %v495 = vadd.f32 0.0, %v494
  %v496 = vpop.f32.mrb[0].mxu0
  %v497 = vpop.f32.mrb[0].mxu0
  %v498 = vadd.f32 0.0, %v497
  %v499 = vpop.f32.mrb[0].mxu0
  %500 = vmatprep.mubr.bf16.mxu0 0
  %501 = vmatmul.mubr.bf16.gmra.mrb[0].mxu0 %v420
  %v502 = vpop.f32.mrb[0].mxu0
  %v503 = vadd.f32 0.0, %v502
  %v504 = vpop.f32.mrb[0].mxu0
  %v505 = vpop.f32.mrb[0].mxu0
  %v506 = vadd.f32 0.0, %v505
  %v507 = vpop.f32.mrb[0].mxu0
  %508 = vmatprep.mubr.bf16.mxu0 0
  %509 = vmatmul.mubr.bf16.gmra.mrb[0].mxu0 %v423
  %v510 = vpop.f32.mrb[0].mxu0
  %v511 = vadd.f32 0.0, %v510
  %v512 = vpop.f32.mrb[0].mxu0
  %v513 = vpop.f32.mrb[0].mxu0
  %v514 = vadd.f32 0.0, %v513
  %v515 = vpop.f32.mrb[0].mxu0
  %516 = vmatprep.mubr.bf16.mxu0 0
  %517 = vmatmul.mubr.bf16.gmra.mrb[0].mxu0 %v426
  %v518 = vpop.f32.mrb[0].mxu0
  %v519 = vadd.f32 0.0, %v518
  %v520 = vpop.f32.mrb[0].mxu0
  %v521 = vpop.f32.mrb[0].mxu0
  %v522 = vadd.f32 0.0, %v521
  %v523 = vpop.f32.mrb[0].mxu0
  %524 = vdwg.mxu0
  %vm525 = vcmask 261120
  %526 = vst.msk [vmem:[%s7] sm:$0xff] %vm525, %v463
  %527 = vst.msk [vmem:[%s7 + $0x8] sm:$0xff] %vm525, %v466
  %528 = vst.msk [vmem:[%s7 + $0x10] sm:$0xff] %vm525, %v471
  %529 = vst.msk [vmem:[%s7 + $0x18] sm:$0xff] %vm525, %v474
  %530 = vst.msk [vmem:[%s7 + $0x20] sm:$0xff] %vm525, %v479
  %531 = vst.msk [vmem:[%s7 + $0x28] sm:$0xff] %vm525, %v482
  %532 = vst.msk [vmem:[%s7 + $0x30] sm:$0xff] %vm525, %v487
  %533 = vst.msk [vmem:[%s7 + $0x38] sm:$0xff] %vm525, %v490
  %534 = vst.msk [vmem:[%s7 + $0x40] sm:$0xff] %vm525, %v495
  %535 = vst.msk [vmem:[%s7 + $0x48] sm:$0xff] %vm525, %v498
  %536 = vst.msk [vmem:[%s7 + $0x50] sm:$0xff] %vm525, %v503
  %537 = vst.msk [vmem:[%s7 + $0x58] sm:$0xff] %vm525, %v506
  %538 = vst.msk [vmem:[%s7 + $0x60] sm:$0xff] %vm525, %v511
  %539 = vst.msk [vmem:[%s7 + $0x68] sm:$0xff] %vm525, %v514
  %540 = vst.msk [vmem:[%s7 + $0x70] sm:$0xff] %vm525, %v519
  %541 = vst.msk [vmem:[%s7 + $0x78] sm:$0xff] %vm525, %v522
  %v542 = vmax.f32 %v28, 0.0
  %v543 = vmax.f32 %v30, 0.0
  %v544 = vmax.f32 %v32, 0.0
  %v545 = vmax.f32 %v34, 0.0
  %v546 = vmax.f32 %v36, 0.0
  %v547 = vmax.f32 %v38, 0.0
  %v548 = vmax.f32 %v40, 0.0
  %v549 = vmax.f32 %v42, 0.0
  %v550 = vmax.f32 %v46, 0.0
  %v551 = vmax.f32 %v48, 0.0
  %v552 = vmax.f32 %v50, 0.0
  %v553 = vmax.f32 %v52, 0.0
  %v554 = vmax.f32 %v54, 0.0
  %v555 = vmax.f32 %v56, 0.0
  %v556 = vmax.f32 %v58, 0.0
  %v557 = vmax.f32 %v60, 0.0
  %v558 = vpack.c.bf16 %v543, %v542
  %v559 = vpack.c.bf16 %v545, %v544
  %v560 = vpack.c.bf16 %v547, %v546
  %v561 = vpack.c.bf16 %v549, %v548
  %v562 = vpack.c.bf16 %v551, %v550
  %v563 = vpack.c.bf16 %v553, %v552
  %v564 = vpack.c.bf16 %v555, %v554
  %v565 = vpack.c.bf16 %v557, %v556
  %v566 = vld [vmem:[%s4] sm:$0xf]
  %v567 = vld [vmem:[%s4 + $0x4] sm:$0xf]
  %v568 = vmax.f32 %v64, 0.0
  %v569 = vmax.f32 %v65, 0.0
  %v570 = vmax.f32 %v66, 0.0
  %v571 = vmax.f32 %v67, 0.0
  %v572 = vmax.f32 %v68, 0.0
  %v573 = vmax.f32 %v69, 0.0
  %v574 = vmax.f32 %v70, 0.0
  %v575 = vmax.f32 %v71, 0.0
  %v576 = vmax.f32 %v73, 0.0
  %v577 = vmax.f32 %v74, 0.0
  %v578 = vmax.f32 %v75, 0.0
  %v579 = vmax.f32 %v76, 0.0
  %v580 = vmax.f32 %v77, 0.0
  %v581 = vmax.f32 %v78, 0.0
  %v582 = vmax.f32 %v79, 0.0
  %v583 = vmax.f32 %v80, 0.0
  %v584 = vpack.c.bf16 %v569, %v568
  %v585 = vpack.c.bf16 %v571, %v570
  %v586 = vpack.c.bf16 %v573, %v572
  %v587 = vpack.c.bf16 %v575, %v574
  %v588 = vpack.c.bf16 %v577, %v576
  %v589 = vpack.c.bf16 %v579, %v578
  %v590 = vpack.c.bf16 %v581, %v580
  %v591 = vpack.c.bf16 %v583, %v582
  %s592 = scalar_lea.vmem %s4, 8
  %v593 = vld [vmem:[%s592] sm:$0xf]
  %v594 = vld [vmem:[%s592 + $0x4] sm:$0xf]
  %v597 = vunpack.c.l.b16 %v593
  %v598 = vunpack.c.l.b16 %v594
  %v599 = vpack.c.b16 %v598, %v597
  %v602 = vsel %vm403, %v584, 0
  %v605 = vsel %vm403, %v585, 0
  %v608 = vsel %vm403, %v586, 0
  %v611 = vsel %vm403, %v587, 0
  %v614 = vsel %vm403, %v588, 0
  %v617 = vsel %vm403, %v589, 0
  %v620 = vsel %vm403, %v590, 0
  %v623 = vsel %vm403, %v591, 0
  %625 = vmatprep.subr.bf16.mxu0 0
  %626 = vmatpush1.bf16.msra.mxu0 %v599
  %627 = vmatprep.subr.bf16.mxu0 0
  %628 = vmatpush1.bf16.msra.mxu0 0
  %629 = vmatprep.subr.bf16.mxu0 0
  %630 = vmatpush1.bf16.msra.mxu0 0
  %631 = vmatprep.subr.bf16.mxu0 0
  %632 = vmatpush1.bf16.msra.mxu0 0
  %633 = vmatprep.subr.bf16.mxu0 0
  %634 = vmatpush1.bf16.msra.mxu0 0
  %635 = vmatprep.subr.bf16.mxu0 0
  %636 = vmatpush1.bf16.msra.mxu0 0
  %637 = vmatprep.subr.bf16.mxu0 0
  %638 = vmatpush1.bf16.msra.mxu0 0
  %639 = vmatprep.subr.bf16.mxu0 0
  %640 = vmatpush1.bf16.msra.mxu0 0
  %641 = vmatprep.subr.bf16.mxu0 0
  %642 = vmatpush1.bf16.msra.mxu0 0
  %643 = vmatprep.subr.bf16.mxu0 0
  %644 = vmatpush1.bf16.msra.mxu0 0
  %645 = vmatprep.subr.bf16.mxu0 0
  %646 = vmatpush1.bf16.msra.mxu0 0
  %647 = vmatprep.subr.bf16.mxu0 0
  %648 = vmatpush1.bf16.msra.mxu0 0
  %649 = vmatprep.subr.bf16.mxu0 0
  %650 = vmatpush1.bf16.msra.mxu0 0
  %651 = vmatprep.subr.bf16.mxu0 0
  %652 = vmatpush1.bf16.msra.mxu0 0
  %653 = vmatprep.subr.bf16.mxu0 0
  %654 = vmatpush1.bf16.msra.mxu0 0
  %655 = vmatprep.subr.bf16.mxu0 0
  %656 = vmatpush1.bf16.msra.mxu0 0
  %657 = vmatprep.mubr.bf16.mxu0 0
  %658 = vmatmul.mubr.bf16.gmra.mrb[0].mxu0 %v602
  %v659 = vpop.f32.mrb[0].mxu0
  %v660 = vadd.f32 0.0, %v659
  %v661 = vpop.f32.mrb[0].mxu0
  %v662 = vpop.f32.mrb[0].mxu0
  %v663 = vadd.f32 0.0, %v662
  %v664 = vpop.f32.mrb[0].mxu0
  %665 = vmatprep.mubr.bf16.mxu0 0
  %666 = vmatmul.mubr.bf16.gmra.mrb[0].mxu0 %v605
  %v667 = vpop.f32.mrb[0].mxu0
  %v668 = vadd.f32 0.0, %v667
  %v669 = vpop.f32.mrb[0].mxu0
  %v670 = vpop.f32.mrb[0].mxu0
  %v671 = vadd.f32 0.0, %v670
  %v672 = vpop.f32.mrb[0].mxu0
  %673 = vmatprep.mubr.bf16.mxu0 0
  %674 = vmatmul.mubr.bf16.gmra.mrb[0].mxu0 %v608
  %v675 = vpop.f32.mrb[0].mxu0
  %v676 = vadd.f32 0.0, %v675
  %v677 = vpop.f32.mrb[0].mxu0
  %v678 = vpop.f32.mrb[0].mxu0
  %v679 = vadd.f32 0.0, %v678
  %v680 = vpop.f32.mrb[0].mxu0
  %681 = vmatprep.mubr.bf16.mxu0 0
  %682 = vmatmul.mubr.bf16.gmra.mrb[0].mxu0 %v611
  %v683 = vpop.f32.mrb[0].mxu0
  %v684 = vadd.f32 0.0, %v683
  %v685 = vpop.f32.mrb[0].mxu0
  %v686 = vpop.f32.mrb[0].mxu0
  %v687 = vadd.f32 0.0, %v686
  %v688 = vpop.f32.mrb[0].mxu0
  %689 = vmatprep.mubr.bf16.mxu0 0
  %690 = vmatmul.mubr.bf16.gmra.mrb[0].mxu0 %v614
  %v691 = vpop.f32.mrb[0].mxu0
  %v692 = vadd.f32 0.0, %v691
  %v693 = vpop.f32.mrb[0].mxu0
  %v694 = vpop.f32.mrb[0].mxu0
  %v695 = vadd.f32 0.0, %v694
  %v696 = vpop.f32.mrb[0].mxu0
  %697 = vmatprep.mubr.bf16.mxu0 0
  %698 = vmatmul.mubr.bf16.gmra.mrb[0].mxu0 %v617
  %v699 = vpop.f32.mrb[0].mxu0
  %v700 = vadd.f32 0.0, %v699
  %v701 = vpop.f32.mrb[0].mxu0
  %v702 = vpop.f32.mrb[0].mxu0
  %v703 = vadd.f32 0.0, %v702
  %v704 = vpop.f32.mrb[0].mxu0
  %705 = vmatprep.mubr.bf16.mxu0 0
  %706 = vmatmul.mubr.bf16.gmra.mrb[0].mxu0 %v620
  %v707 = vpop.f32.mrb[0].mxu0
  %v708 = vadd.f32 0.0, %v707
  %v709 = vpop.f32.mrb[0].mxu0
  %v710 = vpop.f32.mrb[0].mxu0
  %v711 = vadd.f32 0.0, %v710
  %v712 = vpop.f32.mrb[0].mxu0
  %713 = vmatprep.mubr.bf16.mxu0 0
  %714 = vmatmul.mubr.bf16.gmra.mrb[0].mxu0 %v623
  %v715 = vpop.f32.mrb[0].mxu0
  %v716 = vadd.f32 0.0, %v715
  %v717 = vpop.f32.mrb[0].mxu0
  %v718 = vpop.f32.mrb[0].mxu0
  %v719 = vadd.f32 0.0, %v718
  %v720 = vpop.f32.mrb[0].mxu0
  %721 = vdwg.mxu0
  %v724 = vunpack.c.l.b16 %v566
  %v725 = vunpack.c.l.b16 %v567
  %v726 = vpack.c.b16 %v725, %v724
  %v729 = vsel %vm403, %v558, 0
  %v732 = vsel %vm403, %v559, 0
  %v735 = vsel %vm403, %v560, 0
  %v738 = vsel %vm403, %v561, 0
  %v741 = vsel %vm403, %v562, 0
  %v744 = vsel %vm403, %v563, 0
  %v747 = vsel %vm403, %v564, 0
  %v750 = vsel %vm403, %v565, 0
  %752 = vmatprep.subr.bf16.mxu0 0
  %753 = vmatpush1.bf16.msra.mxu0 %v726
  %754 = vmatprep.subr.bf16.mxu0 0
  %755 = vmatpush1.bf16.msra.mxu0 0
  %756 = vmatprep.subr.bf16.mxu0 0
  %757 = vmatpush1.bf16.msra.mxu0 0
  %758 = vmatprep.subr.bf16.mxu0 0
  %759 = vmatpush1.bf16.msra.mxu0 0
  %760 = vmatprep.subr.bf16.mxu0 0
  %761 = vmatpush1.bf16.msra.mxu0 0
  %762 = vmatprep.subr.bf16.mxu0 0
  %763 = vmatpush1.bf16.msra.mxu0 0
  %764 = vmatprep.subr.bf16.mxu0 0
  %765 = vmatpush1.bf16.msra.mxu0 0
  %766 = vmatprep.subr.bf16.mxu0 0
  %767 = vmatpush1.bf16.msra.mxu0 0
  %768 = vmatprep.subr.bf16.mxu0 0
  %769 = vmatpush1.bf16.msra.mxu0 0
  %770 = vmatprep.subr.bf16.mxu0 0
  %771 = vmatpush1.bf16.msra.mxu0 0
  %772 = vmatprep.subr.bf16.mxu0 0
  %773 = vmatpush1.bf16.msra.mxu0 0
  %774 = vmatprep.subr.bf16.mxu0 0
  %775 = vmatpush1.bf16.msra.mxu0 0
  %776 = vmatprep.subr.bf16.mxu0 0
  %777 = vmatpush1.bf16.msra.mxu0 0
  %778 = vmatprep.subr.bf16.mxu0 0
  %779 = vmatpush1.bf16.msra.mxu0 0
  %780 = vmatprep.subr.bf16.mxu0 0
  %781 = vmatpush1.bf16.msra.mxu0 0
  %782 = vmatprep.subr.bf16.mxu0 0
  %783 = vmatpush1.bf16.msra.mxu0 0
  %784 = vmatprep.mubr.bf16.mxu0 0
  %785 = vmatmul.mubr.bf16.gmra.mrb[0].mxu0 %v729
  %v786 = vpop.f32.mrb[0].mxu0
  %v787 = vadd.f32 %v660, %v786
  %v788 = vpop.f32.mrb[0].mxu0
  %v789 = vpop.f32.mrb[0].mxu0
  %v790 = vadd.f32 %v663, %v789
  %v791 = vpop.f32.mrb[0].mxu0
  %792 = vmatprep.mubr.bf16.mxu0 0
  %793 = vmatmul.mubr.bf16.gmra.mrb[0].mxu0 %v732
  %v794 = vpop.f32.mrb[0].mxu0
  %v795 = vadd.f32 %v668, %v794
  %v796 = vpop.f32.mrb[0].mxu0
  %v797 = vpop.f32.mrb[0].mxu0
  %v798 = vadd.f32 %v671, %v797
  %v799 = vpop.f32.mrb[0].mxu0
  %800 = vmatprep.mubr.bf16.mxu0 0
  %801 = vmatmul.mubr.bf16.gmra.mrb[0].mxu0 %v735
  %v802 = vpop.f32.mrb[0].mxu0
  %v803 = vadd.f32 %v676, %v802
  %v804 = vpop.f32.mrb[0].mxu0
  %v805 = vpop.f32.mrb[0].mxu0
  %v806 = vadd.f32 %v679, %v805
  %v807 = vpop.f32.mrb[0].mxu0
  %808 = vmatprep.mubr.bf16.mxu0 0
  %809 = vmatmul.mubr.bf16.gmra.mrb[0].mxu0 %v738
  %v810 = vpop.f32.mrb[0].mxu0
  %v811 = vadd.f32 %v684, %v810
  %v812 = vpop.f32.mrb[0].mxu0
  %v813 = vpop.f32.mrb[0].mxu0
  %v814 = vadd.f32 %v687, %v813
  %v815 = vpop.f32.mrb[0].mxu0
  %816 = vmatprep.mubr.bf16.mxu0 0
  %817 = vmatmul.mubr.bf16.gmra.mrb[0].mxu0 %v741
  %v818 = vpop.f32.mrb[0].mxu0
  %v819 = vadd.f32 %v692, %v818
  %v820 = vpop.f32.mrb[0].mxu0
  %v821 = vpop.f32.mrb[0].mxu0
  %v822 = vadd.f32 %v695, %v821
  %v823 = vpop.f32.mrb[0].mxu0
  %824 = vmatprep.mubr.bf16.mxu0 0
  %825 = vmatmul.mubr.bf16.gmra.mrb[0].mxu0 %v744
  %v826 = vpop.f32.mrb[0].mxu0
  %v827 = vadd.f32 %v700, %v826
  %v828 = vpop.f32.mrb[0].mxu0
  %v829 = vpop.f32.mrb[0].mxu0
  %v830 = vadd.f32 %v703, %v829
  %v831 = vpop.f32.mrb[0].mxu0
  %832 = vmatprep.mubr.bf16.mxu0 0
  %833 = vmatmul.mubr.bf16.gmra.mrb[0].mxu0 %v747
  %v834 = vpop.f32.mrb[0].mxu0
  %v835 = vadd.f32 %v708, %v834
  %v836 = vpop.f32.mrb[0].mxu0
  %v837 = vpop.f32.mrb[0].mxu0
  %v838 = vadd.f32 %v711, %v837
  %v839 = vpop.f32.mrb[0].mxu0
  %840 = vmatprep.mubr.bf16.mxu0 0
  %841 = vmatmul.mubr.bf16.gmra.mrb[0].mxu0 %v750
  %v842 = vpop.f32.mrb[0].mxu0
  %v843 = vadd.f32 %v716, %v842
  %v844 = vpop.f32.mrb[0].mxu0
  %v845 = vpop.f32.mrb[0].mxu0
  %v846 = vadd.f32 %v719, %v845
  %v847 = vpop.f32.mrb[0].mxu0
  %848 = vdwg.mxu0
  %v849 = vmax.f32 %v29, 0.0
  %v850 = vmax.f32 %v31, 0.0
  %v851 = vmax.f32 %v33, 0.0
  %v852 = vmax.f32 %v35, 0.0
  %v853 = vmax.f32 %v37, 0.0
  %v854 = vmax.f32 %v39, 0.0
  %v855 = vmax.f32 %v41, 0.0
  %v856 = vmax.f32 %v43, 0.0
  %v857 = vmax.f32 %v47, 0.0
  %v858 = vmax.f32 %v49, 0.0
  %v859 = vmax.f32 %v51, 0.0
  %v860 = vmax.f32 %v53, 0.0
  %v861 = vmax.f32 %v55, 0.0
  %v862 = vmax.f32 %v57, 0.0
  %v863 = vmax.f32 %v59, 0.0
  %v864 = vmax.f32 %v61, 0.0
  %v897 = vrot.slane %v542, 1
  %v898 = vrot.slane %v849, 1
  %v899 = vsel %vm162, %v897, %v898
  %v900 = vrot.slane %v543, 1
  %v901 = vrot.slane %v850, 1
  %v902 = vsel %vm162, %v900, %v901
  %v903 = vrot.slane %v544, 1
  %v904 = vrot.slane %v851, 1
  %v905 = vsel %vm162, %v903, %v904
  %v906 = vrot.slane %v545, 1
  %v907 = vrot.slane %v852, 1
  %v908 = vsel %vm162, %v906, %v907
  %v909 = vrot.slane %v546, 1
  %v910 = vrot.slane %v853, 1
  %v911 = vsel %vm162, %v909, %v910
  %v912 = vrot.slane %v547, 1
  %v913 = vrot.slane %v854, 1
  %v914 = vsel %vm162, %v912, %v913
  %v915 = vrot.slane %v548, 1
  %v916 = vrot.slane %v855, 1
  %v917 = vsel %vm162, %v915, %v916
  %v918 = vrot.slane %v549, 1
  %v919 = vrot.slane %v856, 1
  %v920 = vsel %vm162, %v918, %v919
  %v921 = vrot.slane %v550, 1
  %v922 = vrot.slane %v857, 1
  %v923 = vsel %vm162, %v921, %v922
  %v924 = vrot.slane %v551, 1
  %v925 = vrot.slane %v858, 1
  %v926 = vsel %vm162, %v924, %v925
  %v927 = vrot.slane %v552, 1
  %v928 = vrot.slane %v859, 1
  %v929 = vsel %vm162, %v927, %v928
  %v930 = vrot.slane %v553, 1
  %v931 = vrot.slane %v860, 1
  %v932 = vsel %vm162, %v930, %v931
  %v933 = vrot.slane %v554, 1
  %v934 = vrot.slane %v861, 1
  %v935 = vsel %vm162, %v933, %v934
  %v936 = vrot.slane %v555, 1
  %v937 = vrot.slane %v862, 1
  %v938 = vsel %vm162, %v936, %v937
  %v939 = vrot.slane %v556, 1
  %v940 = vrot.slane %v863, 1
  %v941 = vsel %vm162, %v939, %v940
  %v942 = vrot.slane %v557, 1
  %v943 = vrot.slane %v864, 1
  %v944 = vsel %vm162, %v942, %v943
  %v961 = vpack.c.bf16 %v902, %v899
  %v962 = vpack.c.bf16 %v908, %v905
  %v963 = vpack.c.bf16 %v914, %v911
  %v964 = vpack.c.bf16 %v920, %v917
  %v965 = vpack.c.bf16 %v926, %v923
  %v966 = vpack.c.bf16 %v932, %v929
  %v967 = vpack.c.bf16 %v938, %v935
  %v968 = vpack.c.bf16 %v944, %v941
  %s969 = scalar_lea.vmem %s4, 16
  %v970 = vld [vmem:[%s969] sm:$0xf]
  %v971 = vld [vmem:[%s969 + $0x4] sm:$0xf]
  %v974 = vunpack.c.l.b16 %v970
  %v975 = vunpack.c.l.b16 %v971
  %v976 = vpack.c.b16 %v975, %v974
  %v979 = vsel %vm403, %v961, 0
  %v982 = vsel %vm403, %v962, 0
  %v985 = vsel %vm403, %v963, 0
  %v988 = vsel %vm403, %v964, 0
  %v991 = vsel %vm403, %v965, 0
  %v994 = vsel %vm403, %v966, 0
  %v997 = vsel %vm403, %v967, 0
  %v1000 = vsel %vm403, %v968, 0
  %1002 = vmatprep.subr.bf16.mxu0 0
  %1003 = vmatpush1.bf16.msra.mxu0 %v976
  %1004 = vmatprep.subr.bf16.mxu0 0
  %1005 = vmatpush1.bf16.msra.mxu0 0
  %1006 = vmatprep.subr.bf16.mxu0 0
  %1007 = vmatpush1.bf16.msra.mxu0 0
  %1008 = vmatprep.subr.bf16.mxu0 0
  %1009 = vmatpush1.bf16.msra.mxu0 0
  %1010 = vmatprep.subr.bf16.mxu0 0
  %1011 = vmatpush1.bf16.msra.mxu0 0
  %1012 = vmatprep.subr.bf16.mxu0 0
  %1013 = vmatpush1.bf16.msra.mxu0 0
  %1014 = vmatprep.subr.bf16.mxu0 0
  %1015 = vmatpush1.bf16.msra.mxu0 0
  %1016 = vmatprep.subr.bf16.mxu0 0
  %1017 = vmatpush1.bf16.msra.mxu0 0
  %1018 = vmatprep.subr.bf16.mxu0 0
  %1019 = vmatpush1.bf16.msra.mxu0 0
  %1020 = vmatprep.subr.bf16.mxu0 0
  %1021 = vmatpush1.bf16.msra.mxu0 0
  %1022 = vmatprep.subr.bf16.mxu0 0
  %1023 = vmatpush1.bf16.msra.mxu0 0
  %1024 = vmatprep.subr.bf16.mxu0 0
  %1025 = vmatpush1.bf16.msra.mxu0 0
  %1026 = vmatprep.subr.bf16.mxu0 0
  %1027 = vmatpush1.bf16.msra.mxu0 0
  %1028 = vmatprep.subr.bf16.mxu0 0
  %1029 = vmatpush1.bf16.msra.mxu0 0
  %1030 = vmatprep.subr.bf16.mxu0 0
  %1031 = vmatpush1.bf16.msra.mxu0 0
  %1032 = vmatprep.subr.bf16.mxu0 0
  %1033 = vmatpush1.bf16.msra.mxu0 0
  %1034 = vmatprep.mubr.bf16.mxu0 0
  %1035 = vmatmul.mubr.bf16.gmra.mrb[0].mxu0 %v979
  %v1036 = vpop.f32.mrb[0].mxu0
  %v1037 = vadd.f32 0.0, %v1036
  %v1038 = vpop.f32.mrb[0].mxu0
  %v1039 = vpop.f32.mrb[0].mxu0
  %v1040 = vadd.f32 0.0, %v1039
  %v1041 = vpop.f32.mrb[0].mxu0
  %1042 = vmatprep.mubr.bf16.mxu0 0
  %1043 = vmatmul.mubr.bf16.gmra.mrb[0].mxu0 %v982
  %v1044 = vpop.f32.mrb[0].mxu0
  %v1045 = vadd.f32 0.0, %v1044
  %v1046 = vpop.f32.mrb[0].mxu0
  %v1047 = vpop.f32.mrb[0].mxu0
  %v1048 = vadd.f32 0.0, %v1047
  %v1049 = vpop.f32.mrb[0].mxu0
  %1050 = vmatprep.mubr.bf16.mxu0 0
  %1051 = vmatmul.mubr.bf16.gmra.mrb[0].mxu0 %v985
  %v1052 = vpop.f32.mrb[0].mxu0
  %v1053 = vadd.f32 0.0, %v1052
  %v1054 = vpop.f32.mrb[0].mxu0
  %v1055 = vpop.f32.mrb[0].mxu0
  %v1056 = vadd.f32 0.0, %v1055
  %v1057 = vpop.f32.mrb[0].mxu0
  %1058 = vmatprep.mubr.bf16.mxu0 0
  %1059 = vmatmul.mubr.bf16.gmra.mrb[0].mxu0 %v988
  %v1060 = vpop.f32.mrb[0].mxu0
  %v1061 = vadd.f32 0.0, %v1060
  %v1062 = vpop.f32.mrb[0].mxu0
  %v1063 = vpop.f32.mrb[0].mxu0
  %v1064 = vadd.f32 0.0, %v1063
  %v1065 = vpop.f32.mrb[0].mxu0
  %1066 = vmatprep.mubr.bf16.mxu0 0
  %1067 = vmatmul.mubr.bf16.gmra.mrb[0].mxu0 %v991
  %v1068 = vpop.f32.mrb[0].mxu0
  %v1069 = vadd.f32 0.0, %v1068
  %v1070 = vpop.f32.mrb[0].mxu0
  %v1071 = vpop.f32.mrb[0].mxu0
  %v1072 = vadd.f32 0.0, %v1071
  %v1073 = vpop.f32.mrb[0].mxu0
  %1074 = vmatprep.mubr.bf16.mxu0 0
  %1075 = vmatmul.mubr.bf16.gmra.mrb[0].mxu0 %v994
  %v1076 = vpop.f32.mrb[0].mxu0
  %v1077 = vadd.f32 0.0, %v1076
  %v1078 = vpop.f32.mrb[0].mxu0
  %v1079 = vpop.f32.mrb[0].mxu0
  %v1080 = vadd.f32 0.0, %v1079
  %v1081 = vpop.f32.mrb[0].mxu0
  %1082 = vmatprep.mubr.bf16.mxu0 0
  %1083 = vmatmul.mubr.bf16.gmra.mrb[0].mxu0 %v997
  %v1084 = vpop.f32.mrb[0].mxu0
  %v1085 = vadd.f32 0.0, %v1084
  %v1086 = vpop.f32.mrb[0].mxu0
  %v1087 = vpop.f32.mrb[0].mxu0
  %v1088 = vadd.f32 0.0, %v1087
  %v1089 = vpop.f32.mrb[0].mxu0
  %1090 = vmatprep.mubr.bf16.mxu0 0
  %1091 = vmatmul.mubr.bf16.gmra.mrb[0].mxu0 %v1000
  %v1092 = vpop.f32.mrb[0].mxu0
  %v1093 = vadd.f32 0.0, %v1092
  %v1094 = vpop.f32.mrb[0].mxu0
  %v1095 = vpop.f32.mrb[0].mxu0
  %v1096 = vadd.f32 0.0, %v1095
  %v1097 = vpop.f32.mrb[0].mxu0
  %1098 = vdwg.mxu0
  %v1099 = vadd.f32 %v787, %v1037
  %v1100 = vadd.f32 %v790, %v1040
  %v1101 = vadd.f32 %v795, %v1045
  %v1102 = vadd.f32 %v798, %v1048
  %v1103 = vadd.f32 %v803, %v1053
  %v1104 = vadd.f32 %v806, %v1056
  %v1105 = vadd.f32 %v811, %v1061
  %v1106 = vadd.f32 %v814, %v1064
  %v1107 = vadd.f32 %v819, %v1069
  %v1108 = vadd.f32 %v822, %v1072
  %v1109 = vadd.f32 %v827, %v1077
  %v1110 = vadd.f32 %v830, %v1080
  %v1111 = vadd.f32 %v835, %v1085
  %v1112 = vadd.f32 %v838, %v1088
  %v1113 = vadd.f32 %v843, %v1093
  %v1114 = vadd.f32 %v846, %v1096
  %v1115 = vmax.f32 %v82, 0.0
  %v1116 = vmax.f32 %v84, 0.0
  %v1117 = vmax.f32 %v86, 0.0
  %v1118 = vmax.f32 %v88, 0.0
  %v1119 = vmax.f32 %v90, 0.0
  %v1120 = vmax.f32 %v92, 0.0
  %v1121 = vmax.f32 %v94, 0.0
  %v1122 = vmax.f32 %v96, 0.0
  %v1123 = vmax.f32 %v98, 0.0
  %v1124 = vmax.f32 %v100, 0.0
  %v1125 = vmax.f32 %v102, 0.0
  %v1126 = vmax.f32 %v104, 0.0
  %v1127 = vmax.f32 %v106, 0.0
  %v1128 = vmax.f32 %v108, 0.0
  %v1129 = vmax.f32 %v110, 0.0
  %v1130 = vmax.f32 %v112, 0.0
  %v1131 = vpack.c.bf16 %v1116, %v1115
  %v1132 = vpack.c.bf16 %v1118, %v1117
  %v1133 = vpack.c.bf16 %v1120, %v1119
  %v1134 = vpack.c.bf16 %v1122, %v1121
  %v1135 = vpack.c.bf16 %v1124, %v1123
  %v1136 = vpack.c.bf16 %v1126, %v1125
  %v1137 = vpack.c.bf16 %v1128, %v1127
  %v1138 = vpack.c.bf16 %v1130, %v1129
  %s1139 = scalar_lea.vmem %s4, 24
  %v1140 = vld [vmem:[%s1139] sm:$0xf]
  %v1141 = vld [vmem:[%s1139 + $0x4] sm:$0xf]
  %v1144 = vunpack.c.l.b16 %v1140
  %v1145 = vunpack.c.l.b16 %v1141
  %v1146 = vpack.c.b16 %v1145, %v1144
  %v1149 = vsel %vm403, %v1131, 0
  %v1152 = vsel %vm403, %v1132, 0
  %v1155 = vsel %vm403, %v1133, 0
  %v1158 = vsel %vm403, %v1134, 0
  %v1161 = vsel %vm403, %v1135, 0
  %v1164 = vsel %vm403, %v1136, 0
  %v1167 = vsel %vm403, %v1137, 0
  %v1170 = vsel %vm403, %v1138, 0
  %1172 = vmatprep.subr.bf16.mxu0 0
  %1173 = vmatpush1.bf16.msra.mxu0 %v1146
  %1174 = vmatprep.subr.bf16.mxu0 0
  %1175 = vmatpush1.bf16.msra.mxu0 0
  %1176 = vmatprep.subr.bf16.mxu0 0
  %1177 = vmatpush1.bf16.msra.mxu0 0
  %1178 = vmatprep.subr.bf16.mxu0 0
  %1179 = vmatpush1.bf16.msra.mxu0 0
  %1180 = vmatprep.subr.bf16.mxu0 0
  %1181 = vmatpush1.bf16.msra.mxu0 0
  %1182 = vmatprep.subr.bf16.mxu0 0
  %1183 = vmatpush1.bf16.msra.mxu0 0
  %1184 = vmatprep.subr.bf16.mxu0 0
  %1185 = vmatpush1.bf16.msra.mxu0 0
  %1186 = vmatprep.subr.bf16.mxu0 0
  %1187 = vmatpush1.bf16.msra.mxu0 0
  %1188 = vmatprep.subr.bf16.mxu0 0
  %1189 = vmatpush1.bf16.msra.mxu0 0
  %1190 = vmatprep.subr.bf16.mxu0 0
  %1191 = vmatpush1.bf16.msra.mxu0 0
  %1192 = vmatprep.subr.bf16.mxu0 0
  %1193 = vmatpush1.bf16.msra.mxu0 0
  %1194 = vmatprep.subr.bf16.mxu0 0
  %1195 = vmatpush1.bf16.msra.mxu0 0
  %1196 = vmatprep.subr.bf16.mxu0 0
  %1197 = vmatpush1.bf16.msra.mxu0 0
  %1198 = vmatprep.subr.bf16.mxu0 0
  %1199 = vmatpush1.bf16.msra.mxu0 0
  %1200 = vmatprep.subr.bf16.mxu0 0
  %1201 = vmatpush1.bf16.msra.mxu0 0
  %1202 = vmatprep.subr.bf16.mxu0 0
  %1203 = vmatpush1.bf16.msra.mxu0 0
  %1204 = vmatprep.mubr.bf16.mxu0 0
  %1205 = vmatmul.mubr.bf16.gmra.mrb[0].mxu0 %v1149
  %v1206 = vpop.f32.mrb[0].mxu0
  %v1207 = vadd.f32 0.0, %v1206
  %v1208 = vpop.f32.mrb[0].mxu0
  %v1209 = vpop.f32.mrb[0].mxu0
  %v1210 = vadd.f32 0.0, %v1209
  %v1211 = vpop.f32.mrb[0].mxu0
  %1212 = vmatprep.mubr.bf16.mxu0 0
  %1213 = vmatmul.mubr.bf16.gmra.mrb[0].mxu0 %v1152
  %v1214 = vpop.f32.mrb[0].mxu0
  %v1215 = vadd.f32 0.0, %v1214
  %v1216 = vpop.f32.mrb[0].mxu0
  %v1217 = vpop.f32.mrb[0].mxu0
  %v1218 = vadd.f32 0.0, %v1217
  %v1219 = vpop.f32.mrb[0].mxu0
  %1220 = vmatprep.mubr.bf16.mxu0 0
  %1221 = vmatmul.mubr.bf16.gmra.mrb[0].mxu0 %v1155
  %v1222 = vpop.f32.mrb[0].mxu0
  %v1223 = vadd.f32 0.0, %v1222
  %v1224 = vpop.f32.mrb[0].mxu0
  %v1225 = vpop.f32.mrb[0].mxu0
  %v1226 = vadd.f32 0.0, %v1225
  %v1227 = vpop.f32.mrb[0].mxu0
  %1228 = vmatprep.mubr.bf16.mxu0 0
  %1229 = vmatmul.mubr.bf16.gmra.mrb[0].mxu0 %v1158
  %v1230 = vpop.f32.mrb[0].mxu0
  %v1231 = vadd.f32 0.0, %v1230
  %v1232 = vpop.f32.mrb[0].mxu0
  %v1233 = vpop.f32.mrb[0].mxu0
  %v1234 = vadd.f32 0.0, %v1233
  %v1235 = vpop.f32.mrb[0].mxu0
  %1236 = vmatprep.mubr.bf16.mxu0 0
  %1237 = vmatmul.mubr.bf16.gmra.mrb[0].mxu0 %v1161
  %v1238 = vpop.f32.mrb[0].mxu0
  %v1239 = vadd.f32 0.0, %v1238
  %v1240 = vpop.f32.mrb[0].mxu0
  %v1241 = vpop.f32.mrb[0].mxu0
  %v1242 = vadd.f32 0.0, %v1241
  %v1243 = vpop.f32.mrb[0].mxu0
  %1244 = vmatprep.mubr.bf16.mxu0 0
  %1245 = vmatmul.mubr.bf16.gmra.mrb[0].mxu0 %v1164
  %v1246 = vpop.f32.mrb[0].mxu0
  %v1247 = vadd.f32 0.0, %v1246
  %v1248 = vpop.f32.mrb[0].mxu0
  %v1249 = vpop.f32.mrb[0].mxu0
  %v1250 = vadd.f32 0.0, %v1249
  %v1251 = vpop.f32.mrb[0].mxu0
  %1252 = vmatprep.mubr.bf16.mxu0 0
  %1253 = vmatmul.mubr.bf16.gmra.mrb[0].mxu0 %v1167
  %v1254 = vpop.f32.mrb[0].mxu0
  %v1255 = vadd.f32 0.0, %v1254
  %v1256 = vpop.f32.mrb[0].mxu0
  %v1257 = vpop.f32.mrb[0].mxu0
  %v1258 = vadd.f32 0.0, %v1257
  %v1259 = vpop.f32.mrb[0].mxu0
  %1260 = vmatprep.mubr.bf16.mxu0 0
  %1261 = vmatmul.mubr.bf16.gmra.mrb[0].mxu0 %v1170
  %v1262 = vpop.f32.mrb[0].mxu0
  %v1263 = vadd.f32 0.0, %v1262
  %v1264 = vpop.f32.mrb[0].mxu0
  %v1265 = vpop.f32.mrb[0].mxu0
  %v1266 = vadd.f32 0.0, %v1265
  %v1267 = vpop.f32.mrb[0].mxu0
  %1268 = vdwg.mxu0
  %v1269 = vadd.f32 %v1099, %v1207
  %v1270 = vadd.f32 %v1100, %v1210
  %v1271 = vadd.f32 %v1101, %v1215
  %v1272 = vadd.f32 %v1102, %v1218
  %v1273 = vadd.f32 %v1103, %v1223
  %v1274 = vadd.f32 %v1104, %v1226
  %v1275 = vadd.f32 %v1105, %v1231
  %v1276 = vadd.f32 %v1106, %v1234
  %v1277 = vadd.f32 %v1107, %v1239
  %v1278 = vadd.f32 %v1108, %v1242
  %v1279 = vadd.f32 %v1109, %v1247
  %v1280 = vadd.f32 %v1110, %v1250
  %v1281 = vadd.f32 %v1111, %v1255
  %v1282 = vadd.f32 %v1112, %v1258
  %v1283 = vadd.f32 %v1113, %v1263
  %v1284 = vadd.f32 %v1114, %v1266
  %v1285 = vmax.f32 %v114, 0.0
  %v1286 = vmax.f32 %v115, 0.0
  %v1287 = vmax.f32 %v116, 0.0
  %v1288 = vmax.f32 %v117, 0.0
  %v1289 = vmax.f32 %v118, 0.0
  %v1290 = vmax.f32 %v119, 0.0
  %v1291 = vmax.f32 %v120, 0.0
  %v1292 = vmax.f32 %v121, 0.0
  %v1293 = vmax.f32 %v122, 0.0
  %v1294 = vmax.f32 %v123, 0.0
  %v1295 = vmax.f32 %v124, 0.0
  %v1296 = vmax.f32 %v125, 0.0
  %v1297 = vmax.f32 %v126, 0.0
  %v1298 = vmax.f32 %v127, 0.0
  %v1299 = vmax.f32 %v128, 0.0
  %v1300 = vmax.f32 %v129, 0.0
  %v1301 = vpack.c.bf16 %v1286, %v1285
  %v1302 = vpack.c.bf16 %v1288, %v1287
  %v1303 = vpack.c.bf16 %v1290, %v1289
  %v1304 = vpack.c.bf16 %v1292, %v1291
  %v1305 = vpack.c.bf16 %v1294, %v1293
  %v1306 = vpack.c.bf16 %v1296, %v1295
  %v1307 = vpack.c.bf16 %v1298, %v1297
  %v1308 = vpack.c.bf16 %v1300, %v1299
  %s1309 = scalar_lea.vmem %s4, 32
  %v1310 = vld [vmem:[%s1309] sm:$0xf]
  %v1311 = vld [vmem:[%s1309 + $0x4] sm:$0xf]
  %v1314 = vunpack.c.l.b16 %v1310
  %v1315 = vunpack.c.l.b16 %v1311
  %v1316 = vpack.c.b16 %v1315, %v1314
  %v1319 = vsel %vm403, %v1301, 0
  %v1322 = vsel %vm403, %v1302, 0
  %v1325 = vsel %vm403, %v1303, 0
  %v1328 = vsel %vm403, %v1304, 0
  %v1331 = vsel %vm403, %v1305, 0
  %v1334 = vsel %vm403, %v1306, 0
  %v1337 = vsel %vm403, %v1307, 0
  %v1340 = vsel %vm403, %v1308, 0
  %1342 = vmatprep.subr.bf16.mxu0 0
  %1343 = vmatpush1.bf16.msra.mxu0 %v1316
  %1344 = vmatprep.subr.bf16.mxu0 0
  %1345 = vmatpush1.bf16.msra.mxu0 0
  %1346 = vmatprep.subr.bf16.mxu0 0
  %1347 = vmatpush1.bf16.msra.mxu0 0
  %1348 = vmatprep.subr.bf16.mxu0 0
  %1349 = vmatpush1.bf16.msra.mxu0 0
  %1350 = vmatprep.subr.bf16.mxu0 0
  %1351 = vmatpush1.bf16.msra.mxu0 0
  %1352 = vmatprep.subr.bf16.mxu0 0
  %1353 = vmatpush1.bf16.msra.mxu0 0
  %1354 = vmatprep.subr.bf16.mxu0 0
  %1355 = vmatpush1.bf16.msra.mxu0 0
  %1356 = vmatprep.subr.bf16.mxu0 0
  %1357 = vmatpush1.bf16.msra.mxu0 0
  %1358 = vmatprep.subr.bf16.mxu0 0
  %1359 = vmatpush1.bf16.msra.mxu0 0
  %1360 = vmatprep.subr.bf16.mxu0 0
  %1361 = vmatpush1.bf16.msra.mxu0 0
  %1362 = vmatprep.subr.bf16.mxu0 0
  %1363 = vmatpush1.bf16.msra.mxu0 0
  %1364 = vmatprep.subr.bf16.mxu0 0
  %1365 = vmatpush1.bf16.msra.mxu0 0
  %1366 = vmatprep.subr.bf16.mxu0 0
  %1367 = vmatpush1.bf16.msra.mxu0 0
  %1368 = vmatprep.subr.bf16.mxu0 0
  %1369 = vmatpush1.bf16.msra.mxu0 0
  %1370 = vmatprep.subr.bf16.mxu0 0
  %1371 = vmatpush1.bf16.msra.mxu0 0
  %1372 = vmatprep.subr.bf16.mxu0 0
  %1373 = vmatpush1.bf16.msra.mxu0 0
  %1374 = vmatprep.mubr.bf16.mxu0 0
  %1375 = vmatmul.mubr.bf16.gmra.mrb[0].mxu0 %v1319
  %v1376 = vpop.f32.mrb[0].mxu0
  %v1377 = vadd.f32 0.0, %v1376
  %v1378 = vpop.f32.mrb[0].mxu0
  %v1379 = vpop.f32.mrb[0].mxu0
  %v1380 = vadd.f32 0.0, %v1379
  %v1381 = vpop.f32.mrb[0].mxu0
  %1382 = vmatprep.mubr.bf16.mxu0 0
  %1383 = vmatmul.mubr.bf16.gmra.mrb[0].mxu0 %v1322
  %v1384 = vpop.f32.mrb[0].mxu0
  %v1385 = vadd.f32 0.0, %v1384
  %v1386 = vpop.f32.mrb[0].mxu0
  %v1387 = vpop.f32.mrb[0].mxu0
  %v1388 = vadd.f32 0.0, %v1387
  %v1389 = vpop.f32.mrb[0].mxu0
  %1390 = vmatprep.mubr.bf16.mxu0 0
  %1391 = vmatmul.mubr.bf16.gmra.mrb[0].mxu0 %v1325
  %v1392 = vpop.f32.mrb[0].mxu0
  %v1393 = vadd.f32 0.0, %v1392
  %v1394 = vpop.f32.mrb[0].mxu0
  %v1395 = vpop.f32.mrb[0].mxu0
  %v1396 = vadd.f32 0.0, %v1395
  %v1397 = vpop.f32.mrb[0].mxu0
  %1398 = vmatprep.mubr.bf16.mxu0 0
  %1399 = vmatmul.mubr.bf16.gmra.mrb[0].mxu0 %v1328
  %v1400 = vpop.f32.mrb[0].mxu0
  %v1401 = vadd.f32 0.0, %v1400
  %v1402 = vpop.f32.mrb[0].mxu0
  %v1403 = vpop.f32.mrb[0].mxu0
  %v1404 = vadd.f32 0.0, %v1403
  %v1405 = vpop.f32.mrb[0].mxu0
  %1406 = vmatprep.mubr.bf16.mxu0 0
  %1407 = vmatmul.mubr.bf16.gmra.mrb[0].mxu0 %v1331
  %v1408 = vpop.f32.mrb[0].mxu0
  %v1409 = vadd.f32 0.0, %v1408
  %v1410 = vpop.f32.mrb[0].mxu0
  %v1411 = vpop.f32.mrb[0].mxu0
  %v1412 = vadd.f32 0.0, %v1411
  %v1413 = vpop.f32.mrb[0].mxu0
  %1414 = vmatprep.mubr.bf16.mxu0 0
  %1415 = vmatmul.mubr.bf16.gmra.mrb[0].mxu0 %v1334
  %v1416 = vpop.f32.mrb[0].mxu0
  %v1417 = vadd.f32 0.0, %v1416
  %v1418 = vpop.f32.mrb[0].mxu0
  %v1419 = vpop.f32.mrb[0].mxu0
  %v1420 = vadd.f32 0.0, %v1419
  %v1421 = vpop.f32.mrb[0].mxu0
  %1422 = vmatprep.mubr.bf16.mxu0 0
  %1423 = vmatmul.mubr.bf16.gmra.mrb[0].mxu0 %v1337
  %v1424 = vpop.f32.mrb[0].mxu0
  %v1425 = vadd.f32 0.0, %v1424
  %v1426 = vpop.f32.mrb[0].mxu0
  %v1427 = vpop.f32.mrb[0].mxu0
  %v1428 = vadd.f32 0.0, %v1427
  %v1429 = vpop.f32.mrb[0].mxu0
  %1430 = vmatprep.mubr.bf16.mxu0 0
  %1431 = vmatmul.mubr.bf16.gmra.mrb[0].mxu0 %v1340
  %v1432 = vpop.f32.mrb[0].mxu0
  %v1433 = vadd.f32 0.0, %v1432
  %v1434 = vpop.f32.mrb[0].mxu0
  %v1435 = vpop.f32.mrb[0].mxu0
  %v1436 = vadd.f32 0.0, %v1435
  %v1437 = vpop.f32.mrb[0].mxu0
  %1438 = vdwg.mxu0
  %v1439 = vadd.f32 %v1269, %v1377
  %v1440 = vadd.f32 %v1270, %v1380
  %v1441 = vadd.f32 %v1271, %v1385
  %v1442 = vadd.f32 %v1272, %v1388
  %v1443 = vadd.f32 %v1273, %v1393
  %v1444 = vadd.f32 %v1274, %v1396
  %v1445 = vadd.f32 %v1275, %v1401
  %v1446 = vadd.f32 %v1276, %v1404
  %v1447 = vadd.f32 %v1277, %v1409
  %v1448 = vadd.f32 %v1278, %v1412
  %v1449 = vadd.f32 %v1279, %v1417
  %v1450 = vadd.f32 %v1280, %v1420
  %v1451 = vadd.f32 %v1281, %v1425
  %v1452 = vadd.f32 %v1282, %v1428
  %v1453 = vadd.f32 %v1283, %v1433
  %v1454 = vadd.f32 %v1284, %v1436
  %v1455 = vmax.f32 %v83, 0.0
  %v1456 = vmax.f32 %v85, 0.0
  %v1457 = vmax.f32 %v87, 0.0
  %v1458 = vmax.f32 %v89, 0.0
  %v1459 = vmax.f32 %v91, 0.0
  %v1460 = vmax.f32 %v93, 0.0
  %v1461 = vmax.f32 %v95, 0.0
  %v1462 = vmax.f32 %v97, 0.0
  %v1463 = vmax.f32 %v99, 0.0
  %v1464 = vmax.f32 %v101, 0.0
  %v1465 = vmax.f32 %v103, 0.0
  %v1466 = vmax.f32 %v105, 0.0
  %v1467 = vmax.f32 %v107, 0.0
  %v1468 = vmax.f32 %v109, 0.0
  %v1469 = vmax.f32 %v111, 0.0
  %v1470 = vmax.f32 %v113, 0.0
  %v1503 = vrot.slane %v1115, 1
  %v1504 = vrot.slane %v1455, 1
  %v1505 = vsel %vm162, %v1503, %v1504
  %v1506 = vrot.slane %v1116, 1
  %v1507 = vrot.slane %v1456, 1
  %v1508 = vsel %vm162, %v1506, %v1507
  %v1509 = vrot.slane %v1117, 1
  %v1510 = vrot.slane %v1457, 1
  %v1511 = vsel %vm162, %v1509, %v1510
  %v1512 = vrot.slane %v1118, 1
  %v1513 = vrot.slane %v1458, 1
  %v1514 = vsel %vm162, %v1512, %v1513
  %v1515 = vrot.slane %v1119, 1
  %v1516 = vrot.slane %v1459, 1
  %v1517 = vsel %vm162, %v1515, %v1516
  %v1518 = vrot.slane %v1120, 1
  %v1519 = vrot.slane %v1460, 1
  %v1520 = vsel %vm162, %v1518, %v1519
  %v1521 = vrot.slane %v1121, 1
  %v1522 = vrot.slane %v1461, 1
  %v1523 = vsel %vm162, %v1521, %v1522
  %v1524 = vrot.slane %v1122, 1
  %v1525 = vrot.slane %v1462, 1
  %v1526 = vsel %vm162, %v1524, %v1525
  %v1527 = vrot.slane %v1123, 1
  %v1528 = vrot.slane %v1463, 1
  %v1529 = vsel %vm162, %v1527, %v1528
  %v1530 = vrot.slane %v1124, 1
  %v1531 = vrot.slane %v1464, 1
  %v1532 = vsel %vm162, %v1530, %v1531
  %v1533 = vrot.slane %v1125, 1
  %v1534 = vrot.slane %v1465, 1
  %v1535 = vsel %vm162, %v1533, %v1534
  %v1536 = vrot.slane %v1126, 1
  %v1537 = vrot.slane %v1466, 1
  %v1538 = vsel %vm162, %v1536, %v1537
  %v1539 = vrot.slane %v1127, 1
  %v1540 = vrot.slane %v1467, 1
  %v1541 = vsel %vm162, %v1539, %v1540
  %v1542 = vrot.slane %v1128, 1
  %v1543 = vrot.slane %v1468, 1
  %v1544 = vsel %vm162, %v1542, %v1543
  %v1545 = vrot.slane %v1129, 1
  %v1546 = vrot.slane %v1469, 1
  %v1547 = vsel %vm162, %v1545, %v1546
  %v1548 = vrot.slane %v1130, 1
  %v1549 = vrot.slane %v1470, 1
  %v1550 = vsel %vm162, %v1548, %v1549
  %v1567 = vpack.c.bf16 %v1508, %v1505
  %v1568 = vpack.c.bf16 %v1514, %v1511
  %v1569 = vpack.c.bf16 %v1520, %v1517
  %v1570 = vpack.c.bf16 %v1526, %v1523
  %v1571 = vpack.c.bf16 %v1532, %v1529
  %v1572 = vpack.c.bf16 %v1538, %v1535
  %v1573 = vpack.c.bf16 %v1544, %v1541
  %v1574 = vpack.c.bf16 %v1550, %v1547
  %s1575 = scalar_lea.vmem %s4, 40
  %v1576 = vld [vmem:[%s1575] sm:$0xf]
  %v1577 = vld [vmem:[%s1575 + $0x4] sm:$0xf]
  %v1580 = vunpack.c.l.b16 %v1576
  %v1581 = vunpack.c.l.b16 %v1577
  %v1582 = vpack.c.b16 %v1581, %v1580
  %v1585 = vsel %vm403, %v1567, 0
  %v1588 = vsel %vm403, %v1568, 0
  %v1591 = vsel %vm403, %v1569, 0
  %v1594 = vsel %vm403, %v1570, 0
  %v1597 = vsel %vm403, %v1571, 0
  %v1600 = vsel %vm403, %v1572, 0
  %v1603 = vsel %vm403, %v1573, 0
  %v1606 = vsel %vm403, %v1574, 0
  %1608 = vmatprep.subr.bf16.mxu0 0
  %1609 = vmatpush1.bf16.msra.mxu0 %v1582
  %1610 = vmatprep.subr.bf16.mxu0 0
  %1611 = vmatpush1.bf16.msra.mxu0 0
  %1612 = vmatprep.subr.bf16.mxu0 0
  %1613 = vmatpush1.bf16.msra.mxu0 0
  %1614 = vmatprep.subr.bf16.mxu0 0
  %1615 = vmatpush1.bf16.msra.mxu0 0
  %1616 = vmatprep.subr.bf16.mxu0 0
  %1617 = vmatpush1.bf16.msra.mxu0 0
  %1618 = vmatprep.subr.bf16.mxu0 0
  %1619 = vmatpush1.bf16.msra.mxu0 0
  %1620 = vmatprep.subr.bf16.mxu0 0
  %1621 = vmatpush1.bf16.msra.mxu0 0
  %1622 = vmatprep.subr.bf16.mxu0 0
  %1623 = vmatpush1.bf16.msra.mxu0 0
  %1624 = vmatprep.subr.bf16.mxu0 0
  %1625 = vmatpush1.bf16.msra.mxu0 0
  %1626 = vmatprep.subr.bf16.mxu0 0
  %1627 = vmatpush1.bf16.msra.mxu0 0
  %1628 = vmatprep.subr.bf16.mxu0 0
  %1629 = vmatpush1.bf16.msra.mxu0 0
  %1630 = vmatprep.subr.bf16.mxu0 0
  %1631 = vmatpush1.bf16.msra.mxu0 0
  %1632 = vmatprep.subr.bf16.mxu0 0
  %1633 = vmatpush1.bf16.msra.mxu0 0
  %1634 = vmatprep.subr.bf16.mxu0 0
  %1635 = vmatpush1.bf16.msra.mxu0 0
  %1636 = vmatprep.subr.bf16.mxu0 0
  %1637 = vmatpush1.bf16.msra.mxu0 0
  %1638 = vmatprep.subr.bf16.mxu0 0
  %1639 = vmatpush1.bf16.msra.mxu0 0
  %1640 = vmatprep.mubr.bf16.mxu0 0
  %1641 = vmatmul.mubr.bf16.gmra.mrb[0].mxu0 %v1585
  %v1642 = vpop.f32.mrb[0].mxu0
  %v1643 = vadd.f32 0.0, %v1642
  %v1644 = vpop.f32.mrb[0].mxu0
  %v1645 = vpop.f32.mrb[0].mxu0
  %v1646 = vadd.f32 0.0, %v1645
  %v1647 = vpop.f32.mrb[0].mxu0
  %1648 = vmatprep.mubr.bf16.mxu0 0
  %1649 = vmatmul.mubr.bf16.gmra.mrb[0].mxu0 %v1588
  %v1650 = vpop.f32.mrb[0].mxu0
  %v1651 = vadd.f32 0.0, %v1650
  %v1652 = vpop.f32.mrb[0].mxu0
  %v1653 = vpop.f32.mrb[0].mxu0
  %v1654 = vadd.f32 0.0, %v1653
  %v1655 = vpop.f32.mrb[0].mxu0
  %1656 = vmatprep.mubr.bf16.mxu0 0
  %1657 = vmatmul.mubr.bf16.gmra.mrb[0].mxu0 %v1591
  %v1658 = vpop.f32.mrb[0].mxu0
  %v1659 = vadd.f32 0.0, %v1658
  %v1660 = vpop.f32.mrb[0].mxu0
  %v1661 = vpop.f32.mrb[0].mxu0
  %v1662 = vadd.f32 0.0, %v1661
  %v1663 = vpop.f32.mrb[0].mxu0
  %1664 = vmatprep.mubr.bf16.mxu0 0
  %1665 = vmatmul.mubr.bf16.gmra.mrb[0].mxu0 %v1594
  %v1666 = vpop.f32.mrb[0].mxu0
  %v1667 = vadd.f32 0.0, %v1666
  %v1668 = vpop.f32.mrb[0].mxu0
  %v1669 = vpop.f32.mrb[0].mxu0
  %v1670 = vadd.f32 0.0, %v1669
  %v1671 = vpop.f32.mrb[0].mxu0
  %1672 = vmatprep.mubr.bf16.mxu0 0
  %1673 = vmatmul.mubr.bf16.gmra.mrb[0].mxu0 %v1597
  %v1674 = vpop.f32.mrb[0].mxu0
  %v1675 = vadd.f32 0.0, %v1674
  %v1676 = vpop.f32.mrb[0].mxu0
  %v1677 = vpop.f32.mrb[0].mxu0
  %v1678 = vadd.f32 0.0, %v1677
  %v1679 = vpop.f32.mrb[0].mxu0
  %1680 = vmatprep.mubr.bf16.mxu0 0
  %1681 = vmatmul.mubr.bf16.gmra.mrb[0].mxu0 %v1600
  %v1682 = vpop.f32.mrb[0].mxu0
  %v1683 = vadd.f32 0.0, %v1682
  %v1684 = vpop.f32.mrb[0].mxu0
  %v1685 = vpop.f32.mrb[0].mxu0
  %v1686 = vadd.f32 0.0, %v1685
  %v1687 = vpop.f32.mrb[0].mxu0
  %1688 = vmatprep.mubr.bf16.mxu0 0
  %1689 = vmatmul.mubr.bf16.gmra.mrb[0].mxu0 %v1603
  %v1690 = vpop.f32.mrb[0].mxu0
  %v1691 = vadd.f32 0.0, %v1690
  %v1692 = vpop.f32.mrb[0].mxu0
  %v1693 = vpop.f32.mrb[0].mxu0
  %v1694 = vadd.f32 0.0, %v1693
  %v1695 = vpop.f32.mrb[0].mxu0
  %1696 = vmatprep.mubr.bf16.mxu0 0
  %1697 = vmatmul.mubr.bf16.gmra.mrb[0].mxu0 %v1606
  %v1698 = vpop.f32.mrb[0].mxu0
  %v1699 = vadd.f32 0.0, %v1698
  %v1700 = vpop.f32.mrb[0].mxu0
  %v1701 = vpop.f32.mrb[0].mxu0
  %v1702 = vadd.f32 0.0, %v1701
  %v1703 = vpop.f32.mrb[0].mxu0
  %1704 = vdwg.mxu0
  %v1705 = vadd.f32 %v1439, %v1643
  %v1706 = vadd.f32 %v1440, %v1646
  %v1707 = vadd.f32 %v1441, %v1651
  %v1708 = vadd.f32 %v1442, %v1654
  %v1709 = vadd.f32 %v1443, %v1659
  %v1710 = vadd.f32 %v1444, %v1662
  %v1711 = vadd.f32 %v1445, %v1667
  %v1712 = vadd.f32 %v1446, %v1670
  %v1713 = vadd.f32 %v1447, %v1675
  %v1714 = vadd.f32 %v1448, %v1678
  %v1715 = vadd.f32 %v1449, %v1683
  %v1716 = vadd.f32 %v1450, %v1686
  %v1717 = vadd.f32 %v1451, %v1691
  %v1718 = vadd.f32 %v1452, %v1694
  %v1719 = vadd.f32 %v1453, %v1699
  %v1720 = vadd.f32 %v1454, %v1702
  %v1721 = vmax.f32 %v44, 0.0
  %v1722 = vmax.f32 %v62, 0.0
  %v1723 = vpack.c.bf16 %v544, %v543
  %v1724 = vpack.c.bf16 %v546, %v545
  %v1725 = vpack.c.bf16 %v548, %v547
  %v1726 = vpack.c.bf16 %v1721, %v549
  %v1727 = vpack.c.bf16 %v552, %v551
  %v1728 = vpack.c.bf16 %v554, %v553
  %v1729 = vpack.c.bf16 %v556, %v555
  %v1730 = vpack.c.bf16 %v1722, %v557
  %s1731 = scalar_lea.vmem %s4, 48
  %v1732 = vld [vmem:[%s1731] sm:$0xf]
  %v1733 = vld [vmem:[%s1731 + $0x4] sm:$0xf]
  %v1736 = vunpack.c.l.b16 %v1732
  %v1737 = vunpack.c.l.b16 %v1733
  %v1738 = vpack.c.b16 %v1737, %v1736
  %v1741 = vsel %vm403, %v1723, 0
  %v1744 = vsel %vm403, %v1724, 0
  %v1747 = vsel %vm403, %v1725, 0
  %v1750 = vsel %vm403, %v1726, 0
  %v1753 = vsel %vm403, %v1727, 0
  %v1756 = vsel %vm403, %v1728, 0
  %v1759 = vsel %vm403, %v1729, 0
  %v1762 = vsel %vm403, %v1730, 0
  %1764 = vmatprep.subr.bf16.mxu0 0
  %1765 = vmatpush1.bf16.msra.mxu0 %v1738
  %1766 = vmatprep.subr.bf16.mxu0 0
  %1767 = vmatpush1.bf16.msra.mxu0 0
  %1768 = vmatprep.subr.bf16.mxu0 0
  %1769 = vmatpush1.bf16.msra.mxu0 0
  %1770 = vmatprep.subr.bf16.mxu0 0
  %1771 = vmatpush1.bf16.msra.mxu0 0
  %1772 = vmatprep.subr.bf16.mxu0 0
  %1773 = vmatpush1.bf16.msra.mxu0 0
  %1774 = vmatprep.subr.bf16.mxu0 0
  %1775 = vmatpush1.bf16.msra.mxu0 0
  %1776 = vmatprep.subr.bf16.mxu0 0
  %1777 = vmatpush1.bf16.msra.mxu0 0
  %1778 = vmatprep.subr.bf16.mxu0 0
  %1779 = vmatpush1.bf16.msra.mxu0 0
  %1780 = vmatprep.subr.bf16.mxu0 0
  %1781 = vmatpush1.bf16.msra.mxu0 0
  %1782 = vmatprep.subr.bf16.mxu0 0
  %1783 = vmatpush1.bf16.msra.mxu0 0
  %1784 = vmatprep.subr.bf16.mxu0 0
  %1785 = vmatpush1.bf16.msra.mxu0 0
  %1786 = vmatprep.subr.bf16.mxu0 0
  %1787 = vmatpush1.bf16.msra.mxu0 0
  %1788 = vmatprep.subr.bf16.mxu0 0
  %1789 = vmatpush1.bf16.msra.mxu0 0
  %1790 = vmatprep.subr.bf16.mxu0 0
  %1791 = vmatpush1.bf16.msra.mxu0 0
  %1792 = vmatprep.subr.bf16.mxu0 0
  %1793 = vmatpush1.bf16.msra.mxu0 0
  %1794 = vmatprep.subr.bf16.mxu0 0
  %1795 = vmatpush1.bf16.msra.mxu0 0
  %1796 = vmatprep.mubr.bf16.mxu0 0
  %1797 = vmatmul.mubr.bf16.gmra.mrb[0].mxu0 %v1741
  %v1798 = vpop.f32.mrb[0].mxu0
  %v1799 = vadd.f32 0.0, %v1798
  %v1800 = vpop.f32.mrb[0].mxu0
  %v1801 = vpop.f32.mrb[0].mxu0
  %v1802 = vadd.f32 0.0, %v1801
  %v1803 = vpop.f32.mrb[0].mxu0
  %1804 = vmatprep.mubr.bf16.mxu0 0
  %1805 = vmatmul.mubr.bf16.gmra.mrb[0].mxu0 %v1744
  %v1806 = vpop.f32.mrb[0].mxu0
  %v1807 = vadd.f32 0.0, %v1806
  %v1808 = vpop.f32.mrb[0].mxu0
  %v1809 = vpop.f32.mrb[0].mxu0
  %v1810 = vadd.f32 0.0, %v1809
  %v1811 = vpop.f32.mrb[0].mxu0
  %1812 = vmatprep.mubr.bf16.mxu0 0
  %1813 = vmatmul.mubr.bf16.gmra.mrb[0].mxu0 %v1747
  %v1814 = vpop.f32.mrb[0].mxu0
  %v1815 = vadd.f32 0.0, %v1814
  %v1816 = vpop.f32.mrb[0].mxu0
  %v1817 = vpop.f32.mrb[0].mxu0
  %v1818 = vadd.f32 0.0, %v1817
  %v1819 = vpop.f32.mrb[0].mxu0
  %1820 = vmatprep.mubr.bf16.mxu0 0
  %1821 = vmatmul.mubr.bf16.gmra.mrb[0].mxu0 %v1750
  %v1822 = vpop.f32.mrb[0].mxu0
  %v1823 = vadd.f32 0.0, %v1822
  %v1824 = vpop.f32.mrb[0].mxu0
  %v1825 = vpop.f32.mrb[0].mxu0
  %v1826 = vadd.f32 0.0, %v1825
  %v1827 = vpop.f32.mrb[0].mxu0
  %1828 = vmatprep.mubr.bf16.mxu0 0
  %1829 = vmatmul.mubr.bf16.gmra.mrb[0].mxu0 %v1753
  %v1830 = vpop.f32.mrb[0].mxu0
  %v1831 = vadd.f32 0.0, %v1830
  %v1832 = vpop.f32.mrb[0].mxu0
  %v1833 = vpop.f32.mrb[0].mxu0
  %v1834 = vadd.f32 0.0, %v1833
  %v1835 = vpop.f32.mrb[0].mxu0
  %1836 = vmatprep.mubr.bf16.mxu0 0
  %1837 = vmatmul.mubr.bf16.gmra.mrb[0].mxu0 %v1756
  %v1838 = vpop.f32.mrb[0].mxu0
  %v1839 = vadd.f32 0.0, %v1838
  %v1840 = vpop.f32.mrb[0].mxu0
  %v1841 = vpop.f32.mrb[0].mxu0
  %v1842 = vadd.f32 0.0, %v1841
  %v1843 = vpop.f32.mrb[0].mxu0
  %1844 = vmatprep.mubr.bf16.mxu0 0
  %1845 = vmatmul.mubr.bf16.gmra.mrb[0].mxu0 %v1759
  %v1846 = vpop.f32.mrb[0].mxu0
  %v1847 = vadd.f32 0.0, %v1846
  %v1848 = vpop.f32.mrb[0].mxu0
  %v1849 = vpop.f32.mrb[0].mxu0
  %v1850 = vadd.f32 0.0, %v1849
  %v1851 = vpop.f32.mrb[0].mxu0
  %1852 = vmatprep.mubr.bf16.mxu0 0
  %1853 = vmatmul.mubr.bf16.gmra.mrb[0].mxu0 %v1762
  %v1854 = vpop.f32.mrb[0].mxu0
  %v1855 = vadd.f32 0.0, %v1854
  %v1856 = vpop.f32.mrb[0].mxu0
  %v1857 = vpop.f32.mrb[0].mxu0
  %v1858 = vadd.f32 0.0, %v1857
  %v1859 = vpop.f32.mrb[0].mxu0
  %1860 = vdwg.mxu0
  %v1861 = vadd.f32 %v1705, %v1799
  %v1862 = vadd.f32 %v1706, %v1802
  %v1863 = vadd.f32 %v1707, %v1807
  %v1864 = vadd.f32 %v1708, %v1810
  %v1865 = vadd.f32 %v1709, %v1815
  %v1866 = vadd.f32 %v1710, %v1818
  %v1867 = vadd.f32 %v1711, %v1823
  %v1868 = vadd.f32 %v1712, %v1826
  %v1869 = vadd.f32 %v1713, %v1831
  %v1870 = vadd.f32 %v1714, %v1834
  %v1871 = vadd.f32 %v1715, %v1839
  %v1872 = vadd.f32 %v1716, %v1842
  %v1873 = vadd.f32 %v1717, %v1847
  %v1874 = vadd.f32 %v1718, %v1850
  %v1875 = vadd.f32 %v1719, %v1855
  %v1876 = vadd.f32 %v1720, %v1858
  %v1877 = vmax.f32 %v72, 0.0
  %v1878 = vmax.f32 %v81, 0.0
  %v1879 = vpack.c.bf16 %v570, %v569
  %v1880 = vpack.c.bf16 %v572, %v571
  %v1881 = vpack.c.bf16 %v574, %v573
  %v1882 = vpack.c.bf16 %v1877, %v575
  %v1883 = vpack.c.bf16 %v578, %v577
  %v1884 = vpack.c.bf16 %v580, %v579
  %v1885 = vpack.c.bf16 %v582, %v581
  %v1886 = vpack.c.bf16 %v1878, %v583
  %s1887 = scalar_lea.vmem %s4, 56
  %v1888 = vld [vmem:[%s1887] sm:$0xf]
  %v1889 = vld [vmem:[%s1887 + $0x4] sm:$0xf]
  %v1892 = vunpack.c.l.b16 %v1888
  %v1893 = vunpack.c.l.b16 %v1889
  %v1894 = vpack.c.b16 %v1893, %v1892
  %v1897 = vsel %vm403, %v1879, 0
  %v1900 = vsel %vm403, %v1880, 0
  %v1903 = vsel %vm403, %v1881, 0
  %v1906 = vsel %vm403, %v1882, 0
  %v1909 = vsel %vm403, %v1883, 0
  %v1912 = vsel %vm403, %v1884, 0
  %v1915 = vsel %vm403, %v1885, 0
  %v1918 = vsel %vm403, %v1886, 0
  %1920 = vmatprep.subr.bf16.mxu0 0
  %1921 = vmatpush1.bf16.msra.mxu0 %v1894
  %1922 = vmatprep.subr.bf16.mxu0 0
  %1923 = vmatpush1.bf16.msra.mxu0 0
  %1924 = vmatprep.subr.bf16.mxu0 0
  %1925 = vmatpush1.bf16.msra.mxu0 0
  %1926 = vmatprep.subr.bf16.mxu0 0
  %1927 = vmatpush1.bf16.msra.mxu0 0
  %1928 = vmatprep.subr.bf16.mxu0 0
  %1929 = vmatpush1.bf16.msra.mxu0 0
  %1930 = vmatprep.subr.bf16.mxu0 0
  %1931 = vmatpush1.bf16.msra.mxu0 0
  %1932 = vmatprep.subr.bf16.mxu0 0
  %1933 = vmatpush1.bf16.msra.mxu0 0
  %1934 = vmatprep.subr.bf16.mxu0 0
  %1935 = vmatpush1.bf16.msra.mxu0 0
  %1936 = vmatprep.subr.bf16.mxu0 0
  %1937 = vmatpush1.bf16.msra.mxu0 0
  %1938 = vmatprep.subr.bf16.mxu0 0
  %1939 = vmatpush1.bf16.msra.mxu0 0
  %1940 = vmatprep.subr.bf16.mxu0 0
  %1941 = vmatpush1.bf16.msra.mxu0 0
  %1942 = vmatprep.subr.bf16.mxu0 0
  %1943 = vmatpush1.bf16.msra.mxu0 0
  %1944 = vmatprep.subr.bf16.mxu0 0
  %1945 = vmatpush1.bf16.msra.mxu0 0
  %1946 = vmatprep.subr.bf16.mxu0 0
  %1947 = vmatpush1.bf16.msra.mxu0 0
  %1948 = vmatprep.subr.bf16.mxu0 0
  %1949 = vmatpush1.bf16.msra.mxu0 0
  %1950 = vmatprep.subr.bf16.mxu0 0
  %1951 = vmatpush1.bf16.msra.mxu0 0
  %1952 = vmatprep.mubr.bf16.mxu0 0
  %1953 = vmatmul.mubr.bf16.gmra.mrb[0].mxu0 %v1897
  %v1954 = vpop.f32.mrb[0].mxu0
  %v1955 = vadd.f32 0.0, %v1954
  %v1956 = vpop.f32.mrb[0].mxu0
  %v1957 = vpop.f32.mrb[0].mxu0
  %v1958 = vadd.f32 0.0, %v1957
  %v1959 = vpop.f32.mrb[0].mxu0
  %1960 = vmatprep.mubr.bf16.mxu0 0
  %1961 = vmatmul.mubr.bf16.gmra.mrb[0].mxu0 %v1900
  %v1962 = vpop.f32.mrb[0].mxu0
  %v1963 = vadd.f32 0.0, %v1962
  %v1964 = vpop.f32.mrb[0].mxu0
  %v1965 = vpop.f32.mrb[0].mxu0
  %v1966 = vadd.f32 0.0, %v1965
  %v1967 = vpop.f32.mrb[0].mxu0
  %1968 = vmatprep.mubr.bf16.mxu0 0
  %1969 = vmatmul.mubr.bf16.gmra.mrb[0].mxu0 %v1903
  %v1970 = vpop.f32.mrb[0].mxu0
  %v1971 = vadd.f32 0.0, %v1970
  %v1972 = vpop.f32.mrb[0].mxu0
  %v1973 = vpop.f32.mrb[0].mxu0
  %v1974 = vadd.f32 0.0, %v1973
  %v1975 = vpop.f32.mrb[0].mxu0
  %1976 = vmatprep.mubr.bf16.mxu0 0
  %1977 = vmatmul.mubr.bf16.gmra.mrb[0].mxu0 %v1906
  %v1978 = vpop.f32.mrb[0].mxu0
  %v1979 = vadd.f32 0.0, %v1978
  %v1980 = vpop.f32.mrb[0].mxu0
  %v1981 = vpop.f32.mrb[0].mxu0
  %v1982 = vadd.f32 0.0, %v1981
  %v1983 = vpop.f32.mrb[0].mxu0
  %1984 = vmatprep.mubr.bf16.mxu0 0
  %1985 = vmatmul.mubr.bf16.gmra.mrb[0].mxu0 %v1909
  %v1986 = vpop.f32.mrb[0].mxu0
  %v1987 = vadd.f32 0.0, %v1986
  %v1988 = vpop.f32.mrb[0].mxu0
  %v1989 = vpop.f32.mrb[0].mxu0
  %v1990 = vadd.f32 0.0, %v1989
  %v1991 = vpop.f32.mrb[0].mxu0
  %1992 = vmatprep.mubr.bf16.mxu0 0
  %1993 = vmatmul.mubr.bf16.gmra.mrb[0].mxu0 %v1912
  %v1994 = vpop.f32.mrb[0].mxu0
  %v1995 = vadd.f32 0.0, %v1994
  %v1996 = vpop.f32.mrb[0].mxu0
  %v1997 = vpop.f32.mrb[0].mxu0
  %v1998 = vadd.f32 0.0, %v1997
  %v1999 = vpop.f32.mrb[0].mxu0
  %2000 = vmatprep.mubr.bf16.mxu0 0
  %2001 = vmatmul.mubr.bf16.gmra.mrb[0].mxu0 %v1915
  %v2002 = vpop.f32.mrb[0].mxu0
  %v2003 = vadd.f32 0.0, %v2002
  %v2004 = vpop.f32.mrb[0].mxu0
  %v2005 = vpop.f32.mrb[0].mxu0
  %v2006 = vadd.f32 0.0, %v2005
  %v2007 = vpop.f32.mrb[0].mxu0
  %2008 = vmatprep.mubr.bf16.mxu0 0
  %2009 = vmatmul.mubr.bf16.gmra.mrb[0].mxu0 %v1918
  %v2010 = vpop.f32.mrb[0].mxu0
  %v2011 = vadd.f32 0.0, %v2010
  %v2012 = vpop.f32.mrb[0].mxu0
  %v2013 = vpop.f32.mrb[0].mxu0
  %v2014 = vadd.f32 0.0, %v2013
  %v2015 = vpop.f32.mrb[0].mxu0
  %2016 = vdwg.mxu0
  %v2017 = vadd.f32 %v1861, %v1955
  %v2018 = vadd.f32 %v1862, %v1958
  %v2019 = vadd.f32 %v1863, %v1963
  %v2020 = vadd.f32 %v1864, %v1966
  %v2021 = vadd.f32 %v1865, %v1971
  %v2022 = vadd.f32 %v1866, %v1974
  %v2023 = vadd.f32 %v1867, %v1979
  %v2024 = vadd.f32 %v1868, %v1982
  %v2025 = vadd.f32 %v1869, %v1987
  %v2026 = vadd.f32 %v1870, %v1990
  %v2027 = vadd.f32 %v1871, %v1995
  %v2028 = vadd.f32 %v1872, %v1998
  %v2029 = vadd.f32 %v1873, %v2003
  %v2030 = vadd.f32 %v1874, %v2006
  %v2031 = vadd.f32 %v1875, %v2011
  %v2032 = vadd.f32 %v1876, %v2014
  %v2033 = vmax.f32 %v45, 0.0
  %v2034 = vmax.f32 %v63, 0.0
  %v2039 = vrot.slane %v1721, 1
  %v2040 = vrot.slane %v2033, 1
  %v2041 = vsel %vm162, %v2039, %v2040
  %v2042 = vrot.slane %v1722, 1
  %v2043 = vrot.slane %v2034, 1
  %v2044 = vsel %vm162, %v2042, %v2043
  %v2047 = vpack.c.bf16 %v905, %v902
  %v2048 = vpack.c.bf16 %v911, %v908
  %v2049 = vpack.c.bf16 %v917, %v914
  %v2050 = vpack.c.bf16 %v2041, %v920
  %v2051 = vpack.c.bf16 %v929, %v926
  %v2052 = vpack.c.bf16 %v935, %v932
  %v2053 = vpack.c.bf16 %v941, %v938
  %v2054 = vpack.c.bf16 %v2044, %v944
  %s2055 = scalar_lea.vmem %s4, 64
  %v2056 = vld [vmem:[%s2055] sm:$0xf]
  %v2057 = vld [vmem:[%s2055 + $0x4] sm:$0xf]
  %v2060 = vunpack.c.l.b16 %v2056
  %v2061 = vunpack.c.l.b16 %v2057
  %v2062 = vpack.c.b16 %v2061, %v2060
  %v2065 = vsel %vm403, %v2047, 0
  %v2068 = vsel %vm403, %v2048, 0
  %v2071 = vsel %vm403, %v2049, 0
  %v2074 = vsel %vm403, %v2050, 0
  %v2077 = vsel %vm403, %v2051, 0
  %v2080 = vsel %vm403, %v2052, 0
  %v2083 = vsel %vm403, %v2053, 0
  %v2086 = vsel %vm403, %v2054, 0
  %2088 = vmatprep.subr.bf16.mxu0 0
  %2089 = vmatpush1.bf16.msra.mxu0 %v2062
  %2090 = vmatprep.subr.bf16.mxu0 0
  %2091 = vmatpush1.bf16.msra.mxu0 0
  %2092 = vmatprep.subr.bf16.mxu0 0
  %2093 = vmatpush1.bf16.msra.mxu0 0
  %2094 = vmatprep.subr.bf16.mxu0 0
  %2095 = vmatpush1.bf16.msra.mxu0 0
  %2096 = vmatprep.subr.bf16.mxu0 0
  %2097 = vmatpush1.bf16.msra.mxu0 0
  %2098 = vmatprep.subr.bf16.mxu0 0
  %2099 = vmatpush1.bf16.msra.mxu0 0
  %2100 = vmatprep.subr.bf16.mxu0 0
  %2101 = vmatpush1.bf16.msra.mxu0 0
  %2102 = vmatprep.subr.bf16.mxu0 0
  %2103 = vmatpush1.bf16.msra.mxu0 0
  %2104 = vmatprep.subr.bf16.mxu0 0
  %2105 = vmatpush1.bf16.msra.mxu0 0
  %2106 = vmatprep.subr.bf16.mxu0 0
  %2107 = vmatpush1.bf16.msra.mxu0 0
  %2108 = vmatprep.subr.bf16.mxu0 0
  %2109 = vmatpush1.bf16.msra.mxu0 0
  %2110 = vmatprep.subr.bf16.mxu0 0
  %2111 = vmatpush1.bf16.msra.mxu0 0
  %2112 = vmatprep.subr.bf16.mxu0 0
  %2113 = vmatpush1.bf16.msra.mxu0 0
  %2114 = vmatprep.subr.bf16.mxu0 0
  %2115 = vmatpush1.bf16.msra.mxu0 0
  %2116 = vmatprep.subr.bf16.mxu0 0
  %2117 = vmatpush1.bf16.msra.mxu0 0
  %2118 = vmatprep.subr.bf16.mxu0 0
  %2119 = vmatpush1.bf16.msra.mxu0 0
  %2120 = vmatprep.mubr.bf16.mxu0 0
  %2121 = vmatmul.mubr.bf16.gmra.mrb[0].mxu0 %v2065
  %v2122 = vpop.f32.mrb[0].mxu0
  %v2123 = vadd.f32 0.0, %v2122
  %v2124 = vpop.f32.mrb[0].mxu0
  %v2125 = vpop.f32.mrb[0].mxu0
  %v2126 = vadd.f32 0.0, %v2125
  %v2127 = vpop.f32.mrb[0].mxu0
  %2128 = vmatprep.mubr.bf16.mxu0 0
  %2129 = vmatmul.mubr.bf16.gmra.mrb[0].mxu0 %v2068
  %v2130 = vpop.f32.mrb[0].mxu0
  %v2131 = vadd.f32 0.0, %v2130
  %v2132 = vpop.f32.mrb[0].mxu0
  %v2133 = vpop.f32.mrb[0].mxu0
  %v2134 = vadd.f32 0.0, %v2133
  %v2135 = vpop.f32.mrb[0].mxu0
  %2136 = vmatprep.mubr.bf16.mxu0 0
  %2137 = vmatmul.mubr.bf16.gmra.mrb[0].mxu0 %v2071
  %v2138 = vpop.f32.mrb[0].mxu0
  %v2139 = vadd.f32 0.0, %v2138
  %v2140 = vpop.f32.mrb[0].mxu0
  %v2141 = vpop.f32.mrb[0].mxu0
  %v2142 = vadd.f32 0.0, %v2141
  %v2143 = vpop.f32.mrb[0].mxu0
  %2144 = vmatprep.mubr.bf16.mxu0 0
  %2145 = vmatmul.mubr.bf16.gmra.mrb[0].mxu0 %v2074
  %v2146 = vpop.f32.mrb[0].mxu0
  %v2147 = vadd.f32 0.0, %v2146
  %v2148 = vpop.f32.mrb[0].mxu0
  %v2149 = vpop.f32.mrb[0].mxu0
  %v2150 = vadd.f32 0.0, %v2149
  %v2151 = vpop.f32.mrb[0].mxu0
  %2152 = vmatprep.mubr.bf16.mxu0 0
  %2153 = vmatmul.mubr.bf16.gmra.mrb[0].mxu0 %v2077
  %v2154 = vpop.f32.mrb[0].mxu0
  %v2155 = vadd.f32 0.0, %v2154
  %v2156 = vpop.f32.mrb[0].mxu0
  %v2157 = vpop.f32.mrb[0].mxu0
  %v2158 = vadd.f32 0.0, %v2157
  %v2159 = vpop.f32.mrb[0].mxu0
  %2160 = vmatprep.mubr.bf16.mxu0 0
  %2161 = vmatmul.mubr.bf16.gmra.mrb[0].mxu0 %v2080
  %v2162 = vpop.f32.mrb[0].mxu0
  %v2163 = vadd.f32 0.0, %v2162
  %v2164 = vpop.f32.mrb[0].mxu0
  %v2165 = vpop.f32.mrb[0].mxu0
  %v2166 = vadd.f32 0.0, %v2165
  %v2167 = vpop.f32.mrb[0].mxu0
  %2168 = vmatprep.mubr.bf16.mxu0 0
  %2169 = vmatmul.mubr.bf16.gmra.mrb[0].mxu0 %v2083
  %v2170 = vpop.f32.mrb[0].mxu0
  %v2171 = vadd.f32 0.0, %v2170
  %v2172 = vpop.f32.mrb[0].mxu0
  %v2173 = vpop.f32.mrb[0].mxu0
  %v2174 = vadd.f32 0.0, %v2173
  %v2175 = vpop.f32.mrb[0].mxu0
  %2176 = vmatprep.mubr.bf16.mxu0 0
  %2177 = vmatmul.mubr.bf16.gmra.mrb[0].mxu0 %v2086
  %v2178 = vpop.f32.mrb[0].mxu0
  %v2179 = vadd.f32 0.0, %v2178
  %v2180 = vpop.f32.mrb[0].mxu0
  %v2181 = vpop.f32.mrb[0].mxu0
  %v2182 = vadd.f32 0.0, %v2181
  %v2183 = vpop.f32.mrb[0].mxu0
  %2184 = vdwg.mxu0
  %v2185 = vadd.f32 %v2017, %v2123
  %v2186 = vadd.f32 %v2018, %v2126
  %v2187 = vadd.f32 %v2019, %v2131
  %v2188 = vadd.f32 %v2020, %v2134
  %v2189 = vadd.f32 %v2021, %v2139
  %v2190 = vadd.f32 %v2022, %v2142
  %v2191 = vadd.f32 %v2023, %v2147
  %v2192 = vadd.f32 %v2024, %v2150
  %v2193 = vadd.f32 %v2025, %v2155
  %v2194 = vadd.f32 %v2026, %v2158
  %v2195 = vadd.f32 %v2027, %v2163
  %v2196 = vadd.f32 %v2028, %v2166
  %v2197 = vadd.f32 %v2029, %v2171
  %v2198 = vadd.f32 %v2030, %v2174
  %v2199 = vadd.f32 %v2031, %v2179
  %v2200 = vadd.f32 %v2032, %v2182
  %2201 = vst.msk [vmem:[%s6] sm:$0xff] %vm525, %v2185
  %2202 = vst.msk [vmem:[%s6 + $0x8] sm:$0xff] %vm525, %v2186
  %2203 = vst.msk [vmem:[%s6 + $0x10] sm:$0xff] %vm525, %v2187
  %2204 = vst.msk [vmem:[%s6 + $0x18] sm:$0xff] %vm525, %v2188
  %2205 = vst.msk [vmem:[%s6 + $0x20] sm:$0xff] %vm525, %v2189
  %2206 = vst.msk [vmem:[%s6 + $0x28] sm:$0xff] %vm525, %v2190
  %2207 = vst.msk [vmem:[%s6 + $0x30] sm:$0xff] %vm525, %v2191
  %2208 = vst.msk [vmem:[%s6 + $0x38] sm:$0xff] %vm525, %v2192
  %2209 = vst.msk [vmem:[%s6 + $0x40] sm:$0xff] %vm525, %v2193
  %2210 = vst.msk [vmem:[%s6 + $0x48] sm:$0xff] %vm525, %v2194
  %2211 = vst.msk [vmem:[%s6 + $0x50] sm:$0xff] %vm525, %v2195
  %2212 = vst.msk [vmem:[%s6 + $0x58] sm:$0xff] %vm525, %v2196
  %2213 = vst.msk [vmem:[%s6 + $0x60] sm:$0xff] %vm525, %v2197
  %2214 = vst.msk [vmem:[%s6 + $0x68] sm:$0xff] %vm525, %v2198
  %2215 = vst.msk [vmem:[%s6 + $0x70] sm:$0xff] %vm525, %v2199
  %2216 = vst.msk [vmem:[%s6 + $0x78] sm:$0xff] %vm525, %v2200
  %v2217 = vsel %vm525, %v2185, 0.0
  %v2218 = vsel %vm525, %v2186, 0.0
  %v2219 = vadd.f32 %v2217, %v2218
  %v2220 = vsel %vm525, %v2187, 0.0
  %v2221 = vadd.f32 %v2219, %v2220
  %v2222 = vsel %vm525, %v2188, 0.0
  %v2223 = vadd.f32 %v2221, %v2222
  %v2224 = vsel %vm525, %v2189, 0.0
  %v2225 = vadd.f32 %v2223, %v2224
  %v2226 = vsel %vm525, %v2190, 0.0
  %v2227 = vadd.f32 %v2225, %v2226
  %v2228 = vsel %vm525, %v2191, 0.0
  %v2229 = vadd.f32 %v2227, %v2228
  %v2230 = vsel %vm525, %v2192, 0.0
  %v2231 = vadd.f32 %v2229, %v2230
  %v2232 = vsel %vm525, %v2193, 0.0
  %v2233 = vadd.f32 %v2231, %v2232
  %v2234 = vsel %vm525, %v2194, 0.0
  %v2235 = vadd.f32 %v2233, %v2234
  %v2236 = vsel %vm525, %v2195, 0.0
  %v2237 = vadd.f32 %v2235, %v2236
  %v2238 = vsel %vm525, %v2196, 0.0
  %v2239 = vadd.f32 %v2237, %v2238
  %v2240 = vsel %vm525, %v2197, 0.0
  %v2241 = vadd.f32 %v2239, %v2240
  %v2242 = vsel %vm525, %v2198, 0.0
  %v2243 = vadd.f32 %v2241, %v2242
  %v2244 = vsel %vm525, %v2199, 0.0
  %v2245 = vadd.f32 %v2243, %v2244
  %v2246 = vsel %vm525, %v2200, 0.0
  %v2247 = vadd.f32 %v2245, %v2246
  %v2248 = vrot.slane %v2247, 4
  %v2249 = vadd.f32 %v2247, %v2248
  %v2250 = vrot.slane %v2249, 2
  %v2251 = vadd.f32 %v2249, %v2250
  %v2252 = vrot.slane %v2251, 1
  %v2253 = vadd.f32 %v2251, %v2252
  %vm2254 = vcmask 253952
  %2255 = vst.msk [vmem:[%s8] sm:$0x1] %vm2254, %v2253
  %v2256 = vmul.f32 %v2185, %v2185
  %v2257 = vmul.f32 %v2186, %v2186
  %v2258 = vmul.f32 %v2187, %v2187
  %v2259 = vmul.f32 %v2188, %v2188
  %v2260 = vmul.f32 %v2189, %v2189
  %v2261 = vmul.f32 %v2190, %v2190
  %v2262 = vmul.f32 %v2191, %v2191
  %v2263 = vmul.f32 %v2192, %v2192
  %v2264 = vmul.f32 %v2193, %v2193
  %v2265 = vmul.f32 %v2194, %v2194
  %v2266 = vmul.f32 %v2195, %v2195
  %v2267 = vmul.f32 %v2196, %v2196
  %v2268 = vmul.f32 %v2197, %v2197
  %v2269 = vmul.f32 %v2198, %v2198
  %v2270 = vmul.f32 %v2199, %v2199
  %v2271 = vmul.f32 %v2200, %v2200
  %v2272 = vsel %vm525, %v2256, 0.0
  %v2273 = vsel %vm525, %v2257, 0.0
  %v2274 = vadd.f32 %v2272, %v2273
  %v2275 = vsel %vm525, %v2258, 0.0
  %v2276 = vadd.f32 %v2274, %v2275
  %v2277 = vsel %vm525, %v2259, 0.0
  %v2278 = vadd.f32 %v2276, %v2277
  %v2279 = vsel %vm525, %v2260, 0.0
  %v2280 = vadd.f32 %v2278, %v2279
  %v2281 = vsel %vm525, %v2261, 0.0
  %v2282 = vadd.f32 %v2280, %v2281
  %v2283 = vsel %vm525, %v2262, 0.0
  %v2284 = vadd.f32 %v2282, %v2283
  %v2285 = vsel %vm525, %v2263, 0.0
  %v2286 = vadd.f32 %v2284, %v2285
  %v2287 = vsel %vm525, %v2264, 0.0
  %v2288 = vadd.f32 %v2286, %v2287
  %v2289 = vsel %vm525, %v2265, 0.0
  %v2290 = vadd.f32 %v2288, %v2289
  %v2291 = vsel %vm525, %v2266, 0.0
  %v2292 = vadd.f32 %v2290, %v2291
  %v2293 = vsel %vm525, %v2267, 0.0
  %v2294 = vadd.f32 %v2292, %v2293
  %v2295 = vsel %vm525, %v2268, 0.0
  %v2296 = vadd.f32 %v2294, %v2295
  %v2297 = vsel %vm525, %v2269, 0.0
  %v2298 = vadd.f32 %v2296, %v2297
  %v2299 = vsel %vm525, %v2270, 0.0
  %v2300 = vadd.f32 %v2298, %v2299
  %v2301 = vsel %vm525, %v2271, 0.0
  %v2302 = vadd.f32 %v2300, %v2301
  %v2303 = vrot.slane %v2302, 4
  %v2304 = vadd.f32 %v2302, %v2303
  %v2305 = vrot.slane %v2304, 2
  %v2306 = vadd.f32 %v2304, %v2305
  %v2307 = vrot.slane %v2306, 1
  %v2308 = vadd.f32 %v2306, %v2307
  %2309 = vst.msk [vmem:[%s9] sm:$0x1] %vm2254, %v2308
  // Predicated region
  $region26: #{resnet_basicblock_forward.3} parent=0 // pred_check
    _
  $region27: #{resnet_basicblock_forward.3} parent=0 // pred_check_branch
    %2311 = sbr.rel (0) target = $region29
  $region28: #{resnet_basicblock_forward.3} parent=0 // pred_region
    _
  $region29: #{resnet_basicblock_forward.3} parent=0 // pred_fallthru
    _
  // Predicated region
  $region30: #{resnet_basicblock_forward.3} parent=0 // pred_check
    _
  $region31: #{resnet_basicblock_forward.3} parent=0 // pred_check_branch
    %2313 = sbr.rel (0) target = $region33
  $region32: #{resnet_basicblock_forward.3} parent=0 // pred_region
    _
  $region33: #{resnet_basicblock_forward.3} parent=0 // pred_fallthru
    _
  // Predicated region
  $region34: #{resnet_basicblock_forward.3} parent=0 // pred_check
    _
  $region35: #{resnet_basicblock_forward.3} parent=0 // pred_check_branch
    %2315 = sbr.rel (0) target = $region37
  $region36: #{resnet_basicblock_forward.3} parent=0 // pred_region
    _
  $region37: #{resnet_basicblock_forward.3} parent=0 // pred_fallthru
    _
  // Predicated region
  $region38: #{resnet_basicblock_forward.3} parent=0 // pred_check
    _
  $region39: #{resnet_basicblock_forward.3} parent=0 // pred_check_branch
    %2317 = sbr.rel (0) target = $region41
  $region40: #{resnet_basicblock_forward.3} parent=0 // pred_region
    _
  $region41: #{resnet_basicblock_forward.3} parent=0 // pred_fallthru
    _
  // Predicated region
  $region42: #{resnet_basicblock_forward.3} parent=0 // pred_check
    _
  $region43: #{resnet_basicblock_forward.3} parent=0 // pred_check_branch
    %2319 = sbr.rel (0) target = $region45
  $region44: #{resnet_basicblock_forward.3} parent=0 // pred_region
    _
  $region45: #{resnet_basicblock_forward.3} parent=0 // pred_fallthru
    _
  // Predicated region
  $region46: #{resnet_basicblock_forward.3} parent=0 // pred_check
    _
  $region47: #{resnet_basicblock_forward.3} parent=0 // pred_check_branch
    %2321 = sbr.rel (0) target = $region49
  $region48: #{resnet_basicblock_forward.3} parent=0 // pred_region
    _
  $region49: #{resnet_basicblock_forward.3} parent=0 // pred_fallthru
    _
  // Predicated region
  $region50: #{resnet_basicblock_forward.3} parent=0 // pred_check
    _
  $region51: #{resnet_basicblock_forward.3} parent=0 // pred_check_branch
    %2323 = sbr.rel (0) target = $region53
  $region52: #{resnet_basicblock_forward.3} parent=0 // pred_region
    _
  $region53: #{resnet_basicblock_forward.3} parent=0 // pred_fallthru
    _
  // Predicated region
  $region54: #{resnet_basicblock_forward.3} parent=0 // pred_check
    _
  $region55: #{resnet_basicblock_forward.3} parent=0 // pred_check_branch
    %2325 = sbr.rel (0) target = $region57
  $region56: #{resnet_basicblock_forward.3} parent=0 // pred_region
    _
  $region57: #{resnet_basicblock_forward.3} parent=0 // pred_fallthru
    _

</llo_original>
